<compile_context>
chip_gen: v7x
topology: tpu7x:2x2x1
jax: 0.10.0
libtpu: 0.0.40
codegen_flags: <defaults>
</compile_context>

<pallas_src>
import jax
import jax.numpy as jnp
from jax.experimental import pallas as pl
from jax.experimental.pallas import tpu as pltpu

_LANE = 128              # TPU vreg lane width
_MAX_ROWS_FUSED = 1024   # (1024, 256) f32 input block  = 1 MiB
_MAX_ROWS_SPLIT = 2048   # (2048, 128) f32 input blocks = 1 MiB each


# ----------------------------------------------------------------------------
# Kernels
# ----------------------------------------------------------------------------
def _deinterleave_kernel(xi_ref, out_ref):
    # xi_ref : (TR, 2L) f32, lanes = [re0, im0, re1, im1, ...]
    # out_ref: (2, TR, L); slot 0 <- real half, slot 1 <- imag half
    tr, two_l = xi_ref.shape
    l = two_l // 2
    pairs = xi_ref[...].reshape(tr, l, 2)   # lane de-interleave; hides under DMA
    out_ref[0, :, :] = pairs[:, :, 0]
    out_ref[1, :, :] = pairs[:, :, 1]


def _concat_kernel(real_ref, imag_ref, out_ref):
    # real_ref, imag_ref: (TR, L) dense tiles; out_ref: (2, TR, L)
    out_ref[0, :, :] = real_ref[...]
    out_ref[1, :, :] = imag_ref[...]


# ----------------------------------------------------------------------------
# Tiling helpers
# ----------------------------------------------------------------------------
def _pick_rows(total_rows, cap, n_batch):
    """Row-tile size: <= cap, multiple of 8 (or full extent), and when N == 1
    make sure the grid has >= 2 steps so both v7x TensorCores participate."""
    tr = min(total_rows, cap)
    if tr < total_rows:
        tr = max(8, (tr // 8) * 8)
    elif n_batch == 1 and total_rows >= 16:
        half = -(-total_rows // 2)
        half = -(-half // 8) * 8
        if half < total_rows:
            tr = half
    return tr


# ----------------------------------------------------------------------------
# Fused path: bitcast complex64 -> interleaved f32, de-interleave in-kernel.
# HBM traffic = 16 B / complex element (the minimum).
# ----------------------------------------------------------------------------
def _forward_fused(x, max_rows=None):
    n, c, h, w = x.shape
    chw = c * h * w
    rows = chw // _LANE

    # Raw interleaved f32 view of the complex buffer (no data movement).
    try:
        xi = jax.lax.bitcast_convert_type(x, jnp.float32)   # (N, C, H, W, 2)
    except Exception:
        xi = x.view(jnp.float32)                            # numpy-style view
    xi = xi.reshape(n, rows, 2 * _LANE)                      # contiguous -> free

    tr = _pick_rows(rows, max_rows or _MAX_ROWS_FUSED, n)
    n_tiles = pl.cdiv(rows, tr)
    bytes_accessed = n * chw * 16                            # 8 B read + 8 B write

    grid_spec = pltpu.PrefetchScalarGridSpec(
        num_scalar_prefetch=0,
        grid=(n, n_tiles),
        in_specs=[pl.BlockSpec((None, tr, 2 * _LANE), lambda b, t: (b, t, 0))],
        out_specs=pl.BlockSpec((None, 2, tr, _LANE), lambda b, t: (b, 0, t, 0)),
    )
    out = pl.pallas_call(
        _deinterleave_kernel,
        out_shape=jax.ShapeDtypeStruct((n, 2, rows, _LANE), jnp.float32),
        grid_spec=grid_spec,
        compiler_params=pltpu.CompilerParams(
            dimension_semantics=("parallel", "parallel"),
            allow_input_fusion=[True],
        ),
        cost_estimate=pl.CostEstimate(flops=0, transcendentals=0,
                                      bytes_accessed=bytes_accessed),
    )(xi)
    # (N, 2, R, 128) is byte-identical to (N, 2C, H, W): free reshape.
    return out.reshape(n, 2 * c, h, w)


# ----------------------------------------------------------------------------
# Split path: XLA extracts real/imag, kernel does the channel-concat copy.
# allow_input_fusion lets XLA fuse the extraction into the input reads.
# ----------------------------------------------------------------------------
def _forward_split(x, max_rows=None):
    n, c, h, w = x.shape
    chw = c * h * w

    real = jnp.real(x)
    imag = jnp.imag(x)
    out_dtype = real.dtype

    if chw % _LANE == 0:
        rows, lanes = chw // _LANE, _LANE    # lane-dense: unmasked 128-wide stores
    else:
        rows, lanes = c * h, w               # non-aligned fallback: tiled (C*H, W)

    real3 = real.reshape(n, rows, lanes)
    imag3 = imag.reshape(n, rows, lanes)

    cap = max_rows or max(8, min(_MAX_ROWS_SPLIT, (1 << 20) // max(1, 4 * lanes)))
    tr = _pick_rows(rows, cap, n)
    n_tiles = pl.cdiv(rows, tr)
    bytes_accessed = n * chw * 16

    grid_spec = pltpu.PrefetchScalarGridSpec(
        num_scalar_prefetch=0,
        grid=(n, n_tiles),
        in_specs=[pl.BlockSpec((None, tr, lanes), lambda b, t: (b, t, 0)),
                  pl.BlockSpec((None, tr, lanes), lambda b, t: (b, t, 0))],
        out_specs=pl.BlockSpec((None, 2, tr, lanes), lambda b, t: (b, 0, t, 0)),
    )
    out = pl.pallas_call(
        _concat_kernel,
        out_shape=jax.ShapeDtypeStruct((n, 2, rows, lanes), out_dtype),
        grid_spec=grid_spec,
        compiler_params=pltpu.CompilerParams(
            dimension_semantics=("parallel", "parallel"),
            allow_input_fusion=[True, True],
        ),
        cost_estimate=pl.CostEstimate(flops=0, transcendentals=0,
                                      bytes_accessed=bytes_accessed),
    )(real3, imag3)
    return out.reshape(n, 2 * c, h, w)


# ----------------------------------------------------------------------------
# Path selection: one-time probe of the fused path (lowering + exactness).
# ----------------------------------------------------------------------------
_FUSED_OK = None


def _fused_path_available():
    global _FUSED_OK
    if _FUSED_OK is None:
        try:
            base = jnp.arange(2048, dtype=jnp.float32).reshape(1, 8, 16, 16)
            probe = jax.lax.complex(base, base + 0.5)
            got = jax.block_until_ready(_forward_fused(probe))
            ref = jnp.concatenate([jnp.real(probe), jnp.imag(probe)], axis=1)
            _FUSED_OK = bool(jnp.array_equal(got, ref))
        except Exception:
            _FUSED_OK = False
    return _FUSED_OK


def complex_to_float(x, *, max_rows=None):
    """Pallas implementation of ComplexToFloat.forward: cat([x.real, x.imag], 1)."""
    if not jnp.iscomplexobj(x):
        raise ValueError(f"input should be a complex tensor. Got {x.dtype}")
    n, c, h, w = x.shape
    chw = c * h * w
    if x.dtype == jnp.complex64 and chw % _LANE == 0 and _fused_path_available():
        try:
            return _forward_fused(x, max_rows=max_rows)
        except Exception:
            pass   # unexpected per-shape failure: fall back to the safe path
    return _forward_split(x, max_rows=max_rows)


# ----------------------------------------------------------------------------
# Self-test
# ----------------------------------------------------------------------------
if __name__ == "__main__":
    key = jax.random.PRNGKey(0)
    k_re, k_im = jax.random.split(key)

    # Test 1: nominal small NCHW shape (128-aligned -> fused path when available).
    N, C, H, W = 2, 4, 16, 16
    re = jax.random.normal(k_re, (N, C, H, W), dtype=jnp.float32)
    im = jax.random.normal(k_im, (N, C, H, W), dtype=jnp.float32)
    x = jax.lax.complex(re, im)
    out = jax.block_until_ready(complex_to_float(x))
    ref = jnp.concatenate([jnp.real(x), jnp.imag(x)], axis=1)
    assert out.shape == (N, 2 * C, H, W), out.shape
    assert out.dtype == jnp.float32, out.dtype
    assert bool(jnp.array_equal(out, ref)), "mismatch vs reference (aligned)"

    # Test 2: multi-tile grid with a partial last row tile (R=40, TR=16), N=1.
    N2, C2, H2, W2 = 1, 5, 32, 32
    re2 = jax.random.normal(k_re, (N2, C2, H2, W2), dtype=jnp.float32)
    im2 = jax.random.normal(k_im, (N2, C2, H2, W2), dtype=jnp.float32)
    x2 = jax.lax.complex(re2, im2)
    out2 = jax.block_until_ready(complex_to_float(x2, max_rows=16))
    ref2 = jnp.concatenate([jnp.real(x2), jnp.imag(x2)], axis=1)
    assert bool(jnp.array_equal(out2, ref2)), "mismatch vs reference (partial tile)"

    # Test 3: non-128-aligned C*H*W -> tiled split fallback path.
    N3, C3, H3, W3 = 2, 3, 5, 7
    re3 = jax.random.normal(k_re, (N3, C3, H3, W3), dtype=jnp.float32)
    im3 = jax.random.normal(k_im, (N3, C3, H3, W3), dtype=jnp.float32)
    x3 = jax.lax.complex(re3, im3)
    out3 = jax.block_until_ready(complex_to_float(x3))
    ref3 = jnp.concatenate([jnp.real(x3), jnp.imag(x3)], axis=1)
    assert out3.shape == (N3, 2 * C3, H3, W3), out3.shape
    assert bool(jnp.array_equal(out3, ref3)), "mismatch vs reference (unaligned)"

    print("KERNEL_OK")
</pallas_src>

<mosaic_0001>
module attributes {stable_mosaic.version = 11 : i64} {
  func.func @_deinterleave_kernel(%arg0: i32, %arg1: i32, %arg2: memref<1x8x256xf32, #tpu.memory_space<vmem>>, %arg3: memref<1x2x8x128xf32, #tpu.memory_space<vmem>>) attributes {dimension_semantics = [#tpu.dimension_semantics<parallel>, #tpu.dimension_semantics<parallel>], iteration_bounds = array<i64: 1, 2>, scalar_prefetch = 0 : i64, scratch_operands = 0 : i64, tpu.core_type = #tpu.core_type<tc>, window_params = [{transform_indices = @transform_0, window_bounds = array<i64: 1, 8, 256>}, {transform_indices = @transform_1, window_bounds = array<i64: 1, 2, 8, 128>}]} {
    %c0 = arith.constant 0 : index
    %c0_0 = arith.constant 0 : index
    %c0_1 = arith.constant 0 : index
    %0 = vector.load %arg2[%c0, %c0_0, %c0_1] : memref<1x8x256xf32, #tpu.memory_space<vmem>>, vector<1x8x256xf32>
    %1 = vector.shape_cast %0 : vector<1x8x256xf32> to vector<8x256xf32>
    %2 = vector.shape_cast %1 : vector<8x256xf32> to vector<8x128x2xf32>
    %3 = vector.extract_strided_slice %2 {offsets = [0, 0, 0], sizes = [8, 128, 1], strides = [1, 1, 1]} : vector<8x128x2xf32> to vector<8x128x1xf32>
    %4 = vector.shape_cast %3 : vector<8x128x1xf32> to vector<8x128xf32>
    %c0_2 = arith.constant 0 : index
    %c0_3 = arith.constant 0 : index
    %c0_4 = arith.constant 0 : index
    %c0_5 = arith.constant 0 : index
    %5 = vector.load %arg3[%c0_2, %c0_3, %c0_4, %c0_5] : memref<1x2x8x128xf32, #tpu.memory_space<vmem>>, vector<1x1x8x128xf32>
    %6 = vector.shape_cast %5 : vector<1x1x8x128xf32> to vector<8x128xf32>
    %7 = vector.shape_cast %4 : vector<8x128xf32> to vector<1x1x8x128xf32>
    tpu.vector_store %arg3[%c0_2, %c0_3, %c0_4, %c0_5], %7 {strides = array<i32>} : memref<1x2x8x128xf32, #tpu.memory_space<vmem>>, vector<1x1x8x128xf32>,
    %8 = vector.extract_strided_slice %2 {offsets = [0, 0, 1], sizes = [8, 128, 1], strides = [1, 1, 1]} : vector<8x128x2xf32> to vector<8x128x1xf32>
    %9 = vector.shape_cast %8 : vector<8x128x1xf32> to vector<8x128xf32>
    %c0_6 = arith.constant 0 : index
    %c1 = arith.constant 1 : index
    %c0_7 = arith.constant 0 : index
    %c0_8 = arith.constant 0 : index
    %10 = vector.load %arg3[%c0_6, %c1, %c0_7, %c0_8] : memref<1x2x8x128xf32, #tpu.memory_space<vmem>>, vector<1x1x8x128xf32>
    %11 = vector.shape_cast %10 : vector<1x1x8x128xf32> to vector<8x128xf32>
    %12 = vector.shape_cast %9 : vector<8x128xf32> to vector<1x1x8x128xf32>
    tpu.vector_store %arg3[%c0_6, %c1, %c0_7, %c0_8], %12 {strides = array<i32>} : memref<1x2x8x128xf32, #tpu.memory_space<vmem>>, vector<1x1x8x128xf32>,
    return
  }
  func.func @transform_0(%arg0: i32, %arg1: i32) -> (i32, i32, i32) {
    %c0_i32 = arith.constant 0 : i32
    %c0_i32_0 = arith.constant 0 : i32
    return %arg0, %arg1, %c0_i32 : i32, i32, i32
  }
  func.func @transform_1(%arg0: i32, %arg1: i32) -> (i32, i32, i32, i32) {
    %c0_i32 = arith.constant 0 : i32
    %c0_i32_0 = arith.constant 0 : i32
    %c0_i32_1 = arith.constant 0 : i32
    return %arg0, %c0_i32, %arg1, %c0_i32_0 : i32, i32, i32, i32
  }
}

module attributes {stable_mosaic.version = 11 : i64} {
  func.func @_concat_kernel(%arg0: i32, %arg1: i32, %arg2: memref<1x8x128xf32, #tpu.memory_space<vmem>>, %arg3: memref<1x8x128xf32, #tpu.memory_space<vmem>>, %arg4: memref<1x2x8x128xf32, #tpu.memory_space<vmem>>) attributes {dimension_semantics = [#tpu.dimension_semantics<parallel>, #tpu.dimension_semantics<parallel>], iteration_bounds = array<i64: 2, 1>, scalar_prefetch = 0 : i64, scratch_operands = 0 : i64, tpu.core_type = #tpu.core_type<tc>, window_params = [{transform_indices = @transform_0, window_bounds = array<i64: 1, 8, 128>}, {transform_indices = @transform_1, window_bounds = array<i64: 1, 8, 128>}, {transform_indices = @transform_2, window_bounds = array<i64: 1, 2, 8, 128>}]} {
    %c0 = arith.constant 0 : index
    %c0_0 = arith.constant 0 : index
    %c0_1 = arith.constant 0 : index
    %0 = vector.load %arg2[%c0, %c0_0, %c0_1] : memref<1x8x128xf32, #tpu.memory_space<vmem>>, vector<1x8x128xf32>
    %1 = vector.shape_cast %0 : vector<1x8x128xf32> to vector<8x128xf32>
    %c0_2 = arith.constant 0 : index
    %c0_3 = arith.constant 0 : index
    %c0_4 = arith.constant 0 : index
    %c0_5 = arith.constant 0 : index
    %2 = vector.load %arg4[%c0_2, %c0_3, %c0_4, %c0_5] : memref<1x2x8x128xf32, #tpu.memory_space<vmem>>, vector<1x1x8x128xf32>
    %3 = vector.shape_cast %2 : vector<1x1x8x128xf32> to vector<8x128xf32>
    %4 = vector.shape_cast %1 : vector<8x128xf32> to vector<1x1x8x128xf32>
    tpu.vector_store %arg4[%c0_2, %c0_3, %c0_4, %c0_5], %4 {strides = array<i32>} : memref<1x2x8x128xf32, #tpu.memory_space<vmem>>, vector<1x1x8x128xf32>,
    %c0_6 = arith.constant 0 : index
    %c0_7 = arith.constant 0 : index
    %c0_8 = arith.constant 0 : index
    %5 = vector.load %arg3[%c0_6, %c0_7, %c0_8] : memref<1x8x128xf32, #tpu.memory_space<vmem>>, vector<1x8x128xf32>
    %6 = vector.shape_cast %5 : vector<1x8x128xf32> to vector<8x128xf32>
    %c0_9 = arith.constant 0 : index
    %c1 = arith.constant 1 : index
    %c0_10 = arith.constant 0 : index
    %c0_11 = arith.constant 0 : index
    %7 = vector.load %arg4[%c0_9, %c1, %c0_10, %c0_11] : memref<1x2x8x128xf32, #tpu.memory_space<vmem>>, vector<1x1x8x128xf32>
    %8 = vector.shape_cast %7 : vector<1x1x8x128xf32> to vector<8x128xf32>
    %9 = vector.shape_cast %6 : vector<8x128xf32> to vector<1x1x8x128xf32>
    tpu.vector_store %arg4[%c0_9, %c1, %c0_10, %c0_11], %9 {strides = array<i32>} : memref<1x2x8x128xf32, #tpu.memory_space<vmem>>, vector<1x1x8x128xf32>,
    return
  }
  func.func @transform_0(%arg0: i32, %arg1: i32) -> (i32, i32, i32) {
    %c0_i32 = arith.constant 0 : i32
    %c0_i32_0 = arith.constant 0 : i32
    return %arg0, %arg1, %c0_i32 : i32, i32, i32
  }
  func.func @transform_1(%arg0: i32, %arg1: i32) -> (i32, i32, i32) {
    %c0_i32 = arith.constant 0 : i32
    %c0_i32_0 = arith.constant 0 : i32
    return %arg0, %arg1, %c0_i32 : i32, i32, i32
  }
  func.func @transform_2(%arg0: i32, %arg1: i32) -> (i32, i32, i32, i32) {
    %c0_i32 = arith.constant 0 : i32
    %c0_i32_0 = arith.constant 0 : i32
    %c0_i32_1 = arith.constant 0 : i32
    return %arg0, %c0_i32, %arg1, %c0_i32_0 : i32, i32, i32, i32
  }
}

</mosaic_0001>

<llo_original>
// kernel: tpu_custom_call.1
$region0: #{tpu_custom_call.1}
  #allocation0 [shape = 'u32[]', space=smem, size = 0x4, offset = 0x4, fixed_abs, tag = 'smem constant byte address 0x4 - core index']
  #allocation1 [shape = 'u32[144,128]{1,0:T(1,128)}', space=vmem, size = 0x12000, scoped, tag = 'internal scratch']
  %s0 = inlined_call_operand.hbm [shape: f32[1,16,256], index: 0, kind: input, shape index: {}]
  %s1 = inlined_call_operand.hbm [shape: f32[1,2,16,128], index: 1, kind: output, shape index: {}]
  %s2 = sld [smem:[#allocation0]]
  $region41: #{tpu_custom_call.1} parent=0
    _
  %s4 = ssub.s32 1, %s2
  %s5 = scalar_select 0, %s4, %s2
  $region1: #{tpu_custom_call.1} parent=0
    #allocation2 [shape = 'u8[16384]{0}', space=vmem, size = 0x4000, scoped, tag = 'input window, operand 0']
    #allocation3 [shape = 's32[2]{0}', space=sflag, size = 0x8, scoped, tag = 'scoped memory for tpu_custom_call.1']
    #allocation4 [shape = 's32[2]{0}', space=sflag, size = 0x8, scoped, tag = 'scoped memory for tpu_custom_call.1']
    #allocation5 [shape = 'u8[16384]{0}', space=vmem, size = 0x4000, scoped, tag = 'output window, operand 0']
    %6 = vsyncpa [#allocation3], 0
    %s7 = scalar_lea.sflag [#allocation3], 1
    %8 = vsyncpa %s7, 0
    %9 = vsyncpa [#allocation4], 0
    %s10 = scalar_lea.sflag [#allocation4], 1
    %11 = vsyncpa %s10, 0
    loop: start=0, step=1, limit=4
    $region2: #{tpu_custom_call.1} parent=1 // loop_pre_header
      _
    $region3: #{tpu_custom_call.1} parent=1 // loop_header
      %s13 = sphi 0, %s17
      %p14 = scmp.ge.s32.totalorder %s13, 4
      %s20 = sphi 0, %s32
      %s21 = sphi 0, %s28
      %s22 = sphi 0, %s20
      %s23 = sphi 0, %s21
      %s24 = sphi 0, %s22
      %s25 = sphi 0, %s23
      %s37 = sphi 0, %s39
      %s40 = sphi 0, %s37
      %s41 = sphi 0, %s40
      %s57 = sphi 0, %s41
      %s65 = sphi 0, %s67
      %s68 = sphi 0, %s65
      %s69 = sphi 0, %s68
      %s85 = sphi 0, %s69
    $region4: #{tpu_custom_call.1} parent=1 // loop_header_branch
      %16 = sbr.rel (%p14) target = $region8
    $region5: #{tpu_custom_call.1} parent=1 // loop_body
      %s18 = ssub.s32 %s13, 1
      %s19 = ssub.s32 %s13, 2
      %s26 = sadd.s32 1, %s21
      %p27 = scmp.ge.s32.totalorder %s26, 2
      %s28 = scalar_select %p27, 0, %s26
      %s29 = sadd.s32 1, %s20
      %s30 = scalar_select %p27, %s29, %s20
      %p31 = scmp.ge.s32.totalorder %s30, 1
      %s32 = scalar_select %p31, 0, %s30
      %s33 = ssub.s32 %s20, %s32
      %s34 = ssub.s32 %s21, %s28
      %s35 = sor.u32 %s33, %s34
      %p36 = scmp.eq.s32.totalorder %s35, 0
      %s38 = sadd.s32 %s37, 1
      %s39 = scalar_select %p36, %s37, %s38
      %p42 = pneg %p36
      %p43 = scmp.eq.s32.totalorder %s13, 1
      %p44 = por %p42, %p43
      %p45 = scmp.ne.s32.totalorder %s37, %s40
      %p46 = scmp.eq.s32.totalorder %s13, 0
      %p47 = por %p45, %p46
      %p48 = scmp.ne.s32.totalorder %s37, %s40
      %p49 = scmp.eq.s32.totalorder %s18, 1
      %p50 = por %p48, %p49
      %p51 = scmp.ne.s32.totalorder %s40, %s41
      %p52 = scmp.eq.s32.totalorder %s18, 0
      %p53 = por %p51, %p52
      %p54 = scmp.ne.s32.totalorder %s40, %s41
      %p55 = scmp.eq.s32.totalorder %s19, 1
      %p56 = por %p54, %p55
      %p58 = scmp.ne.s32.totalorder %s41, %s57
      %p59 = scmp.eq.s32.totalorder %s19, 0
      %p60 = por %p58, %p59
      %s61 = ssub.s32 %s20, %s32
      %s62 = ssub.s32 %s21, %s28
      %s63 = sor.u32 %s61, %s62
      %p64 = scmp.eq.s32.totalorder %s63, 0
      %s66 = sadd.s32 %s65, 1
      %s67 = scalar_select %p64, %s65, %s66
      %p70 = pneg %p64
      %p71 = scmp.eq.s32.totalorder %s13, 1
      %p72 = por %p70, %p71
      %p73 = scmp.ne.s32.totalorder %s65, %s68
      %p74 = scmp.eq.s32.totalorder %s13, 0
      %p75 = por %p73, %p74
      %p76 = scmp.ne.s32.totalorder %s65, %s68
      %p77 = scmp.eq.s32.totalorder %s18, 1
      %p78 = por %p76, %p77
      %p79 = scmp.ne.s32.totalorder %s68, %s69
      %p80 = scmp.eq.s32.totalorder %s18, 0
      %p81 = por %p79, %p80
      %p82 = scmp.ne.s32.totalorder %s68, %s69
      %p83 = scmp.eq.s32.totalorder %s19, 1
      %p84 = por %p82, %p83
      %p86 = scmp.ne.s32.totalorder %s69, %s85
      %p87 = scmp.eq.s32.totalorder %s19, 0
      %p88 = por %p86, %p87
      %p89 = scmp.le.s32.totalorder 1, %s13
      %p90 = scmp.lt.s32.totalorder %s13, 3
      %p91 = pnand %p89, %p90
      %p92 = pneg %p91
      // Predicated region
      $region9: #{tpu_custom_call.1} parent=5 // pred_check
        _
      $region10: #{tpu_custom_call.1} parent=5 // pred_check_branch
        %94 = sbr.rel (%p91) target = $region12
      $region11: #{tpu_custom_call.1} parent=5 // pred_region
        %s95 = ssub.s32 %s13, 1
      $region12: #{tpu_custom_call.1} parent=5 // pred_fallthru
        _
      %p96 = scmp.lt.s32.totalorder %s13, 2
      // Predicated region
      $region13: #{tpu_custom_call.1} parent=5 // pred_check
        %p97 = pneg %p96
      $region14: #{tpu_custom_call.1} parent=5 // pred_check_branch
        %99 = sbr.rel (%p97) target = $region16
      $region15: #{tpu_custom_call.1} parent=5 // pred_region
        // Predicated region
        $region17: #{tpu_custom_call.1} parent=15 // pred_check
          %p100 = pneg %p47
        $region18: #{tpu_custom_call.1} parent=15 // pred_check_branch
          %102 = sbr.rel (%p100) target = $region20
        $region19: #{tpu_custom_call.1} parent=15 // pred_region
          %s103 = sand.u32 %s37, 1
          %s104 = scalar_lea.sflag [#allocation3], %s103
          %s105 = sand.u32 %s37, 1
          %s106 = smul.addr %s105, 16
          %s107 = scalar_lea.vmem [#allocation2], %s106
          %s109 = ssub.s32 256, 256
          %110 = vsyncadd %s104, %s109
          %s111 = smul.addr %s21, 2
          %s112 = smul.addr %s20, 4
          %s113 = sadd.s32 %s111, %s112
          %s114 = smul.addr %s113, 128
          %s115 = scalar_lea.hbm %s0, %s114
          %s117 = sshll.u32 %s107, 4
          %s118 = int_to_ptr.vmem [resolvable:$true] %s117
          %120 = dma.hbm_to_vmem [thread:$0]  %s115, 256, %s118, %s104
        $region20: #{tpu_custom_call.1} parent=15 // pred_fallthru
          _
      $region16: #{tpu_custom_call.1} parent=5 // pred_fallthru
        _
      %p121 = scmp.le.s32.totalorder 1, %s13
      %p122 = scmp.lt.s32.totalorder %s13, 3
      %p123 = pnand %p121, %p122
      %p124 = pneg %p123
      // Predicated region
      $region21: #{tpu_custom_call.1} parent=5 // pred_check
        _
      $region22: #{tpu_custom_call.1} parent=5 // pred_check_branch
        %126 = sbr.rel (%p123) target = $region24
      $region23: #{tpu_custom_call.1} parent=5 // pred_region
        %s127 = ssub.s32 %s13, 1
        %s128 = sand.u32 %s40, 1
        %s129 = scalar_lea.sflag [#allocation3], %s128
        %s130 = sand.u32 %s40, 1
        %s131 = smul.addr %s130, 16
        %s132 = scalar_lea.vmem [#allocation2], %s131
        // Predicated region
        $region25: #{tpu_custom_call.1} parent=23 // pred_check
          %p133 = pneg %p53
        $region26: #{tpu_custom_call.1} parent=23 // pred_check_branch
          %135 = sbr.rel (%p133) target = $region28
        $region27: #{tpu_custom_call.1} parent=23 // pred_region
          %136 = dma.done %s129, 256
        $region28: #{tpu_custom_call.1} parent=23 // pred_fallthru
          _
        %s137 = sand.u32 %s40, 1
        %s138 = scalar_lea.sflag [#allocation3], %s137
        %s139 = sand.u32 %s40, 1
        %s140 = smul.addr %s139, 16
        %s141 = scalar_lea.vmem [#allocation2], %s140
        %p142 = pneg %p53
        %p143 = pneg %p50
        %p144 = pneg %p81
        %p145 = pneg %p78
        %s146 = sand.u32 %s68, 1
        %s147 = scalar_lea.sflag [#allocation4], %s146
        %s148 = sand.u32 %s68, 1
        %s149 = smul.addr %s148, 16
        %s150 = scalar_lea.vmem [#allocation5], %s149
        %v151 = vld [vmem:[%s132] sm:$0xff]
        %v152 = vld [vmem:[%s132 + $0x8] sm:$0xff]
        %154 = vrot.lane.b32.xlu0 %v151, 126
        %v155 = vpop.permute.xlu0 %154
        %157 = vrot.lane.b32.xlu0 %v151, 124
        %v158 = vpop.permute.xlu0 %157
        %160 = vrot.lane.b32.xlu0 %v151, 122
        %v161 = vpop.permute.xlu0 %160
        %163 = vrot.lane.b32.xlu0 %v151, 120
        %v164 = vpop.permute.xlu0 %163
        %166 = vrot.lane.b32.xlu0 %v151, 118
        %v167 = vpop.permute.xlu0 %166
        %169 = vrot.lane.b32.xlu0 %v151, 116
        %v170 = vpop.permute.xlu0 %169
        %172 = vrot.lane.b32.xlu0 %v151, 114
        %v173 = vpop.permute.xlu0 %172
        %175 = vrot.lane.b32.xlu0 %v151, 112
        %v176 = vpop.permute.xlu0 %175
        %178 = vrot.lane.b32.xlu0 %v151, 110
        %v179 = vpop.permute.xlu0 %178
        %181 = vrot.lane.b32.xlu0 %v151, 108
        %v182 = vpop.permute.xlu0 %181
        %184 = vrot.lane.b32.xlu0 %v151, 106
        %v185 = vpop.permute.xlu0 %184
        %187 = vrot.lane.b32.xlu0 %v151, 104
        %v188 = vpop.permute.xlu0 %187
        %190 = vrot.lane.b32.xlu0 %v151, 102
        %v191 = vpop.permute.xlu0 %190
        %193 = vrot.lane.b32.xlu0 %v151, 100
        %v194 = vpop.permute.xlu0 %193
        %196 = vrot.lane.b32.xlu0 %v151, 98
        %v197 = vpop.permute.xlu0 %196
        %199 = vrot.lane.b32.xlu0 %v151, 96
        %v200 = vpop.permute.xlu0 %199
        %202 = vrot.lane.b32.xlu0 %v151, 94
        %v203 = vpop.permute.xlu0 %202
        %205 = vrot.lane.b32.xlu0 %v151, 92
        %v206 = vpop.permute.xlu0 %205
        %208 = vrot.lane.b32.xlu0 %v151, 90
        %v209 = vpop.permute.xlu0 %208
        %211 = vrot.lane.b32.xlu0 %v151, 88
        %v212 = vpop.permute.xlu0 %211
        %214 = vrot.lane.b32.xlu0 %v151, 86
        %v215 = vpop.permute.xlu0 %214
        %217 = vrot.lane.b32.xlu0 %v151, 84
        %v218 = vpop.permute.xlu0 %217
        %220 = vrot.lane.b32.xlu0 %v151, 82
        %v221 = vpop.permute.xlu0 %220
        %223 = vrot.lane.b32.xlu0 %v151, 80
        %v224 = vpop.permute.xlu0 %223
        %226 = vrot.lane.b32.xlu0 %v151, 78
        %v227 = vpop.permute.xlu0 %226
        %229 = vrot.lane.b32.xlu0 %v151, 76
        %v230 = vpop.permute.xlu0 %229
        %232 = vrot.lane.b32.xlu0 %v151, 74
        %v233 = vpop.permute.xlu0 %232
        %235 = vrot.lane.b32.xlu0 %v151, 72
        %v236 = vpop.permute.xlu0 %235
        %238 = vrot.lane.b32.xlu0 %v151, 70
        %v239 = vpop.permute.xlu0 %238
        %241 = vrot.lane.b32.xlu0 %v151, 68
        %v242 = vpop.permute.xlu0 %241
        %244 = vrot.lane.b32.xlu0 %v151, 66
        %v245 = vpop.permute.xlu0 %244
        %247 = vrot.lane.b32.xlu0 %v151, 64
        %v248 = vpop.permute.xlu0 %247
        %250 = vrot.lane.b32.xlu0 %v151, 62
        %v251 = vpop.permute.xlu0 %250
        %253 = vrot.lane.b32.xlu0 %v151, 60
        %v254 = vpop.permute.xlu0 %253
        %256 = vrot.lane.b32.xlu0 %v151, 58
        %v257 = vpop.permute.xlu0 %256
        %259 = vrot.lane.b32.xlu0 %v151, 56
        %v260 = vpop.permute.xlu0 %259
        %262 = vrot.lane.b32.xlu0 %v151, 54
        %v263 = vpop.permute.xlu0 %262
        %265 = vrot.lane.b32.xlu0 %v151, 52
        %v266 = vpop.permute.xlu0 %265
        %268 = vrot.lane.b32.xlu0 %v151, 50
        %v269 = vpop.permute.xlu0 %268
        %271 = vrot.lane.b32.xlu0 %v151, 48
        %v272 = vpop.permute.xlu0 %271
        %274 = vrot.lane.b32.xlu0 %v151, 46
        %v275 = vpop.permute.xlu0 %274
        %277 = vrot.lane.b32.xlu0 %v151, 44
        %v278 = vpop.permute.xlu0 %277
        %280 = vrot.lane.b32.xlu0 %v151, 42
        %v281 = vpop.permute.xlu0 %280
        %283 = vrot.lane.b32.xlu0 %v151, 40
        %v284 = vpop.permute.xlu0 %283
        %286 = vrot.lane.b32.xlu0 %v151, 38
        %v287 = vpop.permute.xlu0 %286
        %289 = vrot.lane.b32.xlu0 %v151, 36
        %v290 = vpop.permute.xlu0 %289
        %292 = vrot.lane.b32.xlu0 %v151, 34
        %v293 = vpop.permute.xlu0 %292
        %295 = vrot.lane.b32.xlu0 %v151, 32
        %v296 = vpop.permute.xlu0 %295
        %298 = vrot.lane.b32.xlu0 %v151, 30
        %v299 = vpop.permute.xlu0 %298
        %301 = vrot.lane.b32.xlu0 %v151, 28
        %v302 = vpop.permute.xlu0 %301
        %304 = vrot.lane.b32.xlu0 %v151, 26
        %v305 = vpop.permute.xlu0 %304
        %307 = vrot.lane.b32.xlu0 %v151, 24
        %v308 = vpop.permute.xlu0 %307
        %310 = vrot.lane.b32.xlu0 %v151, 22
        %v311 = vpop.permute.xlu0 %310
        %313 = vrot.lane.b32.xlu0 %v151, 20
        %v314 = vpop.permute.xlu0 %313
        %316 = vrot.lane.b32.xlu0 %v151, 18
        %v317 = vpop.permute.xlu0 %316
        %319 = vrot.lane.b32.xlu0 %v151, 16
        %v320 = vpop.permute.xlu0 %319
        %322 = vrot.lane.b32.xlu0 %v151, 14
        %v323 = vpop.permute.xlu0 %322
        %325 = vrot.lane.b32.xlu0 %v151, 12
        %v326 = vpop.permute.xlu0 %325
        %328 = vrot.lane.b32.xlu0 %v151, 10
        %v329 = vpop.permute.xlu0 %328
        %331 = vrot.lane.b32.xlu0 %v151, 8
        %v332 = vpop.permute.xlu0 %331
        %334 = vrot.lane.b32.xlu0 %v151, 6
        %v335 = vpop.permute.xlu0 %334
        %337 = vrot.lane.b32.xlu0 %v151, 4
        %v338 = vpop.permute.xlu0 %337
        %340 = vrot.lane.b32.xlu0 %v151, 2
        %v341 = vpop.permute.xlu0 %340
        %344 = vrot.lane.b32.xlu0 %v152, 126
        %v345 = vpop.permute.xlu0 %344
        %347 = vrot.lane.b32.xlu0 %v152, 124
        %v348 = vpop.permute.xlu0 %347
        %350 = vrot.lane.b32.xlu0 %v152, 122
        %v351 = vpop.permute.xlu0 %350
        %353 = vrot.lane.b32.xlu0 %v152, 120
        %v354 = vpop.permute.xlu0 %353
        %356 = vrot.lane.b32.xlu0 %v152, 118
        %v357 = vpop.permute.xlu0 %356
        %359 = vrot.lane.b32.xlu0 %v152, 116
        %v360 = vpop.permute.xlu0 %359
        %362 = vrot.lane.b32.xlu0 %v152, 114
        %v363 = vpop.permute.xlu0 %362
        %365 = vrot.lane.b32.xlu0 %v152, 112
        %v366 = vpop.permute.xlu0 %365
        %368 = vrot.lane.b32.xlu0 %v152, 110
        %v369 = vpop.permute.xlu0 %368
        %371 = vrot.lane.b32.xlu0 %v152, 108
        %v372 = vpop.permute.xlu0 %371
        %374 = vrot.lane.b32.xlu0 %v152, 106
        %v375 = vpop.permute.xlu0 %374
        %377 = vrot.lane.b32.xlu0 %v152, 104
        %v378 = vpop.permute.xlu0 %377
        %380 = vrot.lane.b32.xlu0 %v152, 102
        %v381 = vpop.permute.xlu0 %380
        %383 = vrot.lane.b32.xlu0 %v152, 100
        %v384 = vpop.permute.xlu0 %383
        %386 = vrot.lane.b32.xlu0 %v152, 98
        %v387 = vpop.permute.xlu0 %386
        %389 = vrot.lane.b32.xlu0 %v152, 96
        %v390 = vpop.permute.xlu0 %389
        %392 = vrot.lane.b32.xlu0 %v152, 94
        %v393 = vpop.permute.xlu0 %392
        %395 = vrot.lane.b32.xlu0 %v152, 92
        %v396 = vpop.permute.xlu0 %395
        %398 = vrot.lane.b32.xlu0 %v152, 90
        %v399 = vpop.permute.xlu0 %398
        %401 = vrot.lane.b32.xlu0 %v152, 88
        %v402 = vpop.permute.xlu0 %401
        %404 = vrot.lane.b32.xlu0 %v152, 86
        %v405 = vpop.permute.xlu0 %404
        %407 = vrot.lane.b32.xlu0 %v152, 84
        %v408 = vpop.permute.xlu0 %407
        %410 = vrot.lane.b32.xlu0 %v152, 82
        %v411 = vpop.permute.xlu0 %410
        %413 = vrot.lane.b32.xlu0 %v152, 80
        %v414 = vpop.permute.xlu0 %413
        %416 = vrot.lane.b32.xlu0 %v152, 78
        %v417 = vpop.permute.xlu0 %416
        %419 = vrot.lane.b32.xlu0 %v152, 76
        %v420 = vpop.permute.xlu0 %419
        %422 = vrot.lane.b32.xlu0 %v152, 74
        %v423 = vpop.permute.xlu0 %422
        %425 = vrot.lane.b32.xlu0 %v152, 72
        %v426 = vpop.permute.xlu0 %425
        %428 = vrot.lane.b32.xlu0 %v152, 70
        %v429 = vpop.permute.xlu0 %428
        %431 = vrot.lane.b32.xlu0 %v152, 68
        %v432 = vpop.permute.xlu0 %431
        %434 = vrot.lane.b32.xlu0 %v152, 66
        %v435 = vpop.permute.xlu0 %434
        %437 = vrot.lane.b32.xlu0 %v152, 64
        %v438 = vpop.permute.xlu0 %437
        %440 = vrot.lane.b32.xlu0 %v152, 62
        %v441 = vpop.permute.xlu0 %440
        %443 = vrot.lane.b32.xlu0 %v152, 60
        %v444 = vpop.permute.xlu0 %443
        %446 = vrot.lane.b32.xlu0 %v152, 58
        %v447 = vpop.permute.xlu0 %446
        %449 = vrot.lane.b32.xlu0 %v152, 56
        %v450 = vpop.permute.xlu0 %449
        %452 = vrot.lane.b32.xlu0 %v152, 54
        %v453 = vpop.permute.xlu0 %452
        %455 = vrot.lane.b32.xlu0 %v152, 52
        %v456 = vpop.permute.xlu0 %455
        %458 = vrot.lane.b32.xlu0 %v152, 50
        %v459 = vpop.permute.xlu0 %458
        %461 = vrot.lane.b32.xlu0 %v152, 48
        %v462 = vpop.permute.xlu0 %461
        %464 = vrot.lane.b32.xlu0 %v152, 46
        %v465 = vpop.permute.xlu0 %464
        %467 = vrot.lane.b32.xlu0 %v152, 44
        %v468 = vpop.permute.xlu0 %467
        %470 = vrot.lane.b32.xlu0 %v152, 42
        %v471 = vpop.permute.xlu0 %470
        %473 = vrot.lane.b32.xlu0 %v152, 40
        %v474 = vpop.permute.xlu0 %473
        %476 = vrot.lane.b32.xlu0 %v152, 38
        %v477 = vpop.permute.xlu0 %476
        %479 = vrot.lane.b32.xlu0 %v152, 36
        %v480 = vpop.permute.xlu0 %479
        %482 = vrot.lane.b32.xlu0 %v152, 34
        %v483 = vpop.permute.xlu0 %482
        %485 = vrot.lane.b32.xlu0 %v152, 32
        %v486 = vpop.permute.xlu0 %485
        %488 = vrot.lane.b32.xlu0 %v152, 30
        %v489 = vpop.permute.xlu0 %488
        %491 = vrot.lane.b32.xlu0 %v152, 28
        %v492 = vpop.permute.xlu0 %491
        %494 = vrot.lane.b32.xlu0 %v152, 26
        %v495 = vpop.permute.xlu0 %494
        %497 = vrot.lane.b32.xlu0 %v152, 24
        %v498 = vpop.permute.xlu0 %497
        %500 = vrot.lane.b32.xlu0 %v152, 22
        %v501 = vpop.permute.xlu0 %500
        %503 = vrot.lane.b32.xlu0 %v152, 20
        %v504 = vpop.permute.xlu0 %503
        %506 = vrot.lane.b32.xlu0 %v152, 18
        %v507 = vpop.permute.xlu0 %506
        %509 = vrot.lane.b32.xlu0 %v152, 16
        %v510 = vpop.permute.xlu0 %509
        %512 = vrot.lane.b32.xlu0 %v152, 14
        %v513 = vpop.permute.xlu0 %512
        %515 = vrot.lane.b32.xlu0 %v152, 12
        %v516 = vpop.permute.xlu0 %515
        %518 = vrot.lane.b32.xlu0 %v152, 10
        %v519 = vpop.permute.xlu0 %518
        %521 = vrot.lane.b32.xlu0 %v152, 8
        %v522 = vpop.permute.xlu0 %521
        %524 = vrot.lane.b32.xlu0 %v152, 6
        %v525 = vpop.permute.xlu0 %524
        %527 = vrot.lane.b32.xlu0 %v152, 4
        %v528 = vpop.permute.xlu0 %527
        %530 = vrot.lane.b32.xlu0 %v152, 2
        %v531 = vpop.permute.xlu0 %530
        %v533 = vcombine.low %v151, %v158
        %v534 = vcombine.high %v151, %v158
        %v536 = vunpack.c.l.s4 1983009808
        %v537 = vunpack.c.0.s8 %v536
        %v538 = vlaneseq
        %v539 = vshrl.u32 %v538, 7
        %v540 = vsub.s32 %v537, %v539
        %v541 = vrot.slane %v533, %v540
        %v543 = vunpack.c.l.s4 1983009808
        %v544 = vunpack.c.0.s8 %v543
        %v545 = vlaneseq
        %v546 = vshrl.u32 %v545, 7
        %v547 = vsub.s32 %v544, %v546
        %v548 = vrot.slane %v534, %v547
        %v549 = vcombine.low %v155, %v161
        %v550 = vcombine.high %v155, %v161
        %v552 = vunpack.c.l.s4 1983009808
        %v553 = vunpack.c.0.s8 %v552
        %v554 = vlaneseq
        %v555 = vshrl.u32 %v554, 7
        %v556 = vsub.s32 %v553, %v555
        %v557 = vrot.slane %v549, %v556
        %v559 = vunpack.c.l.s4 1983009808
        %v560 = vunpack.c.0.s8 %v559
        %v561 = vlaneseq
        %v562 = vshrl.u32 %v561, 7
        %v563 = vsub.s32 %v560, %v562
        %v564 = vrot.slane %v550, %v563
        %v565 = vcombine.low %v164, %v170
        %v566 = vcombine.high %v164, %v170
        %v568 = vunpack.c.l.s4 1983009808
        %v569 = vunpack.c.0.s8 %v568
        %v570 = vlaneseq
        %v571 = vshrl.u32 %v570, 7
        %v572 = vsub.s32 %v569, %v571
        %v573 = vrot.slane %v565, %v572
        %v575 = vunpack.c.l.s4 1983009808
        %v576 = vunpack.c.0.s8 %v575
        %v577 = vlaneseq
        %v578 = vshrl.u32 %v577, 7
        %v579 = vsub.s32 %v576, %v578
        %v580 = vrot.slane %v566, %v579
        %v581 = vcombine.low %v167, %v173
        %v582 = vcombine.high %v167, %v173
        %v584 = vunpack.c.l.s4 1983009808
        %v585 = vunpack.c.0.s8 %v584
        %v586 = vlaneseq
        %v587 = vshrl.u32 %v586, 7
        %v588 = vsub.s32 %v585, %v587
        %v589 = vrot.slane %v581, %v588
        %v591 = vunpack.c.l.s4 1983009808
        %v592 = vunpack.c.0.s8 %v591
        %v593 = vlaneseq
        %v594 = vshrl.u32 %v593, 7
        %v595 = vsub.s32 %v592, %v594
        %v596 = vrot.slane %v582, %v595
        %v597 = vcombine.low %v541, %v557
        %v598 = vcombine.high %v541, %v557
        %v600 = vunpack.c.l.s4 1934713408
        %v601 = vunpack.c.0.s8 %v600
        %v602 = vlaneseq
        %v603 = vshrl.u32 %v602, 7
        %v604 = vsub.s32 %v601, %v603
        %v605 = vrot.slane %v597, %v604
        %v607 = vunpack.c.l.s4 1934713408
        %v608 = vunpack.c.0.s8 %v607
        %v609 = vlaneseq
        %v610 = vshrl.u32 %v609, 7
        %v611 = vsub.s32 %v608, %v610
        %v612 = vrot.slane %v598, %v611
        %v613 = vcombine.low %v548, %v564
        %v614 = vcombine.high %v548, %v564
        %v616 = vunpack.c.l.s4 1934713408
        %v617 = vunpack.c.0.s8 %v616
        %v618 = vlaneseq
        %v619 = vshrl.u32 %v618, 7
        %v620 = vsub.s32 %v617, %v619
        %v621 = vrot.slane %v613, %v620
        %v623 = vunpack.c.l.s4 1934713408
        %v624 = vunpack.c.0.s8 %v623
        %v625 = vlaneseq
        %v626 = vshrl.u32 %v625, 7
        %v627 = vsub.s32 %v624, %v626
        %v628 = vrot.slane %v614, %v627
        %v629 = vcombine.low %v573, %v589
        %v630 = vcombine.high %v573, %v589
        %v632 = vunpack.c.l.s4 1934713408
        %v633 = vunpack.c.0.s8 %v632
        %v634 = vlaneseq
        %v635 = vshrl.u32 %v634, 7
        %v636 = vsub.s32 %v633, %v635
        %v637 = vrot.slane %v629, %v636
        %v639 = vunpack.c.l.s4 1934713408
        %v640 = vunpack.c.0.s8 %v639
        %v641 = vlaneseq
        %v642 = vshrl.u32 %v641, 7
        %v643 = vsub.s32 %v640, %v642
        %v644 = vrot.slane %v630, %v643
        %v645 = vcombine.low %v580, %v596
        %v646 = vcombine.high %v580, %v596
        %v648 = vunpack.c.l.s4 1934713408
        %v649 = vunpack.c.0.s8 %v648
        %v650 = vlaneseq
        %v651 = vshrl.u32 %v650, 7
        %v652 = vsub.s32 %v649, %v651
        %v653 = vrot.slane %v645, %v652
        %v655 = vunpack.c.l.s4 1934713408
        %v656 = vunpack.c.0.s8 %v655
        %v657 = vlaneseq
        %v658 = vshrl.u32 %v657, 7
        %v659 = vsub.s32 %v656, %v658
        %v660 = vrot.slane %v646, %v659
        %v661 = vcombine.low %v605, %v637
        %v662 = vcombine.high %v605, %v637
        %v663 = vcombine.low %v612, %v644
        %v664 = vcombine.high %v612, %v644
        %v665 = vcombine.low %v621, %v653
        %v666 = vcombine.high %v621, %v653
        %v667 = vcombine.low %v628, %v660
        %v668 = vcombine.high %v628, %v660
        %v669 = vcombine.low %v176, %v182
        %v670 = vcombine.high %v176, %v182
        %v672 = vunpack.c.l.s4 1983009808
        %v673 = vunpack.c.0.s8 %v672
        %v674 = vlaneseq
        %v675 = vshrl.u32 %v674, 7
        %v676 = vsub.s32 %v673, %v675
        %v677 = vrot.slane %v669, %v676
        %v679 = vunpack.c.l.s4 1983009808
        %v680 = vunpack.c.0.s8 %v679
        %v681 = vlaneseq
        %v682 = vshrl.u32 %v681, 7
        %v683 = vsub.s32 %v680, %v682
        %v684 = vrot.slane %v670, %v683
        %v685 = vcombine.low %v179, %v185
        %v686 = vcombine.high %v179, %v185
        %v688 = vunpack.c.l.s4 1983009808
        %v689 = vunpack.c.0.s8 %v688
        %v690 = vlaneseq
        %v691 = vshrl.u32 %v690, 7
        %v692 = vsub.s32 %v689, %v691
        %v693 = vrot.slane %v685, %v692
        %v695 = vunpack.c.l.s4 1983009808
        %v696 = vunpack.c.0.s8 %v695
        %v697 = vlaneseq
        %v698 = vshrl.u32 %v697, 7
        %v699 = vsub.s32 %v696, %v698
        %v700 = vrot.slane %v686, %v699
        %v701 = vcombine.low %v188, %v194
        %v702 = vcombine.high %v188, %v194
        %v704 = vunpack.c.l.s4 1983009808
        %v705 = vunpack.c.0.s8 %v704
        %v706 = vlaneseq
        %v707 = vshrl.u32 %v706, 7
        %v708 = vsub.s32 %v705, %v707
        %v709 = vrot.slane %v701, %v708
        %v711 = vunpack.c.l.s4 1983009808
        %v712 = vunpack.c.0.s8 %v711
        %v713 = vlaneseq
        %v714 = vshrl.u32 %v713, 7
        %v715 = vsub.s32 %v712, %v714
        %v716 = vrot.slane %v702, %v715
        %v717 = vcombine.low %v191, %v197
        %v718 = vcombine.high %v191, %v197
        %v720 = vunpack.c.l.s4 1983009808
        %v721 = vunpack.c.0.s8 %v720
        %v722 = vlaneseq
        %v723 = vshrl.u32 %v722, 7
        %v724 = vsub.s32 %v721, %v723
        %v725 = vrot.slane %v717, %v724
        %v727 = vunpack.c.l.s4 1983009808
        %v728 = vunpack.c.0.s8 %v727
        %v729 = vlaneseq
        %v730 = vshrl.u32 %v729, 7
        %v731 = vsub.s32 %v728, %v730
        %v732 = vrot.slane %v718, %v731
        %v733 = vcombine.low %v677, %v693
        %v734 = vcombine.high %v677, %v693
        %v736 = vunpack.c.l.s4 1934713408
        %v737 = vunpack.c.0.s8 %v736
        %v738 = vlaneseq
        %v739 = vshrl.u32 %v738, 7
        %v740 = vsub.s32 %v737, %v739
        %v741 = vrot.slane %v733, %v740
        %v743 = vunpack.c.l.s4 1934713408
        %v744 = vunpack.c.0.s8 %v743
        %v745 = vlaneseq
        %v746 = vshrl.u32 %v745, 7
        %v747 = vsub.s32 %v744, %v746
        %v748 = vrot.slane %v734, %v747
        %v749 = vcombine.low %v684, %v700
        %v750 = vcombine.high %v684, %v700
        %v752 = vunpack.c.l.s4 1934713408
        %v753 = vunpack.c.0.s8 %v752
        %v754 = vlaneseq
        %v755 = vshrl.u32 %v754, 7
        %v756 = vsub.s32 %v753, %v755
        %v757 = vrot.slane %v749, %v756
        %v759 = vunpack.c.l.s4 1934713408
        %v760 = vunpack.c.0.s8 %v759
        %v761 = vlaneseq
        %v762 = vshrl.u32 %v761, 7
        %v763 = vsub.s32 %v760, %v762
        %v764 = vrot.slane %v750, %v763
        %v765 = vcombine.low %v709, %v725
        %v766 = vcombine.high %v709, %v725
        %v768 = vunpack.c.l.s4 1934713408
        %v769 = vunpack.c.0.s8 %v768
        %v770 = vlaneseq
        %v771 = vshrl.u32 %v770, 7
        %v772 = vsub.s32 %v769, %v771
        %v773 = vrot.slane %v765, %v772
        %v775 = vunpack.c.l.s4 1934713408
        %v776 = vunpack.c.0.s8 %v775
        %v777 = vlaneseq
        %v778 = vshrl.u32 %v777, 7
        %v779 = vsub.s32 %v776, %v778
        %v780 = vrot.slane %v766, %v779
        %v781 = vcombine.low %v716, %v732
        %v782 = vcombine.high %v716, %v732
        %v784 = vunpack.c.l.s4 1934713408
        %v785 = vunpack.c.0.s8 %v784
        %v786 = vlaneseq
        %v787 = vshrl.u32 %v786, 7
        %v788 = vsub.s32 %v785, %v787
        %v789 = vrot.slane %v781, %v788
        %v791 = vunpack.c.l.s4 1934713408
        %v792 = vunpack.c.0.s8 %v791
        %v793 = vlaneseq
        %v794 = vshrl.u32 %v793, 7
        %v795 = vsub.s32 %v792, %v794
        %v796 = vrot.slane %v782, %v795
        %v797 = vcombine.low %v741, %v773
        %v798 = vcombine.high %v741, %v773
        %v799 = vcombine.low %v748, %v780
        %v800 = vcombine.high %v748, %v780
        %v801 = vcombine.low %v757, %v789
        %v802 = vcombine.high %v757, %v789
        %v803 = vcombine.low %v764, %v796
        %v804 = vcombine.high %v764, %v796
        %v805 = vcombine.low %v200, %v206
        %v806 = vcombine.high %v200, %v206
        %v808 = vunpack.c.l.s4 1983009808
        %v809 = vunpack.c.0.s8 %v808
        %v810 = vlaneseq
        %v811 = vshrl.u32 %v810, 7
        %v812 = vsub.s32 %v809, %v811
        %v813 = vrot.slane %v805, %v812
        %v815 = vunpack.c.l.s4 1983009808
        %v816 = vunpack.c.0.s8 %v815
        %v817 = vlaneseq
        %v818 = vshrl.u32 %v817, 7
        %v819 = vsub.s32 %v816, %v818
        %v820 = vrot.slane %v806, %v819
        %v821 = vcombine.low %v203, %v209
        %v822 = vcombine.high %v203, %v209
        %v824 = vunpack.c.l.s4 1983009808
        %v825 = vunpack.c.0.s8 %v824
        %v826 = vlaneseq
        %v827 = vshrl.u32 %v826, 7
        %v828 = vsub.s32 %v825, %v827
        %v829 = vrot.slane %v821, %v828
        %v831 = vunpack.c.l.s4 1983009808
        %v832 = vunpack.c.0.s8 %v831
        %v833 = vlaneseq
        %v834 = vshrl.u32 %v833, 7
        %v835 = vsub.s32 %v832, %v834
        %v836 = vrot.slane %v822, %v835
        %v837 = vcombine.low %v212, %v218
        %v838 = vcombine.high %v212, %v218
        %v840 = vunpack.c.l.s4 1983009808
        %v841 = vunpack.c.0.s8 %v840
        %v842 = vlaneseq
        %v843 = vshrl.u32 %v842, 7
        %v844 = vsub.s32 %v841, %v843
        %v845 = vrot.slane %v837, %v844
        %v847 = vunpack.c.l.s4 1983009808
        %v848 = vunpack.c.0.s8 %v847
        %v849 = vlaneseq
        %v850 = vshrl.u32 %v849, 7
        %v851 = vsub.s32 %v848, %v850
        %v852 = vrot.slane %v838, %v851
        %v853 = vcombine.low %v215, %v221
        %v854 = vcombine.high %v215, %v221
        %v856 = vunpack.c.l.s4 1983009808
        %v857 = vunpack.c.0.s8 %v856
        %v858 = vlaneseq
        %v859 = vshrl.u32 %v858, 7
        %v860 = vsub.s32 %v857, %v859
        %v861 = vrot.slane %v853, %v860
        %v863 = vunpack.c.l.s4 1983009808
        %v864 = vunpack.c.0.s8 %v863
        %v865 = vlaneseq
        %v866 = vshrl.u32 %v865, 7
        %v867 = vsub.s32 %v864, %v866
        %v868 = vrot.slane %v854, %v867
        %v869 = vcombine.low %v813, %v829
        %v870 = vcombine.high %v813, %v829
        %v872 = vunpack.c.l.s4 1934713408
        %v873 = vunpack.c.0.s8 %v872
        %v874 = vlaneseq
        %v875 = vshrl.u32 %v874, 7
        %v876 = vsub.s32 %v873, %v875
        %v877 = vrot.slane %v869, %v876
        %v879 = vunpack.c.l.s4 1934713408
        %v880 = vunpack.c.0.s8 %v879
        %v881 = vlaneseq
        %v882 = vshrl.u32 %v881, 7
        %v883 = vsub.s32 %v880, %v882
        %v884 = vrot.slane %v870, %v883
        %v885 = vcombine.low %v820, %v836
        %v886 = vcombine.high %v820, %v836
        %v888 = vunpack.c.l.s4 1934713408
        %v889 = vunpack.c.0.s8 %v888
        %v890 = vlaneseq
        %v891 = vshrl.u32 %v890, 7
        %v892 = vsub.s32 %v889, %v891
        %v893 = vrot.slane %v885, %v892
        %v895 = vunpack.c.l.s4 1934713408
        %v896 = vunpack.c.0.s8 %v895
        %v897 = vlaneseq
        %v898 = vshrl.u32 %v897, 7
        %v899 = vsub.s32 %v896, %v898
        %v900 = vrot.slane %v886, %v899
        %v901 = vcombine.low %v845, %v861
        %v902 = vcombine.high %v845, %v861
        %v904 = vunpack.c.l.s4 1934713408
        %v905 = vunpack.c.0.s8 %v904
        %v906 = vlaneseq
        %v907 = vshrl.u32 %v906, 7
        %v908 = vsub.s32 %v905, %v907
        %v909 = vrot.slane %v901, %v908
        %v911 = vunpack.c.l.s4 1934713408
        %v912 = vunpack.c.0.s8 %v911
        %v913 = vlaneseq
        %v914 = vshrl.u32 %v913, 7
        %v915 = vsub.s32 %v912, %v914
        %v916 = vrot.slane %v902, %v915
        %v917 = vcombine.low %v852, %v868
        %v918 = vcombine.high %v852, %v868
        %v920 = vunpack.c.l.s4 1934713408
        %v921 = vunpack.c.0.s8 %v920
        %v922 = vlaneseq
        %v923 = vshrl.u32 %v922, 7
        %v924 = vsub.s32 %v921, %v923
        %v925 = vrot.slane %v917, %v924
        %v927 = vunpack.c.l.s4 1934713408
        %v928 = vunpack.c.0.s8 %v927
        %v929 = vlaneseq
        %v930 = vshrl.u32 %v929, 7
        %v931 = vsub.s32 %v928, %v930
        %v932 = vrot.slane %v918, %v931
        %v933 = vcombine.low %v877, %v909
        %v934 = vcombine.high %v877, %v909
        %v935 = vcombine.low %v884, %v916
        %v936 = vcombine.high %v884, %v916
        %v937 = vcombine.low %v893, %v925
        %v938 = vcombine.high %v893, %v925
        %v939 = vcombine.low %v900, %v932
        %v940 = vcombine.high %v900, %v932
        %v941 = vcombine.low %v224, %v230
        %v942 = vcombine.high %v224, %v230
        %v944 = vunpack.c.l.s4 1983009808
        %v945 = vunpack.c.0.s8 %v944
        %v946 = vlaneseq
        %v947 = vshrl.u32 %v946, 7
        %v948 = vsub.s32 %v945, %v947
        %v949 = vrot.slane %v941, %v948
        %v951 = vunpack.c.l.s4 1983009808
        %v952 = vunpack.c.0.s8 %v951
        %v953 = vlaneseq
        %v954 = vshrl.u32 %v953, 7
        %v955 = vsub.s32 %v952, %v954
        %v956 = vrot.slane %v942, %v955
        %v957 = vcombine.low %v227, %v233
        %v958 = vcombine.high %v227, %v233
        %v960 = vunpack.c.l.s4 1983009808
        %v961 = vunpack.c.0.s8 %v960
        %v962 = vlaneseq
        %v963 = vshrl.u32 %v962, 7
        %v964 = vsub.s32 %v961, %v963
        %v965 = vrot.slane %v957, %v964
        %v967 = vunpack.c.l.s4 1983009808
        %v968 = vunpack.c.0.s8 %v967
        %v969 = vlaneseq
        %v970 = vshrl.u32 %v969, 7
        %v971 = vsub.s32 %v968, %v970
        %v972 = vrot.slane %v958, %v971
        %v973 = vcombine.low %v236, %v242
        %v974 = vcombine.high %v236, %v242
        %v976 = vunpack.c.l.s4 1983009808
        %v977 = vunpack.c.0.s8 %v976
        %v978 = vlaneseq
        %v979 = vshrl.u32 %v978, 7
        %v980 = vsub.s32 %v977, %v979
        %v981 = vrot.slane %v973, %v980
        %v983 = vunpack.c.l.s4 1983009808
        %v984 = vunpack.c.0.s8 %v983
        %v985 = vlaneseq
        %v986 = vshrl.u32 %v985, 7
        %v987 = vsub.s32 %v984, %v986
        %v988 = vrot.slane %v974, %v987
        %v989 = vcombine.low %v239, %v245
        %v990 = vcombine.high %v239, %v245
        %v992 = vunpack.c.l.s4 1983009808
        %v993 = vunpack.c.0.s8 %v992
        %v994 = vlaneseq
        %v995 = vshrl.u32 %v994, 7
        %v996 = vsub.s32 %v993, %v995
        %v997 = vrot.slane %v989, %v996
        %v999 = vunpack.c.l.s4 1983009808
        %v1000 = vunpack.c.0.s8 %v999
        %v1001 = vlaneseq
        %v1002 = vshrl.u32 %v1001, 7
        %v1003 = vsub.s32 %v1000, %v1002
        %v1004 = vrot.slane %v990, %v1003
        %v1005 = vcombine.low %v949, %v965
        %v1006 = vcombine.high %v949, %v965
        %v1008 = vunpack.c.l.s4 1934713408
        %v1009 = vunpack.c.0.s8 %v1008
        %v1010 = vlaneseq
        %v1011 = vshrl.u32 %v1010, 7
        %v1012 = vsub.s32 %v1009, %v1011
        %v1013 = vrot.slane %v1005, %v1012
        %v1015 = vunpack.c.l.s4 1934713408
        %v1016 = vunpack.c.0.s8 %v1015
        %v1017 = vlaneseq
        %v1018 = vshrl.u32 %v1017, 7
        %v1019 = vsub.s32 %v1016, %v1018
        %v1020 = vrot.slane %v1006, %v1019
        %v1021 = vcombine.low %v956, %v972
        %v1022 = vcombine.high %v956, %v972
        %v1024 = vunpack.c.l.s4 1934713408
        %v1025 = vunpack.c.0.s8 %v1024
        %v1026 = vlaneseq
        %v1027 = vshrl.u32 %v1026, 7
        %v1028 = vsub.s32 %v1025, %v1027
        %v1029 = vrot.slane %v1021, %v1028
        %v1031 = vunpack.c.l.s4 1934713408
        %v1032 = vunpack.c.0.s8 %v1031
        %v1033 = vlaneseq
        %v1034 = vshrl.u32 %v1033, 7
        %v1035 = vsub.s32 %v1032, %v1034
        %v1036 = vrot.slane %v1022, %v1035
        %v1037 = vcombine.low %v981, %v997
        %v1038 = vcombine.high %v981, %v997
        %v1040 = vunpack.c.l.s4 1934713408
        %v1041 = vunpack.c.0.s8 %v1040
        %v1042 = vlaneseq
        %v1043 = vshrl.u32 %v1042, 7
        %v1044 = vsub.s32 %v1041, %v1043
        %v1045 = vrot.slane %v1037, %v1044
        %v1047 = vunpack.c.l.s4 1934713408
        %v1048 = vunpack.c.0.s8 %v1047
        %v1049 = vlaneseq
        %v1050 = vshrl.u32 %v1049, 7
        %v1051 = vsub.s32 %v1048, %v1050
        %v1052 = vrot.slane %v1038, %v1051
        %v1053 = vcombine.low %v988, %v1004
        %v1054 = vcombine.high %v988, %v1004
        %v1056 = vunpack.c.l.s4 1934713408
        %v1057 = vunpack.c.0.s8 %v1056
        %v1058 = vlaneseq
        %v1059 = vshrl.u32 %v1058, 7
        %v1060 = vsub.s32 %v1057, %v1059
        %v1061 = vrot.slane %v1053, %v1060
        %v1063 = vunpack.c.l.s4 1934713408
        %v1064 = vunpack.c.0.s8 %v1063
        %v1065 = vlaneseq
        %v1066 = vshrl.u32 %v1065, 7
        %v1067 = vsub.s32 %v1064, %v1066
        %v1068 = vrot.slane %v1054, %v1067
        %v1069 = vcombine.low %v1013, %v1045
        %v1070 = vcombine.high %v1013, %v1045
        %v1071 = vcombine.low %v1020, %v1052
        %v1072 = vcombine.high %v1020, %v1052
        %v1073 = vcombine.low %v1029, %v1061
        %v1074 = vcombine.high %v1029, %v1061
        %v1075 = vcombine.low %v1036, %v1068
        %v1076 = vcombine.high %v1036, %v1068
        %v1077 = vcombine.low %v248, %v254
        %v1078 = vcombine.high %v248, %v254
        %v1080 = vunpack.c.l.s4 1983009808
        %v1081 = vunpack.c.0.s8 %v1080
        %v1082 = vlaneseq
        %v1083 = vshrl.u32 %v1082, 7
        %v1084 = vsub.s32 %v1081, %v1083
        %v1085 = vrot.slane %v1077, %v1084
        %v1087 = vunpack.c.l.s4 1983009808
        %v1088 = vunpack.c.0.s8 %v1087
        %v1089 = vlaneseq
        %v1090 = vshrl.u32 %v1089, 7
        %v1091 = vsub.s32 %v1088, %v1090
        %v1092 = vrot.slane %v1078, %v1091
        %v1093 = vcombine.low %v251, %v257
        %v1094 = vcombine.high %v251, %v257
        %v1096 = vunpack.c.l.s4 1983009808
        %v1097 = vunpack.c.0.s8 %v1096
        %v1098 = vlaneseq
        %v1099 = vshrl.u32 %v1098, 7
        %v1100 = vsub.s32 %v1097, %v1099
        %v1101 = vrot.slane %v1093, %v1100
        %v1103 = vunpack.c.l.s4 1983009808
        %v1104 = vunpack.c.0.s8 %v1103
        %v1105 = vlaneseq
        %v1106 = vshrl.u32 %v1105, 7
        %v1107 = vsub.s32 %v1104, %v1106
        %v1108 = vrot.slane %v1094, %v1107
        %v1109 = vcombine.low %v260, %v266
        %v1110 = vcombine.high %v260, %v266
        %v1112 = vunpack.c.l.s4 1983009808
        %v1113 = vunpack.c.0.s8 %v1112
        %v1114 = vlaneseq
        %v1115 = vshrl.u32 %v1114, 7
        %v1116 = vsub.s32 %v1113, %v1115
        %v1117 = vrot.slane %v1109, %v1116
        %v1119 = vunpack.c.l.s4 1983009808
        %v1120 = vunpack.c.0.s8 %v1119
        %v1121 = vlaneseq
        %v1122 = vshrl.u32 %v1121, 7
        %v1123 = vsub.s32 %v1120, %v1122
        %v1124 = vrot.slane %v1110, %v1123
        %v1125 = vcombine.low %v263, %v269
        %v1126 = vcombine.high %v263, %v269
        %v1128 = vunpack.c.l.s4 1983009808
        %v1129 = vunpack.c.0.s8 %v1128
        %v1130 = vlaneseq
        %v1131 = vshrl.u32 %v1130, 7
        %v1132 = vsub.s32 %v1129, %v1131
        %v1133 = vrot.slane %v1125, %v1132
        %v1135 = vunpack.c.l.s4 1983009808
        %v1136 = vunpack.c.0.s8 %v1135
        %v1137 = vlaneseq
        %v1138 = vshrl.u32 %v1137, 7
        %v1139 = vsub.s32 %v1136, %v1138
        %v1140 = vrot.slane %v1126, %v1139
        %v1141 = vcombine.low %v1085, %v1101
        %v1142 = vcombine.high %v1085, %v1101
        %v1144 = vunpack.c.l.s4 1934713408
        %v1145 = vunpack.c.0.s8 %v1144
        %v1146 = vlaneseq
        %v1147 = vshrl.u32 %v1146, 7
        %v1148 = vsub.s32 %v1145, %v1147
        %v1149 = vrot.slane %v1141, %v1148
        %v1151 = vunpack.c.l.s4 1934713408
        %v1152 = vunpack.c.0.s8 %v1151
        %v1153 = vlaneseq
        %v1154 = vshrl.u32 %v1153, 7
        %v1155 = vsub.s32 %v1152, %v1154
        %v1156 = vrot.slane %v1142, %v1155
        %v1157 = vcombine.low %v1092, %v1108
        %v1158 = vcombine.high %v1092, %v1108
        %v1160 = vunpack.c.l.s4 1934713408
        %v1161 = vunpack.c.0.s8 %v1160
        %v1162 = vlaneseq
        %v1163 = vshrl.u32 %v1162, 7
        %v1164 = vsub.s32 %v1161, %v1163
        %v1165 = vrot.slane %v1157, %v1164
        %v1167 = vunpack.c.l.s4 1934713408
        %v1168 = vunpack.c.0.s8 %v1167
        %v1169 = vlaneseq
        %v1170 = vshrl.u32 %v1169, 7
        %v1171 = vsub.s32 %v1168, %v1170
        %v1172 = vrot.slane %v1158, %v1171
        %v1173 = vcombine.low %v1117, %v1133
        %v1174 = vcombine.high %v1117, %v1133
        %v1176 = vunpack.c.l.s4 1934713408
        %v1177 = vunpack.c.0.s8 %v1176
        %v1178 = vlaneseq
        %v1179 = vshrl.u32 %v1178, 7
        %v1180 = vsub.s32 %v1177, %v1179
        %v1181 = vrot.slane %v1173, %v1180
        %v1183 = vunpack.c.l.s4 1934713408
        %v1184 = vunpack.c.0.s8 %v1183
        %v1185 = vlaneseq
        %v1186 = vshrl.u32 %v1185, 7
        %v1187 = vsub.s32 %v1184, %v1186
        %v1188 = vrot.slane %v1174, %v1187
        %v1189 = vcombine.low %v1124, %v1140
        %v1190 = vcombine.high %v1124, %v1140
        %v1192 = vunpack.c.l.s4 1934713408
        %v1193 = vunpack.c.0.s8 %v1192
        %v1194 = vlaneseq
        %v1195 = vshrl.u32 %v1194, 7
        %v1196 = vsub.s32 %v1193, %v1195
        %v1197 = vrot.slane %v1189, %v1196
        %v1199 = vunpack.c.l.s4 1934713408
        %v1200 = vunpack.c.0.s8 %v1199
        %v1201 = vlaneseq
        %v1202 = vshrl.u32 %v1201, 7
        %v1203 = vsub.s32 %v1200, %v1202
        %v1204 = vrot.slane %v1190, %v1203
        %v1205 = vcombine.low %v1149, %v1181
        %v1206 = vcombine.high %v1149, %v1181
        %v1207 = vcombine.low %v1156, %v1188
        %v1208 = vcombine.high %v1156, %v1188
        %v1209 = vcombine.low %v1165, %v1197
        %v1210 = vcombine.high %v1165, %v1197
        %v1211 = vcombine.low %v1172, %v1204
        %v1212 = vcombine.high %v1172, %v1204
        %v1213 = vcombine.low %v272, %v278
        %v1214 = vcombine.high %v272, %v278
        %v1216 = vunpack.c.l.s4 1983009808
        %v1217 = vunpack.c.0.s8 %v1216
        %v1218 = vlaneseq
        %v1219 = vshrl.u32 %v1218, 7
        %v1220 = vsub.s32 %v1217, %v1219
        %v1221 = vrot.slane %v1213, %v1220
        %v1223 = vunpack.c.l.s4 1983009808
        %v1224 = vunpack.c.0.s8 %v1223
        %v1225 = vlaneseq
        %v1226 = vshrl.u32 %v1225, 7
        %v1227 = vsub.s32 %v1224, %v1226
        %v1228 = vrot.slane %v1214, %v1227
        %v1229 = vcombine.low %v275, %v281
        %v1230 = vcombine.high %v275, %v281
        %v1232 = vunpack.c.l.s4 1983009808
        %v1233 = vunpack.c.0.s8 %v1232
        %v1234 = vlaneseq
        %v1235 = vshrl.u32 %v1234, 7
        %v1236 = vsub.s32 %v1233, %v1235
        %v1237 = vrot.slane %v1229, %v1236
        %v1239 = vunpack.c.l.s4 1983009808
        %v1240 = vunpack.c.0.s8 %v1239
        %v1241 = vlaneseq
        %v1242 = vshrl.u32 %v1241, 7
        %v1243 = vsub.s32 %v1240, %v1242
        %v1244 = vrot.slane %v1230, %v1243
        %v1245 = vcombine.low %v284, %v290
        %v1246 = vcombine.high %v284, %v290
        %v1248 = vunpack.c.l.s4 1983009808
        %v1249 = vunpack.c.0.s8 %v1248
        %v1250 = vlaneseq
        %v1251 = vshrl.u32 %v1250, 7
        %v1252 = vsub.s32 %v1249, %v1251
        %v1253 = vrot.slane %v1245, %v1252
        %v1255 = vunpack.c.l.s4 1983009808
        %v1256 = vunpack.c.0.s8 %v1255
        %v1257 = vlaneseq
        %v1258 = vshrl.u32 %v1257, 7
        %v1259 = vsub.s32 %v1256, %v1258
        %v1260 = vrot.slane %v1246, %v1259
        %v1261 = vcombine.low %v287, %v293
        %v1262 = vcombine.high %v287, %v293
        %v1264 = vunpack.c.l.s4 1983009808
        %v1265 = vunpack.c.0.s8 %v1264
        %v1266 = vlaneseq
        %v1267 = vshrl.u32 %v1266, 7
        %v1268 = vsub.s32 %v1265, %v1267
        %v1269 = vrot.slane %v1261, %v1268
        %v1271 = vunpack.c.l.s4 1983009808
        %v1272 = vunpack.c.0.s8 %v1271
        %v1273 = vlaneseq
        %v1274 = vshrl.u32 %v1273, 7
        %v1275 = vsub.s32 %v1272, %v1274
        %v1276 = vrot.slane %v1262, %v1275
        %v1277 = vcombine.low %v1221, %v1237
        %v1278 = vcombine.high %v1221, %v1237
        %v1280 = vunpack.c.l.s4 1934713408
        %v1281 = vunpack.c.0.s8 %v1280
        %v1282 = vlaneseq
        %v1283 = vshrl.u32 %v1282, 7
        %v1284 = vsub.s32 %v1281, %v1283
        %v1285 = vrot.slane %v1277, %v1284
        %v1287 = vunpack.c.l.s4 1934713408
        %v1288 = vunpack.c.0.s8 %v1287
        %v1289 = vlaneseq
        %v1290 = vshrl.u32 %v1289, 7
        %v1291 = vsub.s32 %v1288, %v1290
        %v1292 = vrot.slane %v1278, %v1291
        %v1293 = vcombine.low %v1228, %v1244
        %v1294 = vcombine.high %v1228, %v1244
        %v1296 = vunpack.c.l.s4 1934713408
        %v1297 = vunpack.c.0.s8 %v1296
        %v1298 = vlaneseq
        %v1299 = vshrl.u32 %v1298, 7
        %v1300 = vsub.s32 %v1297, %v1299
        %v1301 = vrot.slane %v1293, %v1300
        %v1303 = vunpack.c.l.s4 1934713408
        %v1304 = vunpack.c.0.s8 %v1303
        %v1305 = vlaneseq
        %v1306 = vshrl.u32 %v1305, 7
        %v1307 = vsub.s32 %v1304, %v1306
        %v1308 = vrot.slane %v1294, %v1307
        %v1309 = vcombine.low %v1253, %v1269
        %v1310 = vcombine.high %v1253, %v1269
        %v1312 = vunpack.c.l.s4 1934713408
        %v1313 = vunpack.c.0.s8 %v1312
        %v1314 = vlaneseq
        %v1315 = vshrl.u32 %v1314, 7
        %v1316 = vsub.s32 %v1313, %v1315
        %v1317 = vrot.slane %v1309, %v1316
        %v1319 = vunpack.c.l.s4 1934713408
        %v1320 = vunpack.c.0.s8 %v1319
        %v1321 = vlaneseq
        %v1322 = vshrl.u32 %v1321, 7
        %v1323 = vsub.s32 %v1320, %v1322
        %v1324 = vrot.slane %v1310, %v1323
        %v1325 = vcombine.low %v1260, %v1276
        %v1326 = vcombine.high %v1260, %v1276
        %v1328 = vunpack.c.l.s4 1934713408
        %v1329 = vunpack.c.0.s8 %v1328
        %v1330 = vlaneseq
        %v1331 = vshrl.u32 %v1330, 7
        %v1332 = vsub.s32 %v1329, %v1331
        %v1333 = vrot.slane %v1325, %v1332
        %v1335 = vunpack.c.l.s4 1934713408
        %v1336 = vunpack.c.0.s8 %v1335
        %v1337 = vlaneseq
        %v1338 = vshrl.u32 %v1337, 7
        %v1339 = vsub.s32 %v1336, %v1338
        %v1340 = vrot.slane %v1326, %v1339
        %v1341 = vcombine.low %v1285, %v1317
        %v1342 = vcombine.high %v1285, %v1317
        %v1343 = vcombine.low %v1292, %v1324
        %v1344 = vcombine.high %v1292, %v1324
        %v1345 = vcombine.low %v1301, %v1333
        %v1346 = vcombine.high %v1301, %v1333
        %v1347 = vcombine.low %v1308, %v1340
        %v1348 = vcombine.high %v1308, %v1340
        %v1349 = vcombine.low %v296, %v302
        %v1350 = vcombine.high %v296, %v302
        %v1352 = vunpack.c.l.s4 1983009808
        %v1353 = vunpack.c.0.s8 %v1352
        %v1354 = vlaneseq
        %v1355 = vshrl.u32 %v1354, 7
        %v1356 = vsub.s32 %v1353, %v1355
        %v1357 = vrot.slane %v1349, %v1356
        %v1359 = vunpack.c.l.s4 1983009808
        %v1360 = vunpack.c.0.s8 %v1359
        %v1361 = vlaneseq
        %v1362 = vshrl.u32 %v1361, 7
        %v1363 = vsub.s32 %v1360, %v1362
        %v1364 = vrot.slane %v1350, %v1363
        %v1365 = vcombine.low %v299, %v305
        %v1366 = vcombine.high %v299, %v305
        %v1368 = vunpack.c.l.s4 1983009808
        %v1369 = vunpack.c.0.s8 %v1368
        %v1370 = vlaneseq
        %v1371 = vshrl.u32 %v1370, 7
        %v1372 = vsub.s32 %v1369, %v1371
        %v1373 = vrot.slane %v1365, %v1372
        %v1375 = vunpack.c.l.s4 1983009808
        %v1376 = vunpack.c.0.s8 %v1375
        %v1377 = vlaneseq
        %v1378 = vshrl.u32 %v1377, 7
        %v1379 = vsub.s32 %v1376, %v1378
        %v1380 = vrot.slane %v1366, %v1379
        %v1381 = vcombine.low %v308, %v314
        %v1382 = vcombine.high %v308, %v314
        %v1384 = vunpack.c.l.s4 1983009808
        %v1385 = vunpack.c.0.s8 %v1384
        %v1386 = vlaneseq
        %v1387 = vshrl.u32 %v1386, 7
        %v1388 = vsub.s32 %v1385, %v1387
        %v1389 = vrot.slane %v1381, %v1388
        %v1391 = vunpack.c.l.s4 1983009808
        %v1392 = vunpack.c.0.s8 %v1391
        %v1393 = vlaneseq
        %v1394 = vshrl.u32 %v1393, 7
        %v1395 = vsub.s32 %v1392, %v1394
        %v1396 = vrot.slane %v1382, %v1395
        %v1397 = vcombine.low %v311, %v317
        %v1398 = vcombine.high %v311, %v317
        %v1400 = vunpack.c.l.s4 1983009808
        %v1401 = vunpack.c.0.s8 %v1400
        %v1402 = vlaneseq
        %v1403 = vshrl.u32 %v1402, 7
        %v1404 = vsub.s32 %v1401, %v1403
        %v1405 = vrot.slane %v1397, %v1404
        %v1407 = vunpack.c.l.s4 1983009808
        %v1408 = vunpack.c.0.s8 %v1407
        %v1409 = vlaneseq
        %v1410 = vshrl.u32 %v1409, 7
        %v1411 = vsub.s32 %v1408, %v1410
        %v1412 = vrot.slane %v1398, %v1411
        %v1413 = vcombine.low %v1357, %v1373
        %v1414 = vcombine.high %v1357, %v1373
        %v1416 = vunpack.c.l.s4 1934713408
        %v1417 = vunpack.c.0.s8 %v1416
        %v1418 = vlaneseq
        %v1419 = vshrl.u32 %v1418, 7
        %v1420 = vsub.s32 %v1417, %v1419
        %v1421 = vrot.slane %v1413, %v1420
        %v1423 = vunpack.c.l.s4 1934713408
        %v1424 = vunpack.c.0.s8 %v1423
        %v1425 = vlaneseq
        %v1426 = vshrl.u32 %v1425, 7
        %v1427 = vsub.s32 %v1424, %v1426
        %v1428 = vrot.slane %v1414, %v1427
        %v1429 = vcombine.low %v1364, %v1380
        %v1430 = vcombine.high %v1364, %v1380
        %v1432 = vunpack.c.l.s4 1934713408
        %v1433 = vunpack.c.0.s8 %v1432
        %v1434 = vlaneseq
        %v1435 = vshrl.u32 %v1434, 7
        %v1436 = vsub.s32 %v1433, %v1435
        %v1437 = vrot.slane %v1429, %v1436
        %v1439 = vunpack.c.l.s4 1934713408
        %v1440 = vunpack.c.0.s8 %v1439
        %v1441 = vlaneseq
        %v1442 = vshrl.u32 %v1441, 7
        %v1443 = vsub.s32 %v1440, %v1442
        %v1444 = vrot.slane %v1430, %v1443
        %v1445 = vcombine.low %v1389, %v1405
        %v1446 = vcombine.high %v1389, %v1405
        %v1448 = vunpack.c.l.s4 1934713408
        %v1449 = vunpack.c.0.s8 %v1448
        %v1450 = vlaneseq
        %v1451 = vshrl.u32 %v1450, 7
        %v1452 = vsub.s32 %v1449, %v1451
        %v1453 = vrot.slane %v1445, %v1452
        %v1455 = vunpack.c.l.s4 1934713408
        %v1456 = vunpack.c.0.s8 %v1455
        %v1457 = vlaneseq
        %v1458 = vshrl.u32 %v1457, 7
        %v1459 = vsub.s32 %v1456, %v1458
        %v1460 = vrot.slane %v1446, %v1459
        %v1461 = vcombine.low %v1396, %v1412
        %v1462 = vcombine.high %v1396, %v1412
        %v1464 = vunpack.c.l.s4 1934713408
        %v1465 = vunpack.c.0.s8 %v1464
        %v1466 = vlaneseq
        %v1467 = vshrl.u32 %v1466, 7
        %v1468 = vsub.s32 %v1465, %v1467
        %v1469 = vrot.slane %v1461, %v1468
        %v1471 = vunpack.c.l.s4 1934713408
        %v1472 = vunpack.c.0.s8 %v1471
        %v1473 = vlaneseq
        %v1474 = vshrl.u32 %v1473, 7
        %v1475 = vsub.s32 %v1472, %v1474
        %v1476 = vrot.slane %v1462, %v1475
        %v1477 = vcombine.low %v1421, %v1453
        %v1478 = vcombine.high %v1421, %v1453
        %v1479 = vcombine.low %v1428, %v1460
        %v1480 = vcombine.high %v1428, %v1460
        %v1481 = vcombine.low %v1437, %v1469
        %v1482 = vcombine.high %v1437, %v1469
        %v1483 = vcombine.low %v1444, %v1476
        %v1484 = vcombine.high %v1444, %v1476
        %v1485 = vcombine.low %v320, %v326
        %v1486 = vcombine.high %v320, %v326
        %v1488 = vunpack.c.l.s4 1983009808
        %v1489 = vunpack.c.0.s8 %v1488
        %v1490 = vlaneseq
        %v1491 = vshrl.u32 %v1490, 7
        %v1492 = vsub.s32 %v1489, %v1491
        %v1493 = vrot.slane %v1485, %v1492
        %v1495 = vunpack.c.l.s4 1983009808
        %v1496 = vunpack.c.0.s8 %v1495
        %v1497 = vlaneseq
        %v1498 = vshrl.u32 %v1497, 7
        %v1499 = vsub.s32 %v1496, %v1498
        %v1500 = vrot.slane %v1486, %v1499
        %v1501 = vcombine.low %v323, %v329
        %v1502 = vcombine.high %v323, %v329
        %v1504 = vunpack.c.l.s4 1983009808
        %v1505 = vunpack.c.0.s8 %v1504
        %v1506 = vlaneseq
        %v1507 = vshrl.u32 %v1506, 7
        %v1508 = vsub.s32 %v1505, %v1507
        %v1509 = vrot.slane %v1501, %v1508
        %v1511 = vunpack.c.l.s4 1983009808
        %v1512 = vunpack.c.0.s8 %v1511
        %v1513 = vlaneseq
        %v1514 = vshrl.u32 %v1513, 7
        %v1515 = vsub.s32 %v1512, %v1514
        %v1516 = vrot.slane %v1502, %v1515
        %v1517 = vcombine.low %v332, %v338
        %v1518 = vcombine.high %v332, %v338
        %v1520 = vunpack.c.l.s4 1983009808
        %v1521 = vunpack.c.0.s8 %v1520
        %v1522 = vlaneseq
        %v1523 = vshrl.u32 %v1522, 7
        %v1524 = vsub.s32 %v1521, %v1523
        %v1525 = vrot.slane %v1517, %v1524
        %v1527 = vunpack.c.l.s4 1983009808
        %v1528 = vunpack.c.0.s8 %v1527
        %v1529 = vlaneseq
        %v1530 = vshrl.u32 %v1529, 7
        %v1531 = vsub.s32 %v1528, %v1530
        %v1532 = vrot.slane %v1518, %v1531
        %v1533 = vcombine.low %v335, %v341
        %v1534 = vcombine.high %v335, %v341
        %v1536 = vunpack.c.l.s4 1983009808
        %v1537 = vunpack.c.0.s8 %v1536
        %v1538 = vlaneseq
        %v1539 = vshrl.u32 %v1538, 7
        %v1540 = vsub.s32 %v1537, %v1539
        %v1541 = vrot.slane %v1533, %v1540
        %v1543 = vunpack.c.l.s4 1983009808
        %v1544 = vunpack.c.0.s8 %v1543
        %v1545 = vlaneseq
        %v1546 = vshrl.u32 %v1545, 7
        %v1547 = vsub.s32 %v1544, %v1546
        %v1548 = vrot.slane %v1534, %v1547
        %v1549 = vcombine.low %v1493, %v1509
        %v1550 = vcombine.high %v1493, %v1509
        %v1552 = vunpack.c.l.s4 1934713408
        %v1553 = vunpack.c.0.s8 %v1552
        %v1554 = vlaneseq
        %v1555 = vshrl.u32 %v1554, 7
        %v1556 = vsub.s32 %v1553, %v1555
        %v1557 = vrot.slane %v1549, %v1556
        %v1559 = vunpack.c.l.s4 1934713408
        %v1560 = vunpack.c.0.s8 %v1559
        %v1561 = vlaneseq
        %v1562 = vshrl.u32 %v1561, 7
        %v1563 = vsub.s32 %v1560, %v1562
        %v1564 = vrot.slane %v1550, %v1563
        %v1565 = vcombine.low %v1500, %v1516
        %v1566 = vcombine.high %v1500, %v1516
        %v1568 = vunpack.c.l.s4 1934713408
        %v1569 = vunpack.c.0.s8 %v1568
        %v1570 = vlaneseq
        %v1571 = vshrl.u32 %v1570, 7
        %v1572 = vsub.s32 %v1569, %v1571
        %v1573 = vrot.slane %v1565, %v1572
        %v1575 = vunpack.c.l.s4 1934713408
        %v1576 = vunpack.c.0.s8 %v1575
        %v1577 = vlaneseq
        %v1578 = vshrl.u32 %v1577, 7
        %v1579 = vsub.s32 %v1576, %v1578
        %v1580 = vrot.slane %v1566, %v1579
        %v1581 = vcombine.low %v1525, %v1541
        %v1582 = vcombine.high %v1525, %v1541
        %v1584 = vunpack.c.l.s4 1934713408
        %v1585 = vunpack.c.0.s8 %v1584
        %v1586 = vlaneseq
        %v1587 = vshrl.u32 %v1586, 7
        %v1588 = vsub.s32 %v1585, %v1587
        %v1589 = vrot.slane %v1581, %v1588
        %v1591 = vunpack.c.l.s4 1934713408
        %v1592 = vunpack.c.0.s8 %v1591
        %v1593 = vlaneseq
        %v1594 = vshrl.u32 %v1593, 7
        %v1595 = vsub.s32 %v1592, %v1594
        %v1596 = vrot.slane %v1582, %v1595
        %v1597 = vcombine.low %v1532, %v1548
        %v1598 = vcombine.high %v1532, %v1548
        %v1600 = vunpack.c.l.s4 1934713408
        %v1601 = vunpack.c.0.s8 %v1600
        %v1602 = vlaneseq
        %v1603 = vshrl.u32 %v1602, 7
        %v1604 = vsub.s32 %v1601, %v1603
        %v1605 = vrot.slane %v1597, %v1604
        %v1607 = vunpack.c.l.s4 1934713408
        %v1608 = vunpack.c.0.s8 %v1607
        %v1609 = vlaneseq
        %v1610 = vshrl.u32 %v1609, 7
        %v1611 = vsub.s32 %v1608, %v1610
        %v1612 = vrot.slane %v1598, %v1611
        %v1613 = vcombine.low %v1557, %v1589
        %v1614 = vcombine.high %v1557, %v1589
        %v1615 = vcombine.low %v1564, %v1596
        %v1616 = vcombine.high %v1564, %v1596
        %v1617 = vcombine.low %v1573, %v1605
        %v1618 = vcombine.high %v1573, %v1605
        %v1619 = vcombine.low %v1580, %v1612
        %v1620 = vcombine.high %v1580, %v1612
        %v1621 = vcombine.low %v152, %v348
        %v1622 = vcombine.high %v152, %v348
        %v1624 = vunpack.c.l.s4 1983009808
        %v1625 = vunpack.c.0.s8 %v1624
        %v1626 = vlaneseq
        %v1627 = vshrl.u32 %v1626, 7
        %v1628 = vsub.s32 %v1625, %v1627
        %v1629 = vrot.slane %v1621, %v1628
        %v1631 = vunpack.c.l.s4 1983009808
        %v1632 = vunpack.c.0.s8 %v1631
        %v1633 = vlaneseq
        %v1634 = vshrl.u32 %v1633, 7
        %v1635 = vsub.s32 %v1632, %v1634
        %v1636 = vrot.slane %v1622, %v1635
        %v1637 = vcombine.low %v345, %v351
        %v1638 = vcombine.high %v345, %v351
        %v1640 = vunpack.c.l.s4 1983009808
        %v1641 = vunpack.c.0.s8 %v1640
        %v1642 = vlaneseq
        %v1643 = vshrl.u32 %v1642, 7
        %v1644 = vsub.s32 %v1641, %v1643
        %v1645 = vrot.slane %v1637, %v1644
        %v1647 = vunpack.c.l.s4 1983009808
        %v1648 = vunpack.c.0.s8 %v1647
        %v1649 = vlaneseq
        %v1650 = vshrl.u32 %v1649, 7
        %v1651 = vsub.s32 %v1648, %v1650
        %v1652 = vrot.slane %v1638, %v1651
        %v1653 = vcombine.low %v354, %v360
        %v1654 = vcombine.high %v354, %v360
        %v1656 = vunpack.c.l.s4 1983009808
        %v1657 = vunpack.c.0.s8 %v1656
        %v1658 = vlaneseq
        %v1659 = vshrl.u32 %v1658, 7
        %v1660 = vsub.s32 %v1657, %v1659
        %v1661 = vrot.slane %v1653, %v1660
        %v1663 = vunpack.c.l.s4 1983009808
        %v1664 = vunpack.c.0.s8 %v1663
        %v1665 = vlaneseq
        %v1666 = vshrl.u32 %v1665, 7
        %v1667 = vsub.s32 %v1664, %v1666
        %v1668 = vrot.slane %v1654, %v1667
        %v1669 = vcombine.low %v357, %v363
        %v1670 = vcombine.high %v357, %v363
        %v1672 = vunpack.c.l.s4 1983009808
        %v1673 = vunpack.c.0.s8 %v1672
        %v1674 = vlaneseq
        %v1675 = vshrl.u32 %v1674, 7
        %v1676 = vsub.s32 %v1673, %v1675
        %v1677 = vrot.slane %v1669, %v1676
        %v1679 = vunpack.c.l.s4 1983009808
        %v1680 = vunpack.c.0.s8 %v1679
        %v1681 = vlaneseq
        %v1682 = vshrl.u32 %v1681, 7
        %v1683 = vsub.s32 %v1680, %v1682
        %v1684 = vrot.slane %v1670, %v1683
        %v1685 = vcombine.low %v1629, %v1645
        %v1686 = vcombine.high %v1629, %v1645
        %v1688 = vunpack.c.l.s4 1934713408
        %v1689 = vunpack.c.0.s8 %v1688
        %v1690 = vlaneseq
        %v1691 = vshrl.u32 %v1690, 7
        %v1692 = vsub.s32 %v1689, %v1691
        %v1693 = vrot.slane %v1685, %v1692
        %v1695 = vunpack.c.l.s4 1934713408
        %v1696 = vunpack.c.0.s8 %v1695
        %v1697 = vlaneseq
        %v1698 = vshrl.u32 %v1697, 7
        %v1699 = vsub.s32 %v1696, %v1698
        %v1700 = vrot.slane %v1686, %v1699
        %v1701 = vcombine.low %v1636, %v1652
        %v1702 = vcombine.high %v1636, %v1652
        %v1704 = vunpack.c.l.s4 1934713408
        %v1705 = vunpack.c.0.s8 %v1704
        %v1706 = vlaneseq
        %v1707 = vshrl.u32 %v1706, 7
        %v1708 = vsub.s32 %v1705, %v1707
        %v1709 = vrot.slane %v1701, %v1708
        %v1711 = vunpack.c.l.s4 1934713408
        %v1712 = vunpack.c.0.s8 %v1711
        %v1713 = vlaneseq
        %v1714 = vshrl.u32 %v1713, 7
        %v1715 = vsub.s32 %v1712, %v1714
        %v1716 = vrot.slane %v1702, %v1715
        %v1717 = vcombine.low %v1661, %v1677
        %v1718 = vcombine.high %v1661, %v1677
        %v1720 = vunpack.c.l.s4 1934713408
        %v1721 = vunpack.c.0.s8 %v1720
        %v1722 = vlaneseq
        %v1723 = vshrl.u32 %v1722, 7
        %v1724 = vsub.s32 %v1721, %v1723
        %v1725 = vrot.slane %v1717, %v1724
        %v1727 = vunpack.c.l.s4 1934713408
        %v1728 = vunpack.c.0.s8 %v1727
        %v1729 = vlaneseq
        %v1730 = vshrl.u32 %v1729, 7
        %v1731 = vsub.s32 %v1728, %v1730
        %v1732 = vrot.slane %v1718, %v1731
        %v1733 = vcombine.low %v1668, %v1684
        %v1734 = vcombine.high %v1668, %v1684
        %v1736 = vunpack.c.l.s4 1934713408
        %v1737 = vunpack.c.0.s8 %v1736
        %v1738 = vlaneseq
        %v1739 = vshrl.u32 %v1738, 7
        %v1740 = vsub.s32 %v1737, %v1739
        %v1741 = vrot.slane %v1733, %v1740
        %v1743 = vunpack.c.l.s4 1934713408
        %v1744 = vunpack.c.0.s8 %v1743
        %v1745 = vlaneseq
        %v1746 = vshrl.u32 %v1745, 7
        %v1747 = vsub.s32 %v1744, %v1746
        %v1748 = vrot.slane %v1734, %v1747
        %v1749 = vcombine.low %v1693, %v1725
        %v1750 = vcombine.high %v1693, %v1725
        %v1751 = vcombine.low %v1700, %v1732
        %v1752 = vcombine.high %v1700, %v1732
        %v1753 = vcombine.low %v1709, %v1741
        %v1754 = vcombine.high %v1709, %v1741
        %v1755 = vcombine.low %v1716, %v1748
        %v1756 = vcombine.high %v1716, %v1748
        %v1757 = vcombine.low %v366, %v372
        %v1758 = vcombine.high %v366, %v372
        %v1760 = vunpack.c.l.s4 1983009808
        %v1761 = vunpack.c.0.s8 %v1760
        %v1762 = vlaneseq
        %v1763 = vshrl.u32 %v1762, 7
        %v1764 = vsub.s32 %v1761, %v1763
        %v1765 = vrot.slane %v1757, %v1764
        %v1767 = vunpack.c.l.s4 1983009808
        %v1768 = vunpack.c.0.s8 %v1767
        %v1769 = vlaneseq
        %v1770 = vshrl.u32 %v1769, 7
        %v1771 = vsub.s32 %v1768, %v1770
        %v1772 = vrot.slane %v1758, %v1771
        %v1773 = vcombine.low %v369, %v375
        %v1774 = vcombine.high %v369, %v375
        %v1776 = vunpack.c.l.s4 1983009808
        %v1777 = vunpack.c.0.s8 %v1776
        %v1778 = vlaneseq
        %v1779 = vshrl.u32 %v1778, 7
        %v1780 = vsub.s32 %v1777, %v1779
        %v1781 = vrot.slane %v1773, %v1780
        %v1783 = vunpack.c.l.s4 1983009808
        %v1784 = vunpack.c.0.s8 %v1783
        %v1785 = vlaneseq
        %v1786 = vshrl.u32 %v1785, 7
        %v1787 = vsub.s32 %v1784, %v1786
        %v1788 = vrot.slane %v1774, %v1787
        %v1789 = vcombine.low %v378, %v384
        %v1790 = vcombine.high %v378, %v384
        %v1792 = vunpack.c.l.s4 1983009808
        %v1793 = vunpack.c.0.s8 %v1792
        %v1794 = vlaneseq
        %v1795 = vshrl.u32 %v1794, 7
        %v1796 = vsub.s32 %v1793, %v1795
        %v1797 = vrot.slane %v1789, %v1796
        %v1799 = vunpack.c.l.s4 1983009808
        %v1800 = vunpack.c.0.s8 %v1799
        %v1801 = vlaneseq
        %v1802 = vshrl.u32 %v1801, 7
        %v1803 = vsub.s32 %v1800, %v1802
        %v1804 = vrot.slane %v1790, %v1803
        %v1805 = vcombine.low %v381, %v387
        %v1806 = vcombine.high %v381, %v387
        %v1808 = vunpack.c.l.s4 1983009808
        %v1809 = vunpack.c.0.s8 %v1808
        %v1810 = vlaneseq
        %v1811 = vshrl.u32 %v1810, 7
        %v1812 = vsub.s32 %v1809, %v1811
        %v1813 = vrot.slane %v1805, %v1812
        %v1815 = vunpack.c.l.s4 1983009808
        %v1816 = vunpack.c.0.s8 %v1815
        %v1817 = vlaneseq
        %v1818 = vshrl.u32 %v1817, 7
        %v1819 = vsub.s32 %v1816, %v1818
        %v1820 = vrot.slane %v1806, %v1819
        %v1821 = vcombine.low %v1765, %v1781
        %v1822 = vcombine.high %v1765, %v1781
        %v1824 = vunpack.c.l.s4 1934713408
        %v1825 = vunpack.c.0.s8 %v1824
        %v1826 = vlaneseq
        %v1827 = vshrl.u32 %v1826, 7
        %v1828 = vsub.s32 %v1825, %v1827
        %v1829 = vrot.slane %v1821, %v1828
        %v1831 = vunpack.c.l.s4 1934713408
        %v1832 = vunpack.c.0.s8 %v1831
        %v1833 = vlaneseq
        %v1834 = vshrl.u32 %v1833, 7
        %v1835 = vsub.s32 %v1832, %v1834
        %v1836 = vrot.slane %v1822, %v1835
        %v1837 = vcombine.low %v1772, %v1788
        %v1838 = vcombine.high %v1772, %v1788
        %v1840 = vunpack.c.l.s4 1934713408
        %v1841 = vunpack.c.0.s8 %v1840
        %v1842 = vlaneseq
        %v1843 = vshrl.u32 %v1842, 7
        %v1844 = vsub.s32 %v1841, %v1843
        %v1845 = vrot.slane %v1837, %v1844
        %v1847 = vunpack.c.l.s4 1934713408
        %v1848 = vunpack.c.0.s8 %v1847
        %v1849 = vlaneseq
        %v1850 = vshrl.u32 %v1849, 7
        %v1851 = vsub.s32 %v1848, %v1850
        %v1852 = vrot.slane %v1838, %v1851
        %v1853 = vcombine.low %v1797, %v1813
        %v1854 = vcombine.high %v1797, %v1813
        %v1856 = vunpack.c.l.s4 1934713408
        %v1857 = vunpack.c.0.s8 %v1856
        %v1858 = vlaneseq
        %v1859 = vshrl.u32 %v1858, 7
        %v1860 = vsub.s32 %v1857, %v1859
        %v1861 = vrot.slane %v1853, %v1860
        %v1863 = vunpack.c.l.s4 1934713408
        %v1864 = vunpack.c.0.s8 %v1863
        %v1865 = vlaneseq
        %v1866 = vshrl.u32 %v1865, 7
        %v1867 = vsub.s32 %v1864, %v1866
        %v1868 = vrot.slane %v1854, %v1867
        %v1869 = vcombine.low %v1804, %v1820
        %v1870 = vcombine.high %v1804, %v1820
        %v1872 = vunpack.c.l.s4 1934713408
        %v1873 = vunpack.c.0.s8 %v1872
        %v1874 = vlaneseq
        %v1875 = vshrl.u32 %v1874, 7
        %v1876 = vsub.s32 %v1873, %v1875
        %v1877 = vrot.slane %v1869, %v1876
        %v1879 = vunpack.c.l.s4 1934713408
        %v1880 = vunpack.c.0.s8 %v1879
        %v1881 = vlaneseq
        %v1882 = vshrl.u32 %v1881, 7
        %v1883 = vsub.s32 %v1880, %v1882
        %v1884 = vrot.slane %v1870, %v1883
        %v1885 = vcombine.low %v1829, %v1861
        %v1886 = vcombine.high %v1829, %v1861
        %v1887 = vcombine.low %v1836, %v1868
        %v1888 = vcombine.high %v1836, %v1868
        %v1889 = vcombine.low %v1845, %v1877
        %v1890 = vcombine.high %v1845, %v1877
        %v1891 = vcombine.low %v1852, %v1884
        %v1892 = vcombine.high %v1852, %v1884
        %v1893 = vcombine.low %v390, %v396
        %v1894 = vcombine.high %v390, %v396
        %v1896 = vunpack.c.l.s4 1983009808
        %v1897 = vunpack.c.0.s8 %v1896
        %v1898 = vlaneseq
        %v1899 = vshrl.u32 %v1898, 7
        %v1900 = vsub.s32 %v1897, %v1899
        %v1901 = vrot.slane %v1893, %v1900
        %v1903 = vunpack.c.l.s4 1983009808
        %v1904 = vunpack.c.0.s8 %v1903
        %v1905 = vlaneseq
        %v1906 = vshrl.u32 %v1905, 7
        %v1907 = vsub.s32 %v1904, %v1906
        %v1908 = vrot.slane %v1894, %v1907
        %v1909 = vcombine.low %v393, %v399
        %v1910 = vcombine.high %v393, %v399
        %v1912 = vunpack.c.l.s4 1983009808
        %v1913 = vunpack.c.0.s8 %v1912
        %v1914 = vlaneseq
        %v1915 = vshrl.u32 %v1914, 7
        %v1916 = vsub.s32 %v1913, %v1915
        %v1917 = vrot.slane %v1909, %v1916
        %v1919 = vunpack.c.l.s4 1983009808
        %v1920 = vunpack.c.0.s8 %v1919
        %v1921 = vlaneseq
        %v1922 = vshrl.u32 %v1921, 7
        %v1923 = vsub.s32 %v1920, %v1922
        %v1924 = vrot.slane %v1910, %v1923
        %v1925 = vcombine.low %v402, %v408
        %v1926 = vcombine.high %v402, %v408
        %v1928 = vunpack.c.l.s4 1983009808
        %v1929 = vunpack.c.0.s8 %v1928
        %v1930 = vlaneseq
        %v1931 = vshrl.u32 %v1930, 7
        %v1932 = vsub.s32 %v1929, %v1931
        %v1933 = vrot.slane %v1925, %v1932
        %v1935 = vunpack.c.l.s4 1983009808
        %v1936 = vunpack.c.0.s8 %v1935
        %v1937 = vlaneseq
        %v1938 = vshrl.u32 %v1937, 7
        %v1939 = vsub.s32 %v1936, %v1938
        %v1940 = vrot.slane %v1926, %v1939
        %v1941 = vcombine.low %v405, %v411
        %v1942 = vcombine.high %v405, %v411
        %v1944 = vunpack.c.l.s4 1983009808
        %v1945 = vunpack.c.0.s8 %v1944
        %v1946 = vlaneseq
        %v1947 = vshrl.u32 %v1946, 7
        %v1948 = vsub.s32 %v1945, %v1947
        %v1949 = vrot.slane %v1941, %v1948
        %v1951 = vunpack.c.l.s4 1983009808
        %v1952 = vunpack.c.0.s8 %v1951
        %v1953 = vlaneseq
        %v1954 = vshrl.u32 %v1953, 7
        %v1955 = vsub.s32 %v1952, %v1954
        %v1956 = vrot.slane %v1942, %v1955
        %v1957 = vcombine.low %v1901, %v1917
        %v1958 = vcombine.high %v1901, %v1917
        %v1960 = vunpack.c.l.s4 1934713408
        %v1961 = vunpack.c.0.s8 %v1960
        %v1962 = vlaneseq
        %v1963 = vshrl.u32 %v1962, 7
        %v1964 = vsub.s32 %v1961, %v1963
        %v1965 = vrot.slane %v1957, %v1964
        %v1967 = vunpack.c.l.s4 1934713408
        %v1968 = vunpack.c.0.s8 %v1967
        %v1969 = vlaneseq
        %v1970 = vshrl.u32 %v1969, 7
        %v1971 = vsub.s32 %v1968, %v1970
        %v1972 = vrot.slane %v1958, %v1971
        %v1973 = vcombine.low %v1908, %v1924
        %v1974 = vcombine.high %v1908, %v1924
        %v1976 = vunpack.c.l.s4 1934713408
        %v1977 = vunpack.c.0.s8 %v1976
        %v1978 = vlaneseq
        %v1979 = vshrl.u32 %v1978, 7
        %v1980 = vsub.s32 %v1977, %v1979
        %v1981 = vrot.slane %v1973, %v1980
        %v1983 = vunpack.c.l.s4 1934713408
        %v1984 = vunpack.c.0.s8 %v1983
        %v1985 = vlaneseq
        %v1986 = vshrl.u32 %v1985, 7
        %v1987 = vsub.s32 %v1984, %v1986
        %v1988 = vrot.slane %v1974, %v1987
        %v1989 = vcombine.low %v1933, %v1949
        %v1990 = vcombine.high %v1933, %v1949
        %v1992 = vunpack.c.l.s4 1934713408
        %v1993 = vunpack.c.0.s8 %v1992
        %v1994 = vlaneseq
        %v1995 = vshrl.u32 %v1994, 7
        %v1996 = vsub.s32 %v1993, %v1995
        %v1997 = vrot.slane %v1989, %v1996
        %v1999 = vunpack.c.l.s4 1934713408
        %v2000 = vunpack.c.0.s8 %v1999
        %v2001 = vlaneseq
        %v2002 = vshrl.u32 %v2001, 7
        %v2003 = vsub.s32 %v2000, %v2002
        %v2004 = vrot.slane %v1990, %v2003
        %v2005 = vcombine.low %v1940, %v1956
        %v2006 = vcombine.high %v1940, %v1956
        %v2008 = vunpack.c.l.s4 1934713408
        %v2009 = vunpack.c.0.s8 %v2008
        %v2010 = vlaneseq
        %v2011 = vshrl.u32 %v2010, 7
        %v2012 = vsub.s32 %v2009, %v2011
        %v2013 = vrot.slane %v2005, %v2012
        %v2015 = vunpack.c.l.s4 1934713408
        %v2016 = vunpack.c.0.s8 %v2015
        %v2017 = vlaneseq
        %v2018 = vshrl.u32 %v2017, 7
        %v2019 = vsub.s32 %v2016, %v2018
        %v2020 = vrot.slane %v2006, %v2019
        %v2021 = vcombine.low %v1965, %v1997
        %v2022 = vcombine.high %v1965, %v1997
        %v2023 = vcombine.low %v1972, %v2004
        %v2024 = vcombine.high %v1972, %v2004
        %v2025 = vcombine.low %v1981, %v2013
        %v2026 = vcombine.high %v1981, %v2013
        %v2027 = vcombine.low %v1988, %v2020
        %v2028 = vcombine.high %v1988, %v2020
        %v2029 = vcombine.low %v414, %v420
        %v2030 = vcombine.high %v414, %v420
        %v2032 = vunpack.c.l.s4 1983009808
        %v2033 = vunpack.c.0.s8 %v2032
        %v2034 = vlaneseq
        %v2035 = vshrl.u32 %v2034, 7
        %v2036 = vsub.s32 %v2033, %v2035
        %v2037 = vrot.slane %v2029, %v2036
        %v2039 = vunpack.c.l.s4 1983009808
        %v2040 = vunpack.c.0.s8 %v2039
        %v2041 = vlaneseq
        %v2042 = vshrl.u32 %v2041, 7
        %v2043 = vsub.s32 %v2040, %v2042
        %v2044 = vrot.slane %v2030, %v2043
        %v2045 = vcombine.low %v417, %v423
        %v2046 = vcombine.high %v417, %v423
        %v2048 = vunpack.c.l.s4 1983009808
        %v2049 = vunpack.c.0.s8 %v2048
        %v2050 = vlaneseq
        %v2051 = vshrl.u32 %v2050, 7
        %v2052 = vsub.s32 %v2049, %v2051
        %v2053 = vrot.slane %v2045, %v2052
        %v2055 = vunpack.c.l.s4 1983009808
        %v2056 = vunpack.c.0.s8 %v2055
        %v2057 = vlaneseq
        %v2058 = vshrl.u32 %v2057, 7
        %v2059 = vsub.s32 %v2056, %v2058
        %v2060 = vrot.slane %v2046, %v2059
        %v2061 = vcombine.low %v426, %v432
        %v2062 = vcombine.high %v426, %v432
        %v2064 = vunpack.c.l.s4 1983009808
        %v2065 = vunpack.c.0.s8 %v2064
        %v2066 = vlaneseq
        %v2067 = vshrl.u32 %v2066, 7
        %v2068 = vsub.s32 %v2065, %v2067
        %v2069 = vrot.slane %v2061, %v2068
        %v2071 = vunpack.c.l.s4 1983009808
        %v2072 = vunpack.c.0.s8 %v2071
        %v2073 = vlaneseq
        %v2074 = vshrl.u32 %v2073, 7
        %v2075 = vsub.s32 %v2072, %v2074
        %v2076 = vrot.slane %v2062, %v2075
        %v2077 = vcombine.low %v429, %v435
        %v2078 = vcombine.high %v429, %v435
        %v2080 = vunpack.c.l.s4 1983009808
        %v2081 = vunpack.c.0.s8 %v2080
        %v2082 = vlaneseq
        %v2083 = vshrl.u32 %v2082, 7
        %v2084 = vsub.s32 %v2081, %v2083
        %v2085 = vrot.slane %v2077, %v2084
        %v2087 = vunpack.c.l.s4 1983009808
        %v2088 = vunpack.c.0.s8 %v2087
        %v2089 = vlaneseq
        %v2090 = vshrl.u32 %v2089, 7
        %v2091 = vsub.s32 %v2088, %v2090
        %v2092 = vrot.slane %v2078, %v2091
        %v2093 = vcombine.low %v2037, %v2053
        %v2094 = vcombine.high %v2037, %v2053
        %v2096 = vunpack.c.l.s4 1934713408
        %v2097 = vunpack.c.0.s8 %v2096
        %v2098 = vlaneseq
        %v2099 = vshrl.u32 %v2098, 7
        %v2100 = vsub.s32 %v2097, %v2099
        %v2101 = vrot.slane %v2093, %v2100
        %v2103 = vunpack.c.l.s4 1934713408
        %v2104 = vunpack.c.0.s8 %v2103
        %v2105 = vlaneseq
        %v2106 = vshrl.u32 %v2105, 7
        %v2107 = vsub.s32 %v2104, %v2106
        %v2108 = vrot.slane %v2094, %v2107
        %v2109 = vcombine.low %v2044, %v2060
        %v2110 = vcombine.high %v2044, %v2060
        %v2112 = vunpack.c.l.s4 1934713408
        %v2113 = vunpack.c.0.s8 %v2112
        %v2114 = vlaneseq
        %v2115 = vshrl.u32 %v2114, 7
        %v2116 = vsub.s32 %v2113, %v2115
        %v2117 = vrot.slane %v2109, %v2116
        %v2119 = vunpack.c.l.s4 1934713408
        %v2120 = vunpack.c.0.s8 %v2119
        %v2121 = vlaneseq
        %v2122 = vshrl.u32 %v2121, 7
        %v2123 = vsub.s32 %v2120, %v2122
        %v2124 = vrot.slane %v2110, %v2123
        %v2125 = vcombine.low %v2069, %v2085
        %v2126 = vcombine.high %v2069, %v2085
        %v2128 = vunpack.c.l.s4 1934713408
        %v2129 = vunpack.c.0.s8 %v2128
        %v2130 = vlaneseq
        %v2131 = vshrl.u32 %v2130, 7
        %v2132 = vsub.s32 %v2129, %v2131
        %v2133 = vrot.slane %v2125, %v2132
        %v2135 = vunpack.c.l.s4 1934713408
        %v2136 = vunpack.c.0.s8 %v2135
        %v2137 = vlaneseq
        %v2138 = vshrl.u32 %v2137, 7
        %v2139 = vsub.s32 %v2136, %v2138
        %v2140 = vrot.slane %v2126, %v2139
        %v2141 = vcombine.low %v2076, %v2092
        %v2142 = vcombine.high %v2076, %v2092
        %v2144 = vunpack.c.l.s4 1934713408
        %v2145 = vunpack.c.0.s8 %v2144
        %v2146 = vlaneseq
        %v2147 = vshrl.u32 %v2146, 7
        %v2148 = vsub.s32 %v2145, %v2147
        %v2149 = vrot.slane %v2141, %v2148
        %v2151 = vunpack.c.l.s4 1934713408
        %v2152 = vunpack.c.0.s8 %v2151
        %v2153 = vlaneseq
        %v2154 = vshrl.u32 %v2153, 7
        %v2155 = vsub.s32 %v2152, %v2154
        %v2156 = vrot.slane %v2142, %v2155
        %v2157 = vcombine.low %v2101, %v2133
        %v2158 = vcombine.high %v2101, %v2133
        %v2159 = vcombine.low %v2108, %v2140
        %v2160 = vcombine.high %v2108, %v2140
        %v2161 = vcombine.low %v2117, %v2149
        %v2162 = vcombine.high %v2117, %v2149
        %v2163 = vcombine.low %v2124, %v2156
        %v2164 = vcombine.high %v2124, %v2156
        %v2165 = vcombine.low %v438, %v444
        %v2166 = vcombine.high %v438, %v444
        %v2168 = vunpack.c.l.s4 1983009808
        %v2169 = vunpack.c.0.s8 %v2168
        %v2170 = vlaneseq
        %v2171 = vshrl.u32 %v2170, 7
        %v2172 = vsub.s32 %v2169, %v2171
        %v2173 = vrot.slane %v2165, %v2172
        %v2175 = vunpack.c.l.s4 1983009808
        %v2176 = vunpack.c.0.s8 %v2175
        %v2177 = vlaneseq
        %v2178 = vshrl.u32 %v2177, 7
        %v2179 = vsub.s32 %v2176, %v2178
        %v2180 = vrot.slane %v2166, %v2179
        %v2181 = vcombine.low %v441, %v447
        %v2182 = vcombine.high %v441, %v447
        %v2184 = vunpack.c.l.s4 1983009808
        %v2185 = vunpack.c.0.s8 %v2184
        %v2186 = vlaneseq
        %v2187 = vshrl.u32 %v2186, 7
        %v2188 = vsub.s32 %v2185, %v2187
        %v2189 = vrot.slane %v2181, %v2188
        %v2191 = vunpack.c.l.s4 1983009808
        %v2192 = vunpack.c.0.s8 %v2191
        %v2193 = vlaneseq
        %v2194 = vshrl.u32 %v2193, 7
        %v2195 = vsub.s32 %v2192, %v2194
        %v2196 = vrot.slane %v2182, %v2195
        %v2197 = vcombine.low %v450, %v456
        %v2198 = vcombine.high %v450, %v456
        %v2200 = vunpack.c.l.s4 1983009808
        %v2201 = vunpack.c.0.s8 %v2200
        %v2202 = vlaneseq
        %v2203 = vshrl.u32 %v2202, 7
        %v2204 = vsub.s32 %v2201, %v2203
        %v2205 = vrot.slane %v2197, %v2204
        %v2207 = vunpack.c.l.s4 1983009808
        %v2208 = vunpack.c.0.s8 %v2207
        %v2209 = vlaneseq
        %v2210 = vshrl.u32 %v2209, 7
        %v2211 = vsub.s32 %v2208, %v2210
        %v2212 = vrot.slane %v2198, %v2211
        %v2213 = vcombine.low %v453, %v459
        %v2214 = vcombine.high %v453, %v459
        %v2216 = vunpack.c.l.s4 1983009808
        %v2217 = vunpack.c.0.s8 %v2216
        %v2218 = vlaneseq
        %v2219 = vshrl.u32 %v2218, 7
        %v2220 = vsub.s32 %v2217, %v2219
        %v2221 = vrot.slane %v2213, %v2220
        %v2223 = vunpack.c.l.s4 1983009808
        %v2224 = vunpack.c.0.s8 %v2223
        %v2225 = vlaneseq
        %v2226 = vshrl.u32 %v2225, 7
        %v2227 = vsub.s32 %v2224, %v2226
        %v2228 = vrot.slane %v2214, %v2227
        %v2229 = vcombine.low %v2173, %v2189
        %v2230 = vcombine.high %v2173, %v2189
        %v2232 = vunpack.c.l.s4 1934713408
        %v2233 = vunpack.c.0.s8 %v2232
        %v2234 = vlaneseq
        %v2235 = vshrl.u32 %v2234, 7
        %v2236 = vsub.s32 %v2233, %v2235
        %v2237 = vrot.slane %v2229, %v2236
        %v2239 = vunpack.c.l.s4 1934713408
        %v2240 = vunpack.c.0.s8 %v2239
        %v2241 = vlaneseq
        %v2242 = vshrl.u32 %v2241, 7
        %v2243 = vsub.s32 %v2240, %v2242
        %v2244 = vrot.slane %v2230, %v2243
        %v2245 = vcombine.low %v2180, %v2196
        %v2246 = vcombine.high %v2180, %v2196
        %v2248 = vunpack.c.l.s4 1934713408
        %v2249 = vunpack.c.0.s8 %v2248
        %v2250 = vlaneseq
        %v2251 = vshrl.u32 %v2250, 7
        %v2252 = vsub.s32 %v2249, %v2251
        %v2253 = vrot.slane %v2245, %v2252
        %v2255 = vunpack.c.l.s4 1934713408
        %v2256 = vunpack.c.0.s8 %v2255
        %v2257 = vlaneseq
        %v2258 = vshrl.u32 %v2257, 7
        %v2259 = vsub.s32 %v2256, %v2258
        %v2260 = vrot.slane %v2246, %v2259
        %v2261 = vcombine.low %v2205, %v2221
        %v2262 = vcombine.high %v2205, %v2221
        %v2264 = vunpack.c.l.s4 1934713408
        %v2265 = vunpack.c.0.s8 %v2264
        %v2266 = vlaneseq
        %v2267 = vshrl.u32 %v2266, 7
        %v2268 = vsub.s32 %v2265, %v2267
        %v2269 = vrot.slane %v2261, %v2268
        %v2271 = vunpack.c.l.s4 1934713408
        %v2272 = vunpack.c.0.s8 %v2271
        %v2273 = vlaneseq
        %v2274 = vshrl.u32 %v2273, 7
        %v2275 = vsub.s32 %v2272, %v2274
        %v2276 = vrot.slane %v2262, %v2275
        %v2277 = vcombine.low %v2212, %v2228
        %v2278 = vcombine.high %v2212, %v2228
        %v2280 = vunpack.c.l.s4 1934713408
        %v2281 = vunpack.c.0.s8 %v2280
        %v2282 = vlaneseq
        %v2283 = vshrl.u32 %v2282, 7
        %v2284 = vsub.s32 %v2281, %v2283
        %v2285 = vrot.slane %v2277, %v2284
        %v2287 = vunpack.c.l.s4 1934713408
        %v2288 = vunpack.c.0.s8 %v2287
        %v2289 = vlaneseq
        %v2290 = vshrl.u32 %v2289, 7
        %v2291 = vsub.s32 %v2288, %v2290
        %v2292 = vrot.slane %v2278, %v2291
        %v2293 = vcombine.low %v2237, %v2269
        %v2294 = vcombine.high %v2237, %v2269
        %v2295 = vcombine.low %v2244, %v2276
        %v2296 = vcombine.high %v2244, %v2276
        %v2297 = vcombine.low %v2253, %v2285
        %v2298 = vcombine.high %v2253, %v2285
        %v2299 = vcombine.low %v2260, %v2292
        %v2300 = vcombine.high %v2260, %v2292
        %v2301 = vcombine.low %v462, %v468
        %v2302 = vcombine.high %v462, %v468
        %v2304 = vunpack.c.l.s4 1983009808
        %v2305 = vunpack.c.0.s8 %v2304
        %v2306 = vlaneseq
        %v2307 = vshrl.u32 %v2306, 7
        %v2308 = vsub.s32 %v2305, %v2307
        %v2309 = vrot.slane %v2301, %v2308
        %v2311 = vunpack.c.l.s4 1983009808
        %v2312 = vunpack.c.0.s8 %v2311
        %v2313 = vlaneseq
        %v2314 = vshrl.u32 %v2313, 7
        %v2315 = vsub.s32 %v2312, %v2314
        %v2316 = vrot.slane %v2302, %v2315
        %v2317 = vcombine.low %v465, %v471
        %v2318 = vcombine.high %v465, %v471
        %v2320 = vunpack.c.l.s4 1983009808
        %v2321 = vunpack.c.0.s8 %v2320
        %v2322 = vlaneseq
        %v2323 = vshrl.u32 %v2322, 7
        %v2324 = vsub.s32 %v2321, %v2323
        %v2325 = vrot.slane %v2317, %v2324
        %v2327 = vunpack.c.l.s4 1983009808
        %v2328 = vunpack.c.0.s8 %v2327
        %v2329 = vlaneseq
        %v2330 = vshrl.u32 %v2329, 7
        %v2331 = vsub.s32 %v2328, %v2330
        %v2332 = vrot.slane %v2318, %v2331
        %v2333 = vcombine.low %v474, %v480
        %v2334 = vcombine.high %v474, %v480
        %v2336 = vunpack.c.l.s4 1983009808
        %v2337 = vunpack.c.0.s8 %v2336
        %v2338 = vlaneseq
        %v2339 = vshrl.u32 %v2338, 7
        %v2340 = vsub.s32 %v2337, %v2339
        %v2341 = vrot.slane %v2333, %v2340
        %v2343 = vunpack.c.l.s4 1983009808
        %v2344 = vunpack.c.0.s8 %v2343
        %v2345 = vlaneseq
        %v2346 = vshrl.u32 %v2345, 7
        %v2347 = vsub.s32 %v2344, %v2346
        %v2348 = vrot.slane %v2334, %v2347
        %v2349 = vcombine.low %v477, %v483
        %v2350 = vcombine.high %v477, %v483
        %v2352 = vunpack.c.l.s4 1983009808
        %v2353 = vunpack.c.0.s8 %v2352
        %v2354 = vlaneseq
        %v2355 = vshrl.u32 %v2354, 7
        %v2356 = vsub.s32 %v2353, %v2355
        %v2357 = vrot.slane %v2349, %v2356
        %v2359 = vunpack.c.l.s4 1983009808
        %v2360 = vunpack.c.0.s8 %v2359
        %v2361 = vlaneseq
        %v2362 = vshrl.u32 %v2361, 7
        %v2363 = vsub.s32 %v2360, %v2362
        %v2364 = vrot.slane %v2350, %v2363
        %v2365 = vcombine.low %v2309, %v2325
        %v2366 = vcombine.high %v2309, %v2325
        %v2368 = vunpack.c.l.s4 1934713408
        %v2369 = vunpack.c.0.s8 %v2368
        %v2370 = vlaneseq
        %v2371 = vshrl.u32 %v2370, 7
        %v2372 = vsub.s32 %v2369, %v2371
        %v2373 = vrot.slane %v2365, %v2372
        %v2375 = vunpack.c.l.s4 1934713408
        %v2376 = vunpack.c.0.s8 %v2375
        %v2377 = vlaneseq
        %v2378 = vshrl.u32 %v2377, 7
        %v2379 = vsub.s32 %v2376, %v2378
        %v2380 = vrot.slane %v2366, %v2379
        %v2381 = vcombine.low %v2316, %v2332
        %v2382 = vcombine.high %v2316, %v2332
        %v2384 = vunpack.c.l.s4 1934713408
        %v2385 = vunpack.c.0.s8 %v2384
        %v2386 = vlaneseq
        %v2387 = vshrl.u32 %v2386, 7
        %v2388 = vsub.s32 %v2385, %v2387
        %v2389 = vrot.slane %v2381, %v2388
        %v2391 = vunpack.c.l.s4 1934713408
        %v2392 = vunpack.c.0.s8 %v2391
        %v2393 = vlaneseq
        %v2394 = vshrl.u32 %v2393, 7
        %v2395 = vsub.s32 %v2392, %v2394
        %v2396 = vrot.slane %v2382, %v2395
        %v2397 = vcombine.low %v2341, %v2357
        %v2398 = vcombine.high %v2341, %v2357
        %v2400 = vunpack.c.l.s4 1934713408
        %v2401 = vunpack.c.0.s8 %v2400
        %v2402 = vlaneseq
        %v2403 = vshrl.u32 %v2402, 7
        %v2404 = vsub.s32 %v2401, %v2403
        %v2405 = vrot.slane %v2397, %v2404
        %v2407 = vunpack.c.l.s4 1934713408
        %v2408 = vunpack.c.0.s8 %v2407
        %v2409 = vlaneseq
        %v2410 = vshrl.u32 %v2409, 7
        %v2411 = vsub.s32 %v2408, %v2410
        %v2412 = vrot.slane %v2398, %v2411
        %v2413 = vcombine.low %v2348, %v2364
        %v2414 = vcombine.high %v2348, %v2364
        %v2416 = vunpack.c.l.s4 1934713408
        %v2417 = vunpack.c.0.s8 %v2416
        %v2418 = vlaneseq
        %v2419 = vshrl.u32 %v2418, 7
        %v2420 = vsub.s32 %v2417, %v2419
        %v2421 = vrot.slane %v2413, %v2420
        %v2423 = vunpack.c.l.s4 1934713408
        %v2424 = vunpack.c.0.s8 %v2423
        %v2425 = vlaneseq
        %v2426 = vshrl.u32 %v2425, 7
        %v2427 = vsub.s32 %v2424, %v2426
        %v2428 = vrot.slane %v2414, %v2427
        %v2429 = vcombine.low %v2373, %v2405
        %v2430 = vcombine.high %v2373, %v2405
        %v2431 = vcombine.low %v2380, %v2412
        %v2432 = vcombine.high %v2380, %v2412
        %v2433 = vcombine.low %v2389, %v2421
        %v2434 = vcombine.high %v2389, %v2421
        %v2435 = vcombine.low %v2396, %v2428
        %v2436 = vcombine.high %v2396, %v2428
        %v2437 = vcombine.low %v486, %v492
        %v2438 = vcombine.high %v486, %v492
        %v2440 = vunpack.c.l.s4 1983009808
        %v2441 = vunpack.c.0.s8 %v2440
        %v2442 = vlaneseq
        %v2443 = vshrl.u32 %v2442, 7
        %v2444 = vsub.s32 %v2441, %v2443
        %v2445 = vrot.slane %v2437, %v2444
        %v2447 = vunpack.c.l.s4 1983009808
        %v2448 = vunpack.c.0.s8 %v2447
        %v2449 = vlaneseq
        %v2450 = vshrl.u32 %v2449, 7
        %v2451 = vsub.s32 %v2448, %v2450
        %v2452 = vrot.slane %v2438, %v2451
        %v2453 = vcombine.low %v489, %v495
        %v2454 = vcombine.high %v489, %v495
        %v2456 = vunpack.c.l.s4 1983009808
        %v2457 = vunpack.c.0.s8 %v2456
        %v2458 = vlaneseq
        %v2459 = vshrl.u32 %v2458, 7
        %v2460 = vsub.s32 %v2457, %v2459
        %v2461 = vrot.slane %v2453, %v2460
        %v2463 = vunpack.c.l.s4 1983009808
        %v2464 = vunpack.c.0.s8 %v2463
        %v2465 = vlaneseq
        %v2466 = vshrl.u32 %v2465, 7
        %v2467 = vsub.s32 %v2464, %v2466
        %v2468 = vrot.slane %v2454, %v2467
        %v2469 = vcombine.low %v498, %v504
        %v2470 = vcombine.high %v498, %v504
        %v2472 = vunpack.c.l.s4 1983009808
        %v2473 = vunpack.c.0.s8 %v2472
        %v2474 = vlaneseq
        %v2475 = vshrl.u32 %v2474, 7
        %v2476 = vsub.s32 %v2473, %v2475
        %v2477 = vrot.slane %v2469, %v2476
        %v2479 = vunpack.c.l.s4 1983009808
        %v2480 = vunpack.c.0.s8 %v2479
        %v2481 = vlaneseq
        %v2482 = vshrl.u32 %v2481, 7
        %v2483 = vsub.s32 %v2480, %v2482
        %v2484 = vrot.slane %v2470, %v2483
        %v2485 = vcombine.low %v501, %v507
        %v2486 = vcombine.high %v501, %v507
        %v2488 = vunpack.c.l.s4 1983009808
        %v2489 = vunpack.c.0.s8 %v2488
        %v2490 = vlaneseq
        %v2491 = vshrl.u32 %v2490, 7
        %v2492 = vsub.s32 %v2489, %v2491
        %v2493 = vrot.slane %v2485, %v2492
        %v2495 = vunpack.c.l.s4 1983009808
        %v2496 = vunpack.c.0.s8 %v2495
        %v2497 = vlaneseq
        %v2498 = vshrl.u32 %v2497, 7
        %v2499 = vsub.s32 %v2496, %v2498
        %v2500 = vrot.slane %v2486, %v2499
        %v2501 = vcombine.low %v2445, %v2461
        %v2502 = vcombine.high %v2445, %v2461
        %v2504 = vunpack.c.l.s4 1934713408
        %v2505 = vunpack.c.0.s8 %v2504
        %v2506 = vlaneseq
        %v2507 = vshrl.u32 %v2506, 7
        %v2508 = vsub.s32 %v2505, %v2507
        %v2509 = vrot.slane %v2501, %v2508
        %v2511 = vunpack.c.l.s4 1934713408
        %v2512 = vunpack.c.0.s8 %v2511
        %v2513 = vlaneseq
        %v2514 = vshrl.u32 %v2513, 7
        %v2515 = vsub.s32 %v2512, %v2514
        %v2516 = vrot.slane %v2502, %v2515
        %v2517 = vcombine.low %v2452, %v2468
        %v2518 = vcombine.high %v2452, %v2468
        %v2520 = vunpack.c.l.s4 1934713408
        %v2521 = vunpack.c.0.s8 %v2520
        %v2522 = vlaneseq
        %v2523 = vshrl.u32 %v2522, 7
        %v2524 = vsub.s32 %v2521, %v2523
        %v2525 = vrot.slane %v2517, %v2524
        %v2527 = vunpack.c.l.s4 1934713408
        %v2528 = vunpack.c.0.s8 %v2527
        %v2529 = vlaneseq
        %v2530 = vshrl.u32 %v2529, 7
        %v2531 = vsub.s32 %v2528, %v2530
        %v2532 = vrot.slane %v2518, %v2531
        %v2533 = vcombine.low %v2477, %v2493
        %v2534 = vcombine.high %v2477, %v2493
        %v2536 = vunpack.c.l.s4 1934713408
        %v2537 = vunpack.c.0.s8 %v2536
        %v2538 = vlaneseq
        %v2539 = vshrl.u32 %v2538, 7
        %v2540 = vsub.s32 %v2537, %v2539
        %v2541 = vrot.slane %v2533, %v2540
        %v2543 = vunpack.c.l.s4 1934713408
        %v2544 = vunpack.c.0.s8 %v2543
        %v2545 = vlaneseq
        %v2546 = vshrl.u32 %v2545, 7
        %v2547 = vsub.s32 %v2544, %v2546
        %v2548 = vrot.slane %v2534, %v2547
        %v2549 = vcombine.low %v2484, %v2500
        %v2550 = vcombine.high %v2484, %v2500
        %v2552 = vunpack.c.l.s4 1934713408
        %v2553 = vunpack.c.0.s8 %v2552
        %v2554 = vlaneseq
        %v2555 = vshrl.u32 %v2554, 7
        %v2556 = vsub.s32 %v2553, %v2555
        %v2557 = vrot.slane %v2549, %v2556
        %v2559 = vunpack.c.l.s4 1934713408
        %v2560 = vunpack.c.0.s8 %v2559
        %v2561 = vlaneseq
        %v2562 = vshrl.u32 %v2561, 7
        %v2563 = vsub.s32 %v2560, %v2562
        %v2564 = vrot.slane %v2550, %v2563
        %v2565 = vcombine.low %v2509, %v2541
        %v2566 = vcombine.high %v2509, %v2541
        %v2567 = vcombine.low %v2516, %v2548
        %v2568 = vcombine.high %v2516, %v2548
        %v2569 = vcombine.low %v2525, %v2557
        %v2570 = vcombine.high %v2525, %v2557
        %v2571 = vcombine.low %v2532, %v2564
        %v2572 = vcombine.high %v2532, %v2564
        %v2573 = vcombine.low %v510, %v516
        %v2574 = vcombine.high %v510, %v516
        %v2576 = vunpack.c.l.s4 1983009808
        %v2577 = vunpack.c.0.s8 %v2576
        %v2578 = vlaneseq
        %v2579 = vshrl.u32 %v2578, 7
        %v2580 = vsub.s32 %v2577, %v2579
        %v2581 = vrot.slane %v2573, %v2580
        %v2583 = vunpack.c.l.s4 1983009808
        %v2584 = vunpack.c.0.s8 %v2583
        %v2585 = vlaneseq
        %v2586 = vshrl.u32 %v2585, 7
        %v2587 = vsub.s32 %v2584, %v2586
        %v2588 = vrot.slane %v2574, %v2587
        %v2589 = vcombine.low %v513, %v519
        %v2590 = vcombine.high %v513, %v519
        %v2592 = vunpack.c.l.s4 1983009808
        %v2593 = vunpack.c.0.s8 %v2592
        %v2594 = vlaneseq
        %v2595 = vshrl.u32 %v2594, 7
        %v2596 = vsub.s32 %v2593, %v2595
        %v2597 = vrot.slane %v2589, %v2596
        %v2599 = vunpack.c.l.s4 1983009808
        %v2600 = vunpack.c.0.s8 %v2599
        %v2601 = vlaneseq
        %v2602 = vshrl.u32 %v2601, 7
        %v2603 = vsub.s32 %v2600, %v2602
        %v2604 = vrot.slane %v2590, %v2603
        %v2605 = vcombine.low %v522, %v528
        %v2606 = vcombine.high %v522, %v528
        %v2608 = vunpack.c.l.s4 1983009808
        %v2609 = vunpack.c.0.s8 %v2608
        %v2610 = vlaneseq
        %v2611 = vshrl.u32 %v2610, 7
        %v2612 = vsub.s32 %v2609, %v2611
        %v2613 = vrot.slane %v2605, %v2612
        %v2615 = vunpack.c.l.s4 1983009808
        %v2616 = vunpack.c.0.s8 %v2615
        %v2617 = vlaneseq
        %v2618 = vshrl.u32 %v2617, 7
        %v2619 = vsub.s32 %v2616, %v2618
        %v2620 = vrot.slane %v2606, %v2619
        %v2621 = vcombine.low %v525, %v531
        %v2622 = vcombine.high %v525, %v531
        %v2624 = vunpack.c.l.s4 1983009808
        %v2625 = vunpack.c.0.s8 %v2624
        %v2626 = vlaneseq
        %v2627 = vshrl.u32 %v2626, 7
        %v2628 = vsub.s32 %v2625, %v2627
        %v2629 = vrot.slane %v2621, %v2628
        %v2631 = vunpack.c.l.s4 1983009808
        %v2632 = vunpack.c.0.s8 %v2631
        %v2633 = vlaneseq
        %v2634 = vshrl.u32 %v2633, 7
        %v2635 = vsub.s32 %v2632, %v2634
        %v2636 = vrot.slane %v2622, %v2635
        %v2637 = vcombine.low %v2581, %v2597
        %v2638 = vcombine.high %v2581, %v2597
        %v2640 = vunpack.c.l.s4 1934713408
        %v2641 = vunpack.c.0.s8 %v2640
        %v2642 = vlaneseq
        %v2643 = vshrl.u32 %v2642, 7
        %v2644 = vsub.s32 %v2641, %v2643
        %v2645 = vrot.slane %v2637, %v2644
        %v2647 = vunpack.c.l.s4 1934713408
        %v2648 = vunpack.c.0.s8 %v2647
        %v2649 = vlaneseq
        %v2650 = vshrl.u32 %v2649, 7
        %v2651 = vsub.s32 %v2648, %v2650
        %v2652 = vrot.slane %v2638, %v2651
        %v2653 = vcombine.low %v2588, %v2604
        %v2654 = vcombine.high %v2588, %v2604
        %v2656 = vunpack.c.l.s4 1934713408
        %v2657 = vunpack.c.0.s8 %v2656
        %v2658 = vlaneseq
        %v2659 = vshrl.u32 %v2658, 7
        %v2660 = vsub.s32 %v2657, %v2659
        %v2661 = vrot.slane %v2653, %v2660
        %v2663 = vunpack.c.l.s4 1934713408
        %v2664 = vunpack.c.0.s8 %v2663
        %v2665 = vlaneseq
        %v2666 = vshrl.u32 %v2665, 7
        %v2667 = vsub.s32 %v2664, %v2666
        %v2668 = vrot.slane %v2654, %v2667
        %v2669 = vcombine.low %v2613, %v2629
        %v2670 = vcombine.high %v2613, %v2629
        %v2672 = vunpack.c.l.s4 1934713408
        %v2673 = vunpack.c.0.s8 %v2672
        %v2674 = vlaneseq
        %v2675 = vshrl.u32 %v2674, 7
        %v2676 = vsub.s32 %v2673, %v2675
        %v2677 = vrot.slane %v2669, %v2676
        %v2679 = vunpack.c.l.s4 1934713408
        %v2680 = vunpack.c.0.s8 %v2679
        %v2681 = vlaneseq
        %v2682 = vshrl.u32 %v2681, 7
        %v2683 = vsub.s32 %v2680, %v2682
        %v2684 = vrot.slane %v2670, %v2683
        %v2685 = vcombine.low %v2620, %v2636
        %v2686 = vcombine.high %v2620, %v2636
        %v2688 = vunpack.c.l.s4 1934713408
        %v2689 = vunpack.c.0.s8 %v2688
        %v2690 = vlaneseq
        %v2691 = vshrl.u32 %v2690, 7
        %v2692 = vsub.s32 %v2689, %v2691
        %v2693 = vrot.slane %v2685, %v2692
        %v2695 = vunpack.c.l.s4 1934713408
        %v2696 = vunpack.c.0.s8 %v2695
        %v2697 = vlaneseq
        %v2698 = vshrl.u32 %v2697, 7
        %v2699 = vsub.s32 %v2696, %v2698
        %v2700 = vrot.slane %v2686, %v2699
        %v2701 = vcombine.low %v2645, %v2677
        %v2702 = vcombine.high %v2645, %v2677
        %v2703 = vcombine.low %v2652, %v2684
        %v2704 = vcombine.high %v2652, %v2684
        %v2705 = vcombine.low %v2661, %v2693
        %v2706 = vcombine.high %v2661, %v2693
        %v2707 = vcombine.low %v2668, %v2700
        %v2708 = vcombine.high %v2668, %v2700
        %2837 = vset.pattern.permute.xlu0 0
        %2838 = vperm.xlu0 %2837, %v661
        %v2839 = vpop.permute.xlu0 %2838
        %2840 = vset.pattern.permute.xlu0 0
        %2841 = vperm.xlu0 %2840, %v797
        %v2842 = vpop.permute.xlu0 %2841
        %2843 = vset.pattern.permute.xlu0 0
        %2844 = vperm.xlu0 %2843, %v933
        %v2845 = vpop.permute.xlu0 %2844
        %2846 = vset.pattern.permute.xlu0 0
        %2847 = vperm.xlu0 %2846, %v1069
        %v2848 = vpop.permute.xlu0 %2847
        %2849 = vset.pattern.permute.xlu0 0
        %2850 = vperm.xlu0 %2849, %v1205
        %v2851 = vpop.permute.xlu0 %2850
        %2852 = vset.pattern.permute.xlu0 0
        %2853 = vperm.xlu0 %2852, %v1341
        %v2854 = vpop.permute.xlu0 %2853
        %2855 = vset.pattern.permute.xlu0 0
        %2856 = vperm.xlu0 %2855, %v1477
        %v2857 = vpop.permute.xlu0 %2856
        %2858 = vset.pattern.permute.xlu0 0
        %2859 = vperm.xlu0 %2858, %v1613
        %v2860 = vpop.permute.xlu0 %2859
        %2861 = vset.pattern.permute.xlu0 0
        %2862 = vperm.xlu0 %2861, %v1749
        %v2863 = vpop.permute.xlu0 %2862
        %2864 = vset.pattern.permute.xlu0 0
        %2865 = vperm.xlu0 %2864, %v1885
        %v2866 = vpop.permute.xlu0 %2865
        %2867 = vset.pattern.permute.xlu0 0
        %2868 = vperm.xlu0 %2867, %v2021
        %v2869 = vpop.permute.xlu0 %2868
        %2870 = vset.pattern.permute.xlu0 0
        %2871 = vperm.xlu0 %2870, %v2157
        %v2872 = vpop.permute.xlu0 %2871
        %2873 = vset.pattern.permute.xlu0 0
        %2874 = vperm.xlu0 %2873, %v2293
        %v2875 = vpop.permute.xlu0 %2874
        %2876 = vset.pattern.permute.xlu0 0
        %2877 = vperm.xlu0 %2876, %v2429
        %v2878 = vpop.permute.xlu0 %2877
        %2879 = vset.pattern.permute.xlu0 0
        %2880 = vperm.xlu0 %2879, %v2565
        %v2881 = vpop.permute.xlu0 %2880
        %2882 = vset.pattern.permute.xlu0 0
        %2883 = vperm.xlu0 %2882, %v2701
        %v2884 = vpop.permute.xlu0 %2883
        %2885 = vset.pattern.permute.xlu0 0
        %2886 = vperm.xlu0 %2885, %v662
        %v2887 = vpop.permute.xlu0 %2886
        %2888 = vset.pattern.permute.xlu0 0
        %2889 = vperm.xlu0 %2888, %v798
        %v2890 = vpop.permute.xlu0 %2889
        %2891 = vset.pattern.permute.xlu0 0
        %2892 = vperm.xlu0 %2891, %v934
        %v2893 = vpop.permute.xlu0 %2892
        %2894 = vset.pattern.permute.xlu0 0
        %2895 = vperm.xlu0 %2894, %v1070
        %v2896 = vpop.permute.xlu0 %2895
        %2897 = vset.pattern.permute.xlu0 0
        %2898 = vperm.xlu0 %2897, %v1206
        %v2899 = vpop.permute.xlu0 %2898
        %2900 = vset.pattern.permute.xlu0 0
        %2901 = vperm.xlu0 %2900, %v1342
        %v2902 = vpop.permute.xlu0 %2901
        %2903 = vset.pattern.permute.xlu0 0
        %2904 = vperm.xlu0 %2903, %v1478
        %v2905 = vpop.permute.xlu0 %2904
        %2906 = vset.pattern.permute.xlu0 0
        %2907 = vperm.xlu0 %2906, %v1614
        %v2908 = vpop.permute.xlu0 %2907
        %2909 = vset.pattern.permute.xlu0 0
        %2910 = vperm.xlu0 %2909, %v1750
        %v2911 = vpop.permute.xlu0 %2910
        %2912 = vset.pattern.permute.xlu0 0
        %2913 = vperm.xlu0 %2912, %v1886
        %v2914 = vpop.permute.xlu0 %2913
        %2915 = vset.pattern.permute.xlu0 0
        %2916 = vperm.xlu0 %2915, %v2022
        %v2917 = vpop.permute.xlu0 %2916
        %2918 = vset.pattern.permute.xlu0 0
        %2919 = vperm.xlu0 %2918, %v2158
        %v2920 = vpop.permute.xlu0 %2919
        %2921 = vset.pattern.permute.xlu0 0
        %2922 = vperm.xlu0 %2921, %v2294
        %v2923 = vpop.permute.xlu0 %2922
        %2924 = vset.pattern.permute.xlu0 0
        %2925 = vperm.xlu0 %2924, %v2430
        %v2926 = vpop.permute.xlu0 %2925
        %2927 = vset.pattern.permute.xlu0 0
        %2928 = vperm.xlu0 %2927, %v2566
        %v2929 = vpop.permute.xlu0 %2928
        %2930 = vset.pattern.permute.xlu0 0
        %2931 = vperm.xlu0 %2930, %v2702
        %v2932 = vpop.permute.xlu0 %2931
        %2933 = vset.pattern.permute.xlu0 0
        %2934 = vperm.xlu0 %2933, %v663
        %v2935 = vpop.permute.xlu0 %2934
        %2936 = vset.pattern.permute.xlu0 0
        %2937 = vperm.xlu0 %2936, %v799
        %v2938 = vpop.permute.xlu0 %2937
        %2939 = vset.pattern.permute.xlu0 0
        %2940 = vperm.xlu0 %2939, %v935
        %v2941 = vpop.permute.xlu0 %2940
        %2942 = vset.pattern.permute.xlu0 0
        %2943 = vperm.xlu0 %2942, %v1071
        %v2944 = vpop.permute.xlu0 %2943
        %2945 = vset.pattern.permute.xlu0 0
        %2946 = vperm.xlu0 %2945, %v1207
        %v2947 = vpop.permute.xlu0 %2946
        %2948 = vset.pattern.permute.xlu0 0
        %2949 = vperm.xlu0 %2948, %v1343
        %v2950 = vpop.permute.xlu0 %2949
        %2951 = vset.pattern.permute.xlu0 0
        %2952 = vperm.xlu0 %2951, %v1479
        %v2953 = vpop.permute.xlu0 %2952
        %2954 = vset.pattern.permute.xlu0 0
        %2955 = vperm.xlu0 %2954, %v1615
        %v2956 = vpop.permute.xlu0 %2955
        %2957 = vset.pattern.permute.xlu0 0
        %2958 = vperm.xlu0 %2957, %v1751
        %v2959 = vpop.permute.xlu0 %2958
        %2960 = vset.pattern.permute.xlu0 0
        %2961 = vperm.xlu0 %2960, %v1887
        %v2962 = vpop.permute.xlu0 %2961
        %2963 = vset.pattern.permute.xlu0 0
        %2964 = vperm.xlu0 %2963, %v2023
        %v2965 = vpop.permute.xlu0 %2964
        %2966 = vset.pattern.permute.xlu0 0
        %2967 = vperm.xlu0 %2966, %v2159
        %v2968 = vpop.permute.xlu0 %2967
        %2969 = vset.pattern.permute.xlu0 0
        %2970 = vperm.xlu0 %2969, %v2295
        %v2971 = vpop.permute.xlu0 %2970
        %2972 = vset.pattern.permute.xlu0 0
        %2973 = vperm.xlu0 %2972, %v2431
        %v2974 = vpop.permute.xlu0 %2973
        %2975 = vset.pattern.permute.xlu0 0
        %2976 = vperm.xlu0 %2975, %v2567
        %v2977 = vpop.permute.xlu0 %2976
        %2978 = vset.pattern.permute.xlu0 0
        %2979 = vperm.xlu0 %2978, %v2703
        %v2980 = vpop.permute.xlu0 %2979
        %2981 = vset.pattern.permute.xlu0 0
        %2982 = vperm.xlu0 %2981, %v664
        %v2983 = vpop.permute.xlu0 %2982
        %2984 = vset.pattern.permute.xlu0 0
        %2985 = vperm.xlu0 %2984, %v800
        %v2986 = vpop.permute.xlu0 %2985
        %2987 = vset.pattern.permute.xlu0 0
        %2988 = vperm.xlu0 %2987, %v936
        %v2989 = vpop.permute.xlu0 %2988
        %2990 = vset.pattern.permute.xlu0 0
        %2991 = vperm.xlu0 %2990, %v1072
        %v2992 = vpop.permute.xlu0 %2991
        %2993 = vset.pattern.permute.xlu0 0
        %2994 = vperm.xlu0 %2993, %v1208
        %v2995 = vpop.permute.xlu0 %2994
        %2996 = vset.pattern.permute.xlu0 0
        %2997 = vperm.xlu0 %2996, %v1344
        %v2998 = vpop.permute.xlu0 %2997
        %2999 = vset.pattern.permute.xlu0 0
        %3000 = vperm.xlu0 %2999, %v1480
        %v3001 = vpop.permute.xlu0 %3000
        %3002 = vset.pattern.permute.xlu0 0
        %3003 = vperm.xlu0 %3002, %v1616
        %v3004 = vpop.permute.xlu0 %3003
        %3005 = vset.pattern.permute.xlu0 0
        %3006 = vperm.xlu0 %3005, %v1752
        %v3007 = vpop.permute.xlu0 %3006
        %3008 = vset.pattern.permute.xlu0 0
        %3009 = vperm.xlu0 %3008, %v1888
        %v3010 = vpop.permute.xlu0 %3009
        %3011 = vset.pattern.permute.xlu0 0
        %3012 = vperm.xlu0 %3011, %v2024
        %v3013 = vpop.permute.xlu0 %3012
        %3014 = vset.pattern.permute.xlu0 0
        %3015 = vperm.xlu0 %3014, %v2160
        %v3016 = vpop.permute.xlu0 %3015
        %3017 = vset.pattern.permute.xlu0 0
        %3018 = vperm.xlu0 %3017, %v2296
        %v3019 = vpop.permute.xlu0 %3018
        %3020 = vset.pattern.permute.xlu0 0
        %3021 = vperm.xlu0 %3020, %v2432
        %v3022 = vpop.permute.xlu0 %3021
        %3023 = vset.pattern.permute.xlu0 0
        %3024 = vperm.xlu0 %3023, %v2568
        %v3025 = vpop.permute.xlu0 %3024
        %3026 = vset.pattern.permute.xlu0 0
        %3027 = vperm.xlu0 %3026, %v2704
        %v3028 = vpop.permute.xlu0 %3027
        %3029 = vset.pattern.permute.xlu0 0
        %3030 = vperm.xlu0 %3029, %v665
        %v3031 = vpop.permute.xlu0 %3030
        %3032 = vset.pattern.permute.xlu0 0
        %3033 = vperm.xlu0 %3032, %v801
        %v3034 = vpop.permute.xlu0 %3033
        %3035 = vset.pattern.permute.xlu0 0
        %3036 = vperm.xlu0 %3035, %v937
        %v3037 = vpop.permute.xlu0 %3036
        %3038 = vset.pattern.permute.xlu0 0
        %3039 = vperm.xlu0 %3038, %v1073
        %v3040 = vpop.permute.xlu0 %3039
        %3041 = vset.pattern.permute.xlu0 0
        %3042 = vperm.xlu0 %3041, %v1209
        %v3043 = vpop.permute.xlu0 %3042
        %3044 = vset.pattern.permute.xlu0 0
        %3045 = vperm.xlu0 %3044, %v1345
        %v3046 = vpop.permute.xlu0 %3045
        %3047 = vset.pattern.permute.xlu0 0
        %3048 = vperm.xlu0 %3047, %v1481
        %v3049 = vpop.permute.xlu0 %3048
        %3050 = vset.pattern.permute.xlu0 0
        %3051 = vperm.xlu0 %3050, %v1617
        %v3052 = vpop.permute.xlu0 %3051
        %3053 = vset.pattern.permute.xlu0 0
        %3054 = vperm.xlu0 %3053, %v1753
        %v3055 = vpop.permute.xlu0 %3054
        %3056 = vset.pattern.permute.xlu0 0
        %3057 = vperm.xlu0 %3056, %v1889
        %v3058 = vpop.permute.xlu0 %3057
        %3059 = vset.pattern.permute.xlu0 0
        %3060 = vperm.xlu0 %3059, %v2025
        %v3061 = vpop.permute.xlu0 %3060
        %3062 = vset.pattern.permute.xlu0 0
        %3063 = vperm.xlu0 %3062, %v2161
        %v3064 = vpop.permute.xlu0 %3063
        %3065 = vset.pattern.permute.xlu0 0
        %3066 = vperm.xlu0 %3065, %v2297
        %v3067 = vpop.permute.xlu0 %3066
        %3068 = vset.pattern.permute.xlu0 0
        %3069 = vperm.xlu0 %3068, %v2433
        %v3070 = vpop.permute.xlu0 %3069
        %3071 = vset.pattern.permute.xlu0 0
        %3072 = vperm.xlu0 %3071, %v2569
        %v3073 = vpop.permute.xlu0 %3072
        %3074 = vset.pattern.permute.xlu0 0
        %3075 = vperm.xlu0 %3074, %v2705
        %v3076 = vpop.permute.xlu0 %3075
        %3077 = vset.pattern.permute.xlu0 0
        %3078 = vperm.xlu0 %3077, %v666
        %v3079 = vpop.permute.xlu0 %3078
        %3080 = vset.pattern.permute.xlu0 0
        %3081 = vperm.xlu0 %3080, %v802
        %v3082 = vpop.permute.xlu0 %3081
        %3083 = vset.pattern.permute.xlu0 0
        %3084 = vperm.xlu0 %3083, %v938
        %v3085 = vpop.permute.xlu0 %3084
        %3086 = vset.pattern.permute.xlu0 0
        %3087 = vperm.xlu0 %3086, %v1074
        %v3088 = vpop.permute.xlu0 %3087
        %3089 = vset.pattern.permute.xlu0 0
        %3090 = vperm.xlu0 %3089, %v1210
        %v3091 = vpop.permute.xlu0 %3090
        %3092 = vset.pattern.permute.xlu0 0
        %3093 = vperm.xlu0 %3092, %v1346
        %v3094 = vpop.permute.xlu0 %3093
        %3095 = vset.pattern.permute.xlu0 0
        %3096 = vperm.xlu0 %3095, %v1482
        %v3097 = vpop.permute.xlu0 %3096
        %3098 = vset.pattern.permute.xlu0 0
        %3099 = vperm.xlu0 %3098, %v1618
        %v3100 = vpop.permute.xlu0 %3099
        %3101 = vset.pattern.permute.xlu0 0
        %3102 = vperm.xlu0 %3101, %v1754
        %v3103 = vpop.permute.xlu0 %3102
        %3104 = vset.pattern.permute.xlu0 0
        %3105 = vperm.xlu0 %3104, %v1890
        %v3106 = vpop.permute.xlu0 %3105
        %3107 = vset.pattern.permute.xlu0 0
        %3108 = vperm.xlu0 %3107, %v2026
        %v3109 = vpop.permute.xlu0 %3108
        %3110 = vset.pattern.permute.xlu0 0
        %3111 = vperm.xlu0 %3110, %v2162
        %v3112 = vpop.permute.xlu0 %3111
        %3113 = vset.pattern.permute.xlu0 0
        %3114 = vperm.xlu0 %3113, %v2298
        %v3115 = vpop.permute.xlu0 %3114
        %3116 = vset.pattern.permute.xlu0 0
        %3117 = vperm.xlu0 %3116, %v2434
        %v3118 = vpop.permute.xlu0 %3117
        %3119 = vset.pattern.permute.xlu0 0
        %3120 = vperm.xlu0 %3119, %v2570
        %v3121 = vpop.permute.xlu0 %3120
        %3122 = vset.pattern.permute.xlu0 0
        %3123 = vperm.xlu0 %3122, %v2706
        %v3124 = vpop.permute.xlu0 %3123
        %3125 = vset.pattern.permute.xlu0 0
        %3126 = vperm.xlu0 %3125, %v667
        %v3127 = vpop.permute.xlu0 %3126
        %3128 = vset.pattern.permute.xlu0 0
        %3129 = vperm.xlu0 %3128, %v803
        %v3130 = vpop.permute.xlu0 %3129
        %3131 = vset.pattern.permute.xlu0 0
        %3132 = vperm.xlu0 %3131, %v939
        %v3133 = vpop.permute.xlu0 %3132
        %3134 = vset.pattern.permute.xlu0 0
        %3135 = vperm.xlu0 %3134, %v1075
        %v3136 = vpop.permute.xlu0 %3135
        %3137 = vset.pattern.permute.xlu0 0
        %3138 = vperm.xlu0 %3137, %v1211
        %v3139 = vpop.permute.xlu0 %3138
        %3140 = vset.pattern.permute.xlu0 0
        %3141 = vperm.xlu0 %3140, %v1347
        %v3142 = vpop.permute.xlu0 %3141
        %3143 = vset.pattern.permute.xlu0 0
        %3144 = vperm.xlu0 %3143, %v1483
        %v3145 = vpop.permute.xlu0 %3144
        %3146 = vset.pattern.permute.xlu0 0
        %3147 = vperm.xlu0 %3146, %v1619
        %v3148 = vpop.permute.xlu0 %3147
        %3149 = vset.pattern.permute.xlu0 0
        %3150 = vperm.xlu0 %3149, %v1755
        %v3151 = vpop.permute.xlu0 %3150
        %3152 = vset.pattern.permute.xlu0 0
        %3153 = vperm.xlu0 %3152, %v1891
        %v3154 = vpop.permute.xlu0 %3153
        %3155 = vset.pattern.permute.xlu0 0
        %3156 = vperm.xlu0 %3155, %v2027
        %v3157 = vpop.permute.xlu0 %3156
        %3158 = vset.pattern.permute.xlu0 0
        %3159 = vperm.xlu0 %3158, %v2163
        %v3160 = vpop.permute.xlu0 %3159
        %3161 = vset.pattern.permute.xlu0 0
        %3162 = vperm.xlu0 %3161, %v2299
        %v3163 = vpop.permute.xlu0 %3162
        %3164 = vset.pattern.permute.xlu0 0
        %3165 = vperm.xlu0 %3164, %v2435
        %v3166 = vpop.permute.xlu0 %3165
        %3167 = vset.pattern.permute.xlu0 0
        %3168 = vperm.xlu0 %3167, %v2571
        %v3169 = vpop.permute.xlu0 %3168
        %3170 = vset.pattern.permute.xlu0 0
        %3171 = vperm.xlu0 %3170, %v2707
        %v3172 = vpop.permute.xlu0 %3171
        %3173 = vset.pattern.permute.xlu0 0
        %3174 = vperm.xlu0 %3173, %v668
        %v3175 = vpop.permute.xlu0 %3174
        %3176 = vset.pattern.permute.xlu0 0
        %3177 = vperm.xlu0 %3176, %v804
        %v3178 = vpop.permute.xlu0 %3177
        %3179 = vset.pattern.permute.xlu0 0
        %3180 = vperm.xlu0 %3179, %v940
        %v3181 = vpop.permute.xlu0 %3180
        %3182 = vset.pattern.permute.xlu0 0
        %3183 = vperm.xlu0 %3182, %v1076
        %v3184 = vpop.permute.xlu0 %3183
        %3185 = vset.pattern.permute.xlu0 0
        %3186 = vperm.xlu0 %3185, %v1212
        %v3187 = vpop.permute.xlu0 %3186
        %3188 = vset.pattern.permute.xlu0 0
        %3189 = vperm.xlu0 %3188, %v1348
        %v3190 = vpop.permute.xlu0 %3189
        %3191 = vset.pattern.permute.xlu0 0
        %3192 = vperm.xlu0 %3191, %v1484
        %v3193 = vpop.permute.xlu0 %3192
        %3194 = vset.pattern.permute.xlu0 0
        %3195 = vperm.xlu0 %3194, %v1620
        %v3196 = vpop.permute.xlu0 %3195
        %3197 = vset.pattern.permute.xlu0 0
        %3198 = vperm.xlu0 %3197, %v1756
        %v3199 = vpop.permute.xlu0 %3198
        %3200 = vset.pattern.permute.xlu0 0
        %3201 = vperm.xlu0 %3200, %v1892
        %v3202 = vpop.permute.xlu0 %3201
        %3203 = vset.pattern.permute.xlu0 0
        %3204 = vperm.xlu0 %3203, %v2028
        %v3205 = vpop.permute.xlu0 %3204
        %3206 = vset.pattern.permute.xlu0 0
        %3207 = vperm.xlu0 %3206, %v2164
        %v3208 = vpop.permute.xlu0 %3207
        %3209 = vset.pattern.permute.xlu0 0
        %3210 = vperm.xlu0 %3209, %v2300
        %v3211 = vpop.permute.xlu0 %3210
        %3212 = vset.pattern.permute.xlu0 0
        %3213 = vperm.xlu0 %3212, %v2436
        %v3214 = vpop.permute.xlu0 %3213
        %3215 = vset.pattern.permute.xlu0 0
        %3216 = vperm.xlu0 %3215, %v2572
        %v3217 = vpop.permute.xlu0 %3216
        %3218 = vset.pattern.permute.xlu0 0
        %3219 = vperm.xlu0 %3218, %v2708
        %v3220 = vpop.permute.xlu0 %3219
        %v3221 = vlaneseq
        %v3222 = vand.u32 %v3221, 127
        %v3223 = vlaneseq
        %v3224 = vshrl.u32 %v3223, 7
        %v3225 = vsub.s32 %v3222, %v3224
        %v3226 = vrot.slane %v2839, %v3225
        %v3227 = vadd.s32 %v3222, 4294967288
        %v3228 = vlaneseq
        %v3229 = vshrl.u32 %v3228, 7
        %v3230 = vsub.s32 %v3227, %v3229
        %v3231 = vrot.slane %v2842, %v3230
        %vm3232 = vcmask 130112
        %v3233 = vsel %vm3232, %v3231, %v3226
        %v3234 = vadd.s32 %v3222, 4294967280
        %v3235 = vlaneseq
        %v3236 = vshrl.u32 %v3235, 7
        %v3237 = vsub.s32 %v3234, %v3236
        %v3238 = vrot.slane %v2845, %v3237
        %vm3239 = vcmask 195712
        %v3240 = vsel %vm3239, %v3238, %v3233
        %v3241 = vadd.s32 %v3222, 4294967272
        %v3242 = vlaneseq
        %v3243 = vshrl.u32 %v3242, 7
        %v3244 = vsub.s32 %v3241, %v3243
        %v3245 = vrot.slane %v2848, %v3244
        %vm3246 = vcmask 261312
        %v3247 = vsel %vm3246, %v3245, %v3240
        %v3248 = vadd.s32 %v3222, 4294967264
        %v3249 = vlaneseq
        %v3250 = vshrl.u32 %v3249, 7
        %v3251 = vsub.s32 %v3248, %v3250
        %v3252 = vrot.slane %v2851, %v3251
        %vm3253 = vcmask 326912
        %v3254 = vsel %vm3253, %v3252, %v3247
        %v3255 = vadd.s32 %v3222, 4294967256
        %v3256 = vlaneseq
        %v3257 = vshrl.u32 %v3256, 7
        %v3258 = vsub.s32 %v3255, %v3257
        %v3259 = vrot.slane %v2854, %v3258
        %vm3260 = vcmask 392512
        %v3261 = vsel %vm3260, %v3259, %v3254
        %v3262 = vadd.s32 %v3222, 4294967248
        %v3263 = vlaneseq
        %v3264 = vshrl.u32 %v3263, 7
        %v3265 = vsub.s32 %v3262, %v3264
        %v3266 = vrot.slane %v2857, %v3265
        %vm3267 = vcmask 458112
        %v3268 = vsel %vm3267, %v3266, %v3261
        %v3269 = vadd.s32 %v3222, 4294967240
        %v3270 = vlaneseq
        %v3271 = vshrl.u32 %v3270, 7
        %v3272 = vsub.s32 %v3269, %v3271
        %v3273 = vrot.slane %v2860, %v3272
        %vm3274 = vcmask 523712
        %v3275 = vsel %vm3274, %v3273, %v3268
        %v3276 = vadd.s32 %v3222, 4294967232
        %v3277 = vlaneseq
        %v3278 = vshrl.u32 %v3277, 7
        %v3279 = vsub.s32 %v3276, %v3278
        %v3280 = vrot.slane %v2863, %v3279
        %vm3281 = vcmask 589312
        %v3282 = vsel %vm3281, %v3280, %v3275
        %v3283 = vadd.s32 %v3222, 4294967224
        %v3284 = vlaneseq
        %v3285 = vshrl.u32 %v3284, 7
        %v3286 = vsub.s32 %v3283, %v3285
        %v3287 = vrot.slane %v2866, %v3286
        %vm3288 = vcmask 654912
        %v3289 = vsel %vm3288, %v3287, %v3282
        %v3290 = vadd.s32 %v3222, 4294967216
        %v3291 = vlaneseq
        %v3292 = vshrl.u32 %v3291, 7
        %v3293 = vsub.s32 %v3290, %v3292
        %v3294 = vrot.slane %v2869, %v3293
        %vm3295 = vcmask 720512
        %v3296 = vsel %vm3295, %v3294, %v3289
        %v3297 = vadd.s32 %v3222, 4294967208
        %v3298 = vlaneseq
        %v3299 = vshrl.u32 %v3298, 7
        %v3300 = vsub.s32 %v3297, %v3299
        %v3301 = vrot.slane %v2872, %v3300
        %vm3302 = vcmask 786112
        %v3303 = vsel %vm3302, %v3301, %v3296
        %v3304 = vadd.s32 %v3222, 4294967200
        %v3305 = vlaneseq
        %v3306 = vshrl.u32 %v3305, 7
        %v3307 = vsub.s32 %v3304, %v3306
        %v3308 = vrot.slane %v2875, %v3307
        %vm3309 = vcmask 851712
        %v3310 = vsel %vm3309, %v3308, %v3303
        %v3311 = vadd.s32 %v3222, 4294967192
        %v3312 = vlaneseq
        %v3313 = vshrl.u32 %v3312, 7
        %v3314 = vsub.s32 %v3311, %v3313
        %v3315 = vrot.slane %v2878, %v3314
        %vm3316 = vcmask 917312
        %v3317 = vsel %vm3316, %v3315, %v3310
        %v3318 = vadd.s32 %v3222, 4294967184
        %v3319 = vlaneseq
        %v3320 = vshrl.u32 %v3319, 7
        %v3321 = vsub.s32 %v3318, %v3320
        %v3322 = vrot.slane %v2881, %v3321
        %vm3323 = vcmask 982912
        %v3324 = vsel %vm3323, %v3322, %v3317
        %v3325 = vadd.s32 %v3222, 4294967176
        %v3326 = vlaneseq
        %v3327 = vshrl.u32 %v3326, 7
        %v3328 = vsub.s32 %v3325, %v3327
        %v3329 = vrot.slane %v2884, %v3328
        %vm3330 = vcmask 1048512
        %v3331 = vsel %vm3330, %v3329, %v3324
        %v3332 = vlaneseq
        %v3333 = vshrl.u32 %v3332, 7
        %v3334 = vsub.s32 %v3222, %v3333
        %v3335 = vrot.slane %v2887, %v3334
        %v3336 = vlaneseq
        %v3337 = vshrl.u32 %v3336, 7
        %v3338 = vsub.s32 %v3227, %v3337
        %v3339 = vrot.slane %v2890, %v3338
        %v3340 = vsel %vm3232, %v3339, %v3335
        %v3341 = vlaneseq
        %v3342 = vshrl.u32 %v3341, 7
        %v3343 = vsub.s32 %v3234, %v3342
        %v3344 = vrot.slane %v2893, %v3343
        %v3345 = vsel %vm3239, %v3344, %v3340
        %v3346 = vlaneseq
        %v3347 = vshrl.u32 %v3346, 7
        %v3348 = vsub.s32 %v3241, %v3347
        %v3349 = vrot.slane %v2896, %v3348
        %v3350 = vsel %vm3246, %v3349, %v3345
        %v3351 = vlaneseq
        %v3352 = vshrl.u32 %v3351, 7
        %v3353 = vsub.s32 %v3248, %v3352
        %v3354 = vrot.slane %v2899, %v3353
        %v3355 = vsel %vm3253, %v3354, %v3350
        %v3356 = vlaneseq
        %v3357 = vshrl.u32 %v3356, 7
        %v3358 = vsub.s32 %v3255, %v3357
        %v3359 = vrot.slane %v2902, %v3358
        %v3360 = vsel %vm3260, %v3359, %v3355
        %v3361 = vlaneseq
        %v3362 = vshrl.u32 %v3361, 7
        %v3363 = vsub.s32 %v3262, %v3362
        %v3364 = vrot.slane %v2905, %v3363
        %v3365 = vsel %vm3267, %v3364, %v3360
        %v3366 = vlaneseq
        %v3367 = vshrl.u32 %v3366, 7
        %v3368 = vsub.s32 %v3269, %v3367
        %v3369 = vrot.slane %v2908, %v3368
        %v3370 = vsel %vm3274, %v3369, %v3365
        %v3371 = vlaneseq
        %v3372 = vshrl.u32 %v3371, 7
        %v3373 = vsub.s32 %v3276, %v3372
        %v3374 = vrot.slane %v2911, %v3373
        %v3375 = vsel %vm3281, %v3374, %v3370
        %v3376 = vlaneseq
        %v3377 = vshrl.u32 %v3376, 7
        %v3378 = vsub.s32 %v3283, %v3377
        %v3379 = vrot.slane %v2914, %v3378
        %v3380 = vsel %vm3288, %v3379, %v3375
        %v3381 = vlaneseq
        %v3382 = vshrl.u32 %v3381, 7
        %v3383 = vsub.s32 %v3290, %v3382
        %v3384 = vrot.slane %v2917, %v3383
        %v3385 = vsel %vm3295, %v3384, %v3380
        %v3386 = vlaneseq
        %v3387 = vshrl.u32 %v3386, 7
        %v3388 = vsub.s32 %v3297, %v3387
        %v3389 = vrot.slane %v2920, %v3388
        %v3390 = vsel %vm3302, %v3389, %v3385
        %v3391 = vlaneseq
        %v3392 = vshrl.u32 %v3391, 7
        %v3393 = vsub.s32 %v3304, %v3392
        %v3394 = vrot.slane %v2923, %v3393
        %v3395 = vsel %vm3309, %v3394, %v3390
        %v3396 = vlaneseq
        %v3397 = vshrl.u32 %v3396, 7
        %v3398 = vsub.s32 %v3311, %v3397
        %v3399 = vrot.slane %v2926, %v3398
        %v3400 = vsel %vm3316, %v3399, %v3395
        %v3401 = vlaneseq
        %v3402 = vshrl.u32 %v3401, 7
        %v3403 = vsub.s32 %v3318, %v3402
        %v3404 = vrot.slane %v2929, %v3403
        %v3405 = vsel %vm3323, %v3404, %v3400
        %v3406 = vlaneseq
        %v3407 = vshrl.u32 %v3406, 7
        %v3408 = vsub.s32 %v3325, %v3407
        %v3409 = vrot.slane %v2932, %v3408
        %v3410 = vsel %vm3330, %v3409, %v3405
        %v3411 = vlaneseq
        %v3412 = vshrl.u32 %v3411, 7
        %v3413 = vsub.s32 %v3222, %v3412
        %v3414 = vrot.slane %v2935, %v3413
        %v3415 = vlaneseq
        %v3416 = vshrl.u32 %v3415, 7
        %v3417 = vsub.s32 %v3227, %v3416
        %v3418 = vrot.slane %v2938, %v3417
        %v3419 = vsel %vm3232, %v3418, %v3414
        %v3420 = vlaneseq
        %v3421 = vshrl.u32 %v3420, 7
        %v3422 = vsub.s32 %v3234, %v3421
        %v3423 = vrot.slane %v2941, %v3422
        %v3424 = vsel %vm3239, %v3423, %v3419
        %v3425 = vlaneseq
        %v3426 = vshrl.u32 %v3425, 7
        %v3427 = vsub.s32 %v3241, %v3426
        %v3428 = vrot.slane %v2944, %v3427
        %v3429 = vsel %vm3246, %v3428, %v3424
        %v3430 = vlaneseq
        %v3431 = vshrl.u32 %v3430, 7
        %v3432 = vsub.s32 %v3248, %v3431
        %v3433 = vrot.slane %v2947, %v3432
        %v3434 = vsel %vm3253, %v3433, %v3429
        %v3435 = vlaneseq
        %v3436 = vshrl.u32 %v3435, 7
        %v3437 = vsub.s32 %v3255, %v3436
        %v3438 = vrot.slane %v2950, %v3437
        %v3439 = vsel %vm3260, %v3438, %v3434
        %v3440 = vlaneseq
        %v3441 = vshrl.u32 %v3440, 7
        %v3442 = vsub.s32 %v3262, %v3441
        %v3443 = vrot.slane %v2953, %v3442
        %v3444 = vsel %vm3267, %v3443, %v3439
        %v3445 = vlaneseq
        %v3446 = vshrl.u32 %v3445, 7
        %v3447 = vsub.s32 %v3269, %v3446
        %v3448 = vrot.slane %v2956, %v3447
        %v3449 = vsel %vm3274, %v3448, %v3444
        %v3450 = vlaneseq
        %v3451 = vshrl.u32 %v3450, 7
        %v3452 = vsub.s32 %v3276, %v3451
        %v3453 = vrot.slane %v2959, %v3452
        %v3454 = vsel %vm3281, %v3453, %v3449
        %v3455 = vlaneseq
        %v3456 = vshrl.u32 %v3455, 7
        %v3457 = vsub.s32 %v3283, %v3456
        %v3458 = vrot.slane %v2962, %v3457
        %v3459 = vsel %vm3288, %v3458, %v3454
        %v3460 = vlaneseq
        %v3461 = vshrl.u32 %v3460, 7
        %v3462 = vsub.s32 %v3290, %v3461
        %v3463 = vrot.slane %v2965, %v3462
        %v3464 = vsel %vm3295, %v3463, %v3459
        %v3465 = vlaneseq
        %v3466 = vshrl.u32 %v3465, 7
        %v3467 = vsub.s32 %v3297, %v3466
        %v3468 = vrot.slane %v2968, %v3467
        %v3469 = vsel %vm3302, %v3468, %v3464
        %v3470 = vlaneseq
        %v3471 = vshrl.u32 %v3470, 7
        %v3472 = vsub.s32 %v3304, %v3471
        %v3473 = vrot.slane %v2971, %v3472
        %v3474 = vsel %vm3309, %v3473, %v3469
        %v3475 = vlaneseq
        %v3476 = vshrl.u32 %v3475, 7
        %v3477 = vsub.s32 %v3311, %v3476
        %v3478 = vrot.slane %v2974, %v3477
        %v3479 = vsel %vm3316, %v3478, %v3474
        %v3480 = vlaneseq
        %v3481 = vshrl.u32 %v3480, 7
        %v3482 = vsub.s32 %v3318, %v3481
        %v3483 = vrot.slane %v2977, %v3482
        %v3484 = vsel %vm3323, %v3483, %v3479
        %v3485 = vlaneseq
        %v3486 = vshrl.u32 %v3485, 7
        %v3487 = vsub.s32 %v3325, %v3486
        %v3488 = vrot.slane %v2980, %v3487
        %v3489 = vsel %vm3330, %v3488, %v3484
        %v3490 = vlaneseq
        %v3491 = vshrl.u32 %v3490, 7
        %v3492 = vsub.s32 %v3222, %v3491
        %v3493 = vrot.slane %v2983, %v3492
        %v3494 = vlaneseq
        %v3495 = vshrl.u32 %v3494, 7
        %v3496 = vsub.s32 %v3227, %v3495
        %v3497 = vrot.slane %v2986, %v3496
        %v3498 = vsel %vm3232, %v3497, %v3493
        %v3499 = vlaneseq
        %v3500 = vshrl.u32 %v3499, 7
        %v3501 = vsub.s32 %v3234, %v3500
        %v3502 = vrot.slane %v2989, %v3501
        %v3503 = vsel %vm3239, %v3502, %v3498
        %v3504 = vlaneseq
        %v3505 = vshrl.u32 %v3504, 7
        %v3506 = vsub.s32 %v3241, %v3505
        %v3507 = vrot.slane %v2992, %v3506
        %v3508 = vsel %vm3246, %v3507, %v3503
        %v3509 = vlaneseq
        %v3510 = vshrl.u32 %v3509, 7
        %v3511 = vsub.s32 %v3248, %v3510
        %v3512 = vrot.slane %v2995, %v3511
        %v3513 = vsel %vm3253, %v3512, %v3508
        %v3514 = vlaneseq
        %v3515 = vshrl.u32 %v3514, 7
        %v3516 = vsub.s32 %v3255, %v3515
        %v3517 = vrot.slane %v2998, %v3516
        %v3518 = vsel %vm3260, %v3517, %v3513
        %v3519 = vlaneseq
        %v3520 = vshrl.u32 %v3519, 7
        %v3521 = vsub.s32 %v3262, %v3520
        %v3522 = vrot.slane %v3001, %v3521
        %v3523 = vsel %vm3267, %v3522, %v3518
        %v3524 = vlaneseq
        %v3525 = vshrl.u32 %v3524, 7
        %v3526 = vsub.s32 %v3269, %v3525
        %v3527 = vrot.slane %v3004, %v3526
        %v3528 = vsel %vm3274, %v3527, %v3523
        %v3529 = vlaneseq
        %v3530 = vshrl.u32 %v3529, 7
        %v3531 = vsub.s32 %v3276, %v3530
        %v3532 = vrot.slane %v3007, %v3531
        %v3533 = vsel %vm3281, %v3532, %v3528
        %v3534 = vlaneseq
        %v3535 = vshrl.u32 %v3534, 7
        %v3536 = vsub.s32 %v3283, %v3535
        %v3537 = vrot.slane %v3010, %v3536
        %v3538 = vsel %vm3288, %v3537, %v3533
        %v3539 = vlaneseq
        %v3540 = vshrl.u32 %v3539, 7
        %v3541 = vsub.s32 %v3290, %v3540
        %v3542 = vrot.slane %v3013, %v3541
        %v3543 = vsel %vm3295, %v3542, %v3538
        %v3544 = vlaneseq
        %v3545 = vshrl.u32 %v3544, 7
        %v3546 = vsub.s32 %v3297, %v3545
        %v3547 = vrot.slane %v3016, %v3546
        %v3548 = vsel %vm3302, %v3547, %v3543
        %v3549 = vlaneseq
        %v3550 = vshrl.u32 %v3549, 7
        %v3551 = vsub.s32 %v3304, %v3550
        %v3552 = vrot.slane %v3019, %v3551
        %v3553 = vsel %vm3309, %v3552, %v3548
        %v3554 = vlaneseq
        %v3555 = vshrl.u32 %v3554, 7
        %v3556 = vsub.s32 %v3311, %v3555
        %v3557 = vrot.slane %v3022, %v3556
        %v3558 = vsel %vm3316, %v3557, %v3553
        %v3559 = vlaneseq
        %v3560 = vshrl.u32 %v3559, 7
        %v3561 = vsub.s32 %v3318, %v3560
        %v3562 = vrot.slane %v3025, %v3561
        %v3563 = vsel %vm3323, %v3562, %v3558
        %v3564 = vlaneseq
        %v3565 = vshrl.u32 %v3564, 7
        %v3566 = vsub.s32 %v3325, %v3565
        %v3567 = vrot.slane %v3028, %v3566
        %v3568 = vsel %vm3330, %v3567, %v3563
        %v3569 = vlaneseq
        %v3570 = vshrl.u32 %v3569, 7
        %v3571 = vsub.s32 %v3222, %v3570
        %v3572 = vrot.slane %v3031, %v3571
        %v3573 = vlaneseq
        %v3574 = vshrl.u32 %v3573, 7
        %v3575 = vsub.s32 %v3227, %v3574
        %v3576 = vrot.slane %v3034, %v3575
        %v3577 = vsel %vm3232, %v3576, %v3572
        %v3578 = vlaneseq
        %v3579 = vshrl.u32 %v3578, 7
        %v3580 = vsub.s32 %v3234, %v3579
        %v3581 = vrot.slane %v3037, %v3580
        %v3582 = vsel %vm3239, %v3581, %v3577
        %v3583 = vlaneseq
        %v3584 = vshrl.u32 %v3583, 7
        %v3585 = vsub.s32 %v3241, %v3584
        %v3586 = vrot.slane %v3040, %v3585
        %v3587 = vsel %vm3246, %v3586, %v3582
        %v3588 = vlaneseq
        %v3589 = vshrl.u32 %v3588, 7
        %v3590 = vsub.s32 %v3248, %v3589
        %v3591 = vrot.slane %v3043, %v3590
        %v3592 = vsel %vm3253, %v3591, %v3587
        %v3593 = vlaneseq
        %v3594 = vshrl.u32 %v3593, 7
        %v3595 = vsub.s32 %v3255, %v3594
        %v3596 = vrot.slane %v3046, %v3595
        %v3597 = vsel %vm3260, %v3596, %v3592
        %v3598 = vlaneseq
        %v3599 = vshrl.u32 %v3598, 7
        %v3600 = vsub.s32 %v3262, %v3599
        %v3601 = vrot.slane %v3049, %v3600
        %v3602 = vsel %vm3267, %v3601, %v3597
        %v3603 = vlaneseq
        %v3604 = vshrl.u32 %v3603, 7
        %v3605 = vsub.s32 %v3269, %v3604
        %v3606 = vrot.slane %v3052, %v3605
        %v3607 = vsel %vm3274, %v3606, %v3602
        %v3608 = vlaneseq
        %v3609 = vshrl.u32 %v3608, 7
        %v3610 = vsub.s32 %v3276, %v3609
        %v3611 = vrot.slane %v3055, %v3610
        %v3612 = vsel %vm3281, %v3611, %v3607
        %v3613 = vlaneseq
        %v3614 = vshrl.u32 %v3613, 7
        %v3615 = vsub.s32 %v3283, %v3614
        %v3616 = vrot.slane %v3058, %v3615
        %v3617 = vsel %vm3288, %v3616, %v3612
        %v3618 = vlaneseq
        %v3619 = vshrl.u32 %v3618, 7
        %v3620 = vsub.s32 %v3290, %v3619
        %v3621 = vrot.slane %v3061, %v3620
        %v3622 = vsel %vm3295, %v3621, %v3617
        %v3623 = vlaneseq
        %v3624 = vshrl.u32 %v3623, 7
        %v3625 = vsub.s32 %v3297, %v3624
        %v3626 = vrot.slane %v3064, %v3625
        %v3627 = vsel %vm3302, %v3626, %v3622
        %v3628 = vlaneseq
        %v3629 = vshrl.u32 %v3628, 7
        %v3630 = vsub.s32 %v3304, %v3629
        %v3631 = vrot.slane %v3067, %v3630
        %v3632 = vsel %vm3309, %v3631, %v3627
        %v3633 = vlaneseq
        %v3634 = vshrl.u32 %v3633, 7
        %v3635 = vsub.s32 %v3311, %v3634
        %v3636 = vrot.slane %v3070, %v3635
        %v3637 = vsel %vm3316, %v3636, %v3632
        %v3638 = vlaneseq
        %v3639 = vshrl.u32 %v3638, 7
        %v3640 = vsub.s32 %v3318, %v3639
        %v3641 = vrot.slane %v3073, %v3640
        %v3642 = vsel %vm3323, %v3641, %v3637
        %v3643 = vlaneseq
        %v3644 = vshrl.u32 %v3643, 7
        %v3645 = vsub.s32 %v3325, %v3644
        %v3646 = vrot.slane %v3076, %v3645
        %v3647 = vsel %vm3330, %v3646, %v3642
        %v3648 = vlaneseq
        %v3649 = vshrl.u32 %v3648, 7
        %v3650 = vsub.s32 %v3222, %v3649
        %v3651 = vrot.slane %v3079, %v3650
        %v3652 = vlaneseq
        %v3653 = vshrl.u32 %v3652, 7
        %v3654 = vsub.s32 %v3227, %v3653
        %v3655 = vrot.slane %v3082, %v3654
        %v3656 = vsel %vm3232, %v3655, %v3651
        %v3657 = vlaneseq
        %v3658 = vshrl.u32 %v3657, 7
        %v3659 = vsub.s32 %v3234, %v3658
        %v3660 = vrot.slane %v3085, %v3659
        %v3661 = vsel %vm3239, %v3660, %v3656
        %v3662 = vlaneseq
        %v3663 = vshrl.u32 %v3662, 7
        %v3664 = vsub.s32 %v3241, %v3663
        %v3665 = vrot.slane %v3088, %v3664
        %v3666 = vsel %vm3246, %v3665, %v3661
        %v3667 = vlaneseq
        %v3668 = vshrl.u32 %v3667, 7
        %v3669 = vsub.s32 %v3248, %v3668
        %v3670 = vrot.slane %v3091, %v3669
        %v3671 = vsel %vm3253, %v3670, %v3666
        %v3672 = vlaneseq
        %v3673 = vshrl.u32 %v3672, 7
        %v3674 = vsub.s32 %v3255, %v3673
        %v3675 = vrot.slane %v3094, %v3674
        %v3676 = vsel %vm3260, %v3675, %v3671
        %v3677 = vlaneseq
        %v3678 = vshrl.u32 %v3677, 7
        %v3679 = vsub.s32 %v3262, %v3678
        %v3680 = vrot.slane %v3097, %v3679
        %v3681 = vsel %vm3267, %v3680, %v3676
        %v3682 = vlaneseq
        %v3683 = vshrl.u32 %v3682, 7
        %v3684 = vsub.s32 %v3269, %v3683
        %v3685 = vrot.slane %v3100, %v3684
        %v3686 = vsel %vm3274, %v3685, %v3681
        %v3687 = vlaneseq
        %v3688 = vshrl.u32 %v3687, 7
        %v3689 = vsub.s32 %v3276, %v3688
        %v3690 = vrot.slane %v3103, %v3689
        %v3691 = vsel %vm3281, %v3690, %v3686
        %v3692 = vlaneseq
        %v3693 = vshrl.u32 %v3692, 7
        %v3694 = vsub.s32 %v3283, %v3693
        %v3695 = vrot.slane %v3106, %v3694
        %v3696 = vsel %vm3288, %v3695, %v3691
        %v3697 = vlaneseq
        %v3698 = vshrl.u32 %v3697, 7
        %v3699 = vsub.s32 %v3290, %v3698
        %v3700 = vrot.slane %v3109, %v3699
        %v3701 = vsel %vm3295, %v3700, %v3696
        %v3702 = vlaneseq
        %v3703 = vshrl.u32 %v3702, 7
        %v3704 = vsub.s32 %v3297, %v3703
        %v3705 = vrot.slane %v3112, %v3704
        %v3706 = vsel %vm3302, %v3705, %v3701
        %v3707 = vlaneseq
        %v3708 = vshrl.u32 %v3707, 7
        %v3709 = vsub.s32 %v3304, %v3708
        %v3710 = vrot.slane %v3115, %v3709
        %v3711 = vsel %vm3309, %v3710, %v3706
        %v3712 = vlaneseq
        %v3713 = vshrl.u32 %v3712, 7
        %v3714 = vsub.s32 %v3311, %v3713
        %v3715 = vrot.slane %v3118, %v3714
        %v3716 = vsel %vm3316, %v3715, %v3711
        %v3717 = vlaneseq
        %v3718 = vshrl.u32 %v3717, 7
        %v3719 = vsub.s32 %v3318, %v3718
        %v3720 = vrot.slane %v3121, %v3719
        %v3721 = vsel %vm3323, %v3720, %v3716
        %v3722 = vlaneseq
        %v3723 = vshrl.u32 %v3722, 7
        %v3724 = vsub.s32 %v3325, %v3723
        %v3725 = vrot.slane %v3124, %v3724
        %v3726 = vsel %vm3330, %v3725, %v3721
        %v3727 = vlaneseq
        %v3728 = vshrl.u32 %v3727, 7
        %v3729 = vsub.s32 %v3222, %v3728
        %v3730 = vrot.slane %v3127, %v3729
        %v3731 = vlaneseq
        %v3732 = vshrl.u32 %v3731, 7
        %v3733 = vsub.s32 %v3227, %v3732
        %v3734 = vrot.slane %v3130, %v3733
        %v3735 = vsel %vm3232, %v3734, %v3730
        %v3736 = vlaneseq
        %v3737 = vshrl.u32 %v3736, 7
        %v3738 = vsub.s32 %v3234, %v3737
        %v3739 = vrot.slane %v3133, %v3738
        %v3740 = vsel %vm3239, %v3739, %v3735
        %v3741 = vlaneseq
        %v3742 = vshrl.u32 %v3741, 7
        %v3743 = vsub.s32 %v3241, %v3742
        %v3744 = vrot.slane %v3136, %v3743
        %v3745 = vsel %vm3246, %v3744, %v3740
        %v3746 = vlaneseq
        %v3747 = vshrl.u32 %v3746, 7
        %v3748 = vsub.s32 %v3248, %v3747
        %v3749 = vrot.slane %v3139, %v3748
        %v3750 = vsel %vm3253, %v3749, %v3745
        %v3751 = vlaneseq
        %v3752 = vshrl.u32 %v3751, 7
        %v3753 = vsub.s32 %v3255, %v3752
        %v3754 = vrot.slane %v3142, %v3753
        %v3755 = vsel %vm3260, %v3754, %v3750
        %v3756 = vlaneseq
        %v3757 = vshrl.u32 %v3756, 7
        %v3758 = vsub.s32 %v3262, %v3757
        %v3759 = vrot.slane %v3145, %v3758
        %v3760 = vsel %vm3267, %v3759, %v3755
        %v3761 = vlaneseq
        %v3762 = vshrl.u32 %v3761, 7
        %v3763 = vsub.s32 %v3269, %v3762
        %v3764 = vrot.slane %v3148, %v3763
        %v3765 = vsel %vm3274, %v3764, %v3760
        %v3766 = vlaneseq
        %v3767 = vshrl.u32 %v3766, 7
        %v3768 = vsub.s32 %v3276, %v3767
        %v3769 = vrot.slane %v3151, %v3768
        %v3770 = vsel %vm3281, %v3769, %v3765
        %v3771 = vlaneseq
        %v3772 = vshrl.u32 %v3771, 7
        %v3773 = vsub.s32 %v3283, %v3772
        %v3774 = vrot.slane %v3154, %v3773
        %v3775 = vsel %vm3288, %v3774, %v3770
        %v3776 = vlaneseq
        %v3777 = vshrl.u32 %v3776, 7
        %v3778 = vsub.s32 %v3290, %v3777
        %v3779 = vrot.slane %v3157, %v3778
        %v3780 = vsel %vm3295, %v3779, %v3775
        %v3781 = vlaneseq
        %v3782 = vshrl.u32 %v3781, 7
        %v3783 = vsub.s32 %v3297, %v3782
        %v3784 = vrot.slane %v3160, %v3783
        %v3785 = vsel %vm3302, %v3784, %v3780
        %v3786 = vlaneseq
        %v3787 = vshrl.u32 %v3786, 7
        %v3788 = vsub.s32 %v3304, %v3787
        %v3789 = vrot.slane %v3163, %v3788
        %v3790 = vsel %vm3309, %v3789, %v3785
        %v3791 = vlaneseq
        %v3792 = vshrl.u32 %v3791, 7
        %v3793 = vsub.s32 %v3311, %v3792
        %v3794 = vrot.slane %v3166, %v3793
        %v3795 = vsel %vm3316, %v3794, %v3790
        %v3796 = vlaneseq
        %v3797 = vshrl.u32 %v3796, 7
        %v3798 = vsub.s32 %v3318, %v3797
        %v3799 = vrot.slane %v3169, %v3798
        %v3800 = vsel %vm3323, %v3799, %v3795
        %v3801 = vlaneseq
        %v3802 = vshrl.u32 %v3801, 7
        %v3803 = vsub.s32 %v3325, %v3802
        %v3804 = vrot.slane %v3172, %v3803
        %v3805 = vsel %vm3330, %v3804, %v3800
        %v3806 = vlaneseq
        %v3807 = vshrl.u32 %v3806, 7
        %v3808 = vsub.s32 %v3222, %v3807
        %v3809 = vrot.slane %v3175, %v3808
        %v3810 = vlaneseq
        %v3811 = vshrl.u32 %v3810, 7
        %v3812 = vsub.s32 %v3227, %v3811
        %v3813 = vrot.slane %v3178, %v3812
        %v3814 = vsel %vm3232, %v3813, %v3809
        %v3815 = vlaneseq
        %v3816 = vshrl.u32 %v3815, 7
        %v3817 = vsub.s32 %v3234, %v3816
        %v3818 = vrot.slane %v3181, %v3817
        %v3819 = vsel %vm3239, %v3818, %v3814
        %v3820 = vlaneseq
        %v3821 = vshrl.u32 %v3820, 7
        %v3822 = vsub.s32 %v3241, %v3821
        %v3823 = vrot.slane %v3184, %v3822
        %v3824 = vsel %vm3246, %v3823, %v3819
        %v3825 = vlaneseq
        %v3826 = vshrl.u32 %v3825, 7
        %v3827 = vsub.s32 %v3248, %v3826
        %v3828 = vrot.slane %v3187, %v3827
        %v3829 = vsel %vm3253, %v3828, %v3824
        %v3830 = vlaneseq
        %v3831 = vshrl.u32 %v3830, 7
        %v3832 = vsub.s32 %v3255, %v3831
        %v3833 = vrot.slane %v3190, %v3832
        %v3834 = vsel %vm3260, %v3833, %v3829
        %v3835 = vlaneseq
        %v3836 = vshrl.u32 %v3835, 7
        %v3837 = vsub.s32 %v3262, %v3836
        %v3838 = vrot.slane %v3193, %v3837
        %v3839 = vsel %vm3267, %v3838, %v3834
        %v3840 = vlaneseq
        %v3841 = vshrl.u32 %v3840, 7
        %v3842 = vsub.s32 %v3269, %v3841
        %v3843 = vrot.slane %v3196, %v3842
        %v3844 = vsel %vm3274, %v3843, %v3839
        %v3845 = vlaneseq
        %v3846 = vshrl.u32 %v3845, 7
        %v3847 = vsub.s32 %v3276, %v3846
        %v3848 = vrot.slane %v3199, %v3847
        %v3849 = vsel %vm3281, %v3848, %v3844
        %v3850 = vlaneseq
        %v3851 = vshrl.u32 %v3850, 7
        %v3852 = vsub.s32 %v3283, %v3851
        %v3853 = vrot.slane %v3202, %v3852
        %v3854 = vsel %vm3288, %v3853, %v3849
        %v3855 = vlaneseq
        %v3856 = vshrl.u32 %v3855, 7
        %v3857 = vsub.s32 %v3290, %v3856
        %v3858 = vrot.slane %v3205, %v3857
        %v3859 = vsel %vm3295, %v3858, %v3854
        %v3860 = vlaneseq
        %v3861 = vshrl.u32 %v3860, 7
        %v3862 = vsub.s32 %v3297, %v3861
        %v3863 = vrot.slane %v3208, %v3862
        %v3864 = vsel %vm3302, %v3863, %v3859
        %v3865 = vlaneseq
        %v3866 = vshrl.u32 %v3865, 7
        %v3867 = vsub.s32 %v3304, %v3866
        %v3868 = vrot.slane %v3211, %v3867
        %v3869 = vsel %vm3309, %v3868, %v3864
        %v3870 = vlaneseq
        %v3871 = vshrl.u32 %v3870, 7
        %v3872 = vsub.s32 %v3311, %v3871
        %v3873 = vrot.slane %v3214, %v3872
        %v3874 = vsel %vm3316, %v3873, %v3869
        %v3875 = vlaneseq
        %v3876 = vshrl.u32 %v3875, 7
        %v3877 = vsub.s32 %v3318, %v3876
        %v3878 = vrot.slane %v3217, %v3877
        %v3879 = vsel %vm3323, %v3878, %v3874
        %v3880 = vlaneseq
        %v3881 = vshrl.u32 %v3880, 7
        %v3882 = vsub.s32 %v3325, %v3881
        %v3883 = vrot.slane %v3220, %v3882
        %v3884 = vsel %vm3330, %v3883, %v3879
        %vm3885 = vcmask 1041409
        %v3886 = vsel %vm3885, %v3410, %v3331
        %vm3887 = vcmask 1042434
        %v3888 = vsel %vm3887, %v3489, %v3886
        %vm3889 = vcmask 1043459
        %v3890 = vsel %vm3889, %v3568, %v3888
        %vm3891 = vcmask 1044484
        %v3892 = vsel %vm3891, %v3647, %v3890
        %vm3893 = vcmask 1045509
        %v3894 = vsel %vm3893, %v3726, %v3892
        %vm3895 = vcmask 1046534
        %v3896 = vsel %vm3895, %v3805, %v3894
        %vm3897 = vcmask 1047559
        %v3898 = vsel %vm3897, %v3884, %v3896
        %3900 = vst [vmem:[%s150] sm:$0xff] %v3898
        %3901 = vset.pattern.permute.xlu0 1
        %3902 = vperm.xlu0 %3901, %v661
        %v3903 = vpop.permute.xlu0 %3902
        %3904 = vset.pattern.permute.xlu0 1
        %3905 = vperm.xlu0 %3904, %v797
        %v3906 = vpop.permute.xlu0 %3905
        %3907 = vset.pattern.permute.xlu0 1
        %3908 = vperm.xlu0 %3907, %v933
        %v3909 = vpop.permute.xlu0 %3908
        %3910 = vset.pattern.permute.xlu0 1
        %3911 = vperm.xlu0 %3910, %v1069
        %v3912 = vpop.permute.xlu0 %3911
        %3913 = vset.pattern.permute.xlu0 1
        %3914 = vperm.xlu0 %3913, %v1205
        %v3915 = vpop.permute.xlu0 %3914
        %3916 = vset.pattern.permute.xlu0 1
        %3917 = vperm.xlu0 %3916, %v1341
        %v3918 = vpop.permute.xlu0 %3917
        %3919 = vset.pattern.permute.xlu0 1
        %3920 = vperm.xlu0 %3919, %v1477
        %v3921 = vpop.permute.xlu0 %3920
        %3922 = vset.pattern.permute.xlu0 1
        %3923 = vperm.xlu0 %3922, %v1613
        %v3924 = vpop.permute.xlu0 %3923
        %3925 = vset.pattern.permute.xlu0 1
        %3926 = vperm.xlu0 %3925, %v1749
        %v3927 = vpop.permute.xlu0 %3926
        %3928 = vset.pattern.permute.xlu0 1
        %3929 = vperm.xlu0 %3928, %v1885
        %v3930 = vpop.permute.xlu0 %3929
        %3931 = vset.pattern.permute.xlu0 1
        %3932 = vperm.xlu0 %3931, %v2021
        %v3933 = vpop.permute.xlu0 %3932
        %3934 = vset.pattern.permute.xlu0 1
        %3935 = vperm.xlu0 %3934, %v2157
        %v3936 = vpop.permute.xlu0 %3935
        %3937 = vset.pattern.permute.xlu0 1
        %3938 = vperm.xlu0 %3937, %v2293
        %v3939 = vpop.permute.xlu0 %3938
        %3940 = vset.pattern.permute.xlu0 1
        %3941 = vperm.xlu0 %3940, %v2429
        %v3942 = vpop.permute.xlu0 %3941
        %3943 = vset.pattern.permute.xlu0 1
        %3944 = vperm.xlu0 %3943, %v2565
        %v3945 = vpop.permute.xlu0 %3944
        %3946 = vset.pattern.permute.xlu0 1
        %3947 = vperm.xlu0 %3946, %v2701
        %v3948 = vpop.permute.xlu0 %3947
        %3949 = vset.pattern.permute.xlu0 1
        %3950 = vperm.xlu0 %3949, %v662
        %v3951 = vpop.permute.xlu0 %3950
        %3952 = vset.pattern.permute.xlu0 1
        %3953 = vperm.xlu0 %3952, %v798
        %v3954 = vpop.permute.xlu0 %3953
        %3955 = vset.pattern.permute.xlu0 1
        %3956 = vperm.xlu0 %3955, %v934
        %v3957 = vpop.permute.xlu0 %3956
        %3958 = vset.pattern.permute.xlu0 1
        %3959 = vperm.xlu0 %3958, %v1070
        %v3960 = vpop.permute.xlu0 %3959
        %3961 = vset.pattern.permute.xlu0 1
        %3962 = vperm.xlu0 %3961, %v1206
        %v3963 = vpop.permute.xlu0 %3962
        %3964 = vset.pattern.permute.xlu0 1
        %3965 = vperm.xlu0 %3964, %v1342
        %v3966 = vpop.permute.xlu0 %3965
        %3967 = vset.pattern.permute.xlu0 1
        %3968 = vperm.xlu0 %3967, %v1478
        %v3969 = vpop.permute.xlu0 %3968
        %3970 = vset.pattern.permute.xlu0 1
        %3971 = vperm.xlu0 %3970, %v1614
        %v3972 = vpop.permute.xlu0 %3971
        %3973 = vset.pattern.permute.xlu0 1
        %3974 = vperm.xlu0 %3973, %v1750
        %v3975 = vpop.permute.xlu0 %3974
        %3976 = vset.pattern.permute.xlu0 1
        %3977 = vperm.xlu0 %3976, %v1886
        %v3978 = vpop.permute.xlu0 %3977
        %3979 = vset.pattern.permute.xlu0 1
        %3980 = vperm.xlu0 %3979, %v2022
        %v3981 = vpop.permute.xlu0 %3980
        %3982 = vset.pattern.permute.xlu0 1
        %3983 = vperm.xlu0 %3982, %v2158
        %v3984 = vpop.permute.xlu0 %3983
        %3985 = vset.pattern.permute.xlu0 1
        %3986 = vperm.xlu0 %3985, %v2294
        %v3987 = vpop.permute.xlu0 %3986
        %3988 = vset.pattern.permute.xlu0 1
        %3989 = vperm.xlu0 %3988, %v2430
        %v3990 = vpop.permute.xlu0 %3989
        %3991 = vset.pattern.permute.xlu0 1
        %3992 = vperm.xlu0 %3991, %v2566
        %v3993 = vpop.permute.xlu0 %3992
        %3994 = vset.pattern.permute.xlu0 1
        %3995 = vperm.xlu0 %3994, %v2702
        %v3996 = vpop.permute.xlu0 %3995
        %3997 = vset.pattern.permute.xlu0 1
        %3998 = vperm.xlu0 %3997, %v663
        %v3999 = vpop.permute.xlu0 %3998
        %4000 = vset.pattern.permute.xlu0 1
        %4001 = vperm.xlu0 %4000, %v799
        %v4002 = vpop.permute.xlu0 %4001
        %4003 = vset.pattern.permute.xlu0 1
        %4004 = vperm.xlu0 %4003, %v935
        %v4005 = vpop.permute.xlu0 %4004
        %4006 = vset.pattern.permute.xlu0 1
        %4007 = vperm.xlu0 %4006, %v1071
        %v4008 = vpop.permute.xlu0 %4007
        %4009 = vset.pattern.permute.xlu0 1
        %4010 = vperm.xlu0 %4009, %v1207
        %v4011 = vpop.permute.xlu0 %4010
        %4012 = vset.pattern.permute.xlu0 1
        %4013 = vperm.xlu0 %4012, %v1343
        %v4014 = vpop.permute.xlu0 %4013
        %4015 = vset.pattern.permute.xlu0 1
        %4016 = vperm.xlu0 %4015, %v1479
        %v4017 = vpop.permute.xlu0 %4016
        %4018 = vset.pattern.permute.xlu0 1
        %4019 = vperm.xlu0 %4018, %v1615
        %v4020 = vpop.permute.xlu0 %4019
        %4021 = vset.pattern.permute.xlu0 1
        %4022 = vperm.xlu0 %4021, %v1751
        %v4023 = vpop.permute.xlu0 %4022
        %4024 = vset.pattern.permute.xlu0 1
        %4025 = vperm.xlu0 %4024, %v1887
        %v4026 = vpop.permute.xlu0 %4025
        %4027 = vset.pattern.permute.xlu0 1
        %4028 = vperm.xlu0 %4027, %v2023
        %v4029 = vpop.permute.xlu0 %4028
        %4030 = vset.pattern.permute.xlu0 1
        %4031 = vperm.xlu0 %4030, %v2159
        %v4032 = vpop.permute.xlu0 %4031
        %4033 = vset.pattern.permute.xlu0 1
        %4034 = vperm.xlu0 %4033, %v2295
        %v4035 = vpop.permute.xlu0 %4034
        %4036 = vset.pattern.permute.xlu0 1
        %4037 = vperm.xlu0 %4036, %v2431
        %v4038 = vpop.permute.xlu0 %4037
        %4039 = vset.pattern.permute.xlu0 1
        %4040 = vperm.xlu0 %4039, %v2567
        %v4041 = vpop.permute.xlu0 %4040
        %4042 = vset.pattern.permute.xlu0 1
        %4043 = vperm.xlu0 %4042, %v2703
        %v4044 = vpop.permute.xlu0 %4043
        %4045 = vset.pattern.permute.xlu0 1
        %4046 = vperm.xlu0 %4045, %v664
        %v4047 = vpop.permute.xlu0 %4046
        %4048 = vset.pattern.permute.xlu0 1
        %4049 = vperm.xlu0 %4048, %v800
        %v4050 = vpop.permute.xlu0 %4049
        %4051 = vset.pattern.permute.xlu0 1
        %4052 = vperm.xlu0 %4051, %v936
        %v4053 = vpop.permute.xlu0 %4052
        %4054 = vset.pattern.permute.xlu0 1
        %4055 = vperm.xlu0 %4054, %v1072
        %v4056 = vpop.permute.xlu0 %4055
        %4057 = vset.pattern.permute.xlu0 1
        %4058 = vperm.xlu0 %4057, %v1208
        %v4059 = vpop.permute.xlu0 %4058
        %4060 = vset.pattern.permute.xlu0 1
        %4061 = vperm.xlu0 %4060, %v1344
        %v4062 = vpop.permute.xlu0 %4061
        %4063 = vset.pattern.permute.xlu0 1
        %4064 = vperm.xlu0 %4063, %v1480
        %v4065 = vpop.permute.xlu0 %4064
        %4066 = vset.pattern.permute.xlu0 1
        %4067 = vperm.xlu0 %4066, %v1616
        %v4068 = vpop.permute.xlu0 %4067
        %4069 = vset.pattern.permute.xlu0 1
        %4070 = vperm.xlu0 %4069, %v1752
        %v4071 = vpop.permute.xlu0 %4070
        %4072 = vset.pattern.permute.xlu0 1
        %4073 = vperm.xlu0 %4072, %v1888
        %v4074 = vpop.permute.xlu0 %4073
        %4075 = vset.pattern.permute.xlu0 1
        %4076 = vperm.xlu0 %4075, %v2024
        %v4077 = vpop.permute.xlu0 %4076
        %4078 = vset.pattern.permute.xlu0 1
        %4079 = vperm.xlu0 %4078, %v2160
        %v4080 = vpop.permute.xlu0 %4079
        %4081 = vset.pattern.permute.xlu0 1
        %4082 = vperm.xlu0 %4081, %v2296
        %v4083 = vpop.permute.xlu0 %4082
        %4084 = vset.pattern.permute.xlu0 1
        %4085 = vperm.xlu0 %4084, %v2432
        %v4086 = vpop.permute.xlu0 %4085
        %4087 = vset.pattern.permute.xlu0 1
        %4088 = vperm.xlu0 %4087, %v2568
        %v4089 = vpop.permute.xlu0 %4088
        %4090 = vset.pattern.permute.xlu0 1
        %4091 = vperm.xlu0 %4090, %v2704
        %v4092 = vpop.permute.xlu0 %4091
        %4093 = vset.pattern.permute.xlu0 1
        %4094 = vperm.xlu0 %4093, %v665
        %v4095 = vpop.permute.xlu0 %4094
        %4096 = vset.pattern.permute.xlu0 1
        %4097 = vperm.xlu0 %4096, %v801
        %v4098 = vpop.permute.xlu0 %4097
        %4099 = vset.pattern.permute.xlu0 1
        %4100 = vperm.xlu0 %4099, %v937
        %v4101 = vpop.permute.xlu0 %4100
        %4102 = vset.pattern.permute.xlu0 1
        %4103 = vperm.xlu0 %4102, %v1073
        %v4104 = vpop.permute.xlu0 %4103
        %4105 = vset.pattern.permute.xlu0 1
        %4106 = vperm.xlu0 %4105, %v1209
        %v4107 = vpop.permute.xlu0 %4106
        %4108 = vset.pattern.permute.xlu0 1
        %4109 = vperm.xlu0 %4108, %v1345
        %v4110 = vpop.permute.xlu0 %4109
        %4111 = vset.pattern.permute.xlu0 1
        %4112 = vperm.xlu0 %4111, %v1481
        %v4113 = vpop.permute.xlu0 %4112
        %4114 = vset.pattern.permute.xlu0 1
        %4115 = vperm.xlu0 %4114, %v1617
        %v4116 = vpop.permute.xlu0 %4115
        %4117 = vset.pattern.permute.xlu0 1
        %4118 = vperm.xlu0 %4117, %v1753
        %v4119 = vpop.permute.xlu0 %4118
        %4120 = vset.pattern.permute.xlu0 1
        %4121 = vperm.xlu0 %4120, %v1889
        %v4122 = vpop.permute.xlu0 %4121
        %4123 = vset.pattern.permute.xlu0 1
        %4124 = vperm.xlu0 %4123, %v2025
        %v4125 = vpop.permute.xlu0 %4124
        %4126 = vset.pattern.permute.xlu0 1
        %4127 = vperm.xlu0 %4126, %v2161
        %v4128 = vpop.permute.xlu0 %4127
        %4129 = vset.pattern.permute.xlu0 1
        %4130 = vperm.xlu0 %4129, %v2297
        %v4131 = vpop.permute.xlu0 %4130
        %4132 = vset.pattern.permute.xlu0 1
        %4133 = vperm.xlu0 %4132, %v2433
        %v4134 = vpop.permute.xlu0 %4133
        %4135 = vset.pattern.permute.xlu0 1
        %4136 = vperm.xlu0 %4135, %v2569
        %v4137 = vpop.permute.xlu0 %4136
        %4138 = vset.pattern.permute.xlu0 1
        %4139 = vperm.xlu0 %4138, %v2705
        %v4140 = vpop.permute.xlu0 %4139
        %4141 = vset.pattern.permute.xlu0 1
        %4142 = vperm.xlu0 %4141, %v666
        %v4143 = vpop.permute.xlu0 %4142
        %4144 = vset.pattern.permute.xlu0 1
        %4145 = vperm.xlu0 %4144, %v802
        %v4146 = vpop.permute.xlu0 %4145
        %4147 = vset.pattern.permute.xlu0 1
        %4148 = vperm.xlu0 %4147, %v938
        %v4149 = vpop.permute.xlu0 %4148
        %4150 = vset.pattern.permute.xlu0 1
        %4151 = vperm.xlu0 %4150, %v1074
        %v4152 = vpop.permute.xlu0 %4151
        %4153 = vset.pattern.permute.xlu0 1
        %4154 = vperm.xlu0 %4153, %v1210
        %v4155 = vpop.permute.xlu0 %4154
        %4156 = vset.pattern.permute.xlu0 1
        %4157 = vperm.xlu0 %4156, %v1346
        %v4158 = vpop.permute.xlu0 %4157
        %4159 = vset.pattern.permute.xlu0 1
        %4160 = vperm.xlu0 %4159, %v1482
        %v4161 = vpop.permute.xlu0 %4160
        %4162 = vset.pattern.permute.xlu0 1
        %4163 = vperm.xlu0 %4162, %v1618
        %v4164 = vpop.permute.xlu0 %4163
        %4165 = vset.pattern.permute.xlu0 1
        %4166 = vperm.xlu0 %4165, %v1754
        %v4167 = vpop.permute.xlu0 %4166
        %4168 = vset.pattern.permute.xlu0 1
        %4169 = vperm.xlu0 %4168, %v1890
        %v4170 = vpop.permute.xlu0 %4169
        %4171 = vset.pattern.permute.xlu0 1
        %4172 = vperm.xlu0 %4171, %v2026
        %v4173 = vpop.permute.xlu0 %4172
        %4174 = vset.pattern.permute.xlu0 1
        %4175 = vperm.xlu0 %4174, %v2162
        %v4176 = vpop.permute.xlu0 %4175
        %4177 = vset.pattern.permute.xlu0 1
        %4178 = vperm.xlu0 %4177, %v2298
        %v4179 = vpop.permute.xlu0 %4178
        %4180 = vset.pattern.permute.xlu0 1
        %4181 = vperm.xlu0 %4180, %v2434
        %v4182 = vpop.permute.xlu0 %4181
        %4183 = vset.pattern.permute.xlu0 1
        %4184 = vperm.xlu0 %4183, %v2570
        %v4185 = vpop.permute.xlu0 %4184
        %4186 = vset.pattern.permute.xlu0 1
        %4187 = vperm.xlu0 %4186, %v2706
        %v4188 = vpop.permute.xlu0 %4187
        %4189 = vset.pattern.permute.xlu0 1
        %4190 = vperm.xlu0 %4189, %v667
        %v4191 = vpop.permute.xlu0 %4190
        %4192 = vset.pattern.permute.xlu0 1
        %4193 = vperm.xlu0 %4192, %v803
        %v4194 = vpop.permute.xlu0 %4193
        %4195 = vset.pattern.permute.xlu0 1
        %4196 = vperm.xlu0 %4195, %v939
        %v4197 = vpop.permute.xlu0 %4196
        %4198 = vset.pattern.permute.xlu0 1
        %4199 = vperm.xlu0 %4198, %v1075
        %v4200 = vpop.permute.xlu0 %4199
        %4201 = vset.pattern.permute.xlu0 1
        %4202 = vperm.xlu0 %4201, %v1211
        %v4203 = vpop.permute.xlu0 %4202
        %4204 = vset.pattern.permute.xlu0 1
        %4205 = vperm.xlu0 %4204, %v1347
        %v4206 = vpop.permute.xlu0 %4205
        %4207 = vset.pattern.permute.xlu0 1
        %4208 = vperm.xlu0 %4207, %v1483
        %v4209 = vpop.permute.xlu0 %4208
        %4210 = vset.pattern.permute.xlu0 1
        %4211 = vperm.xlu0 %4210, %v1619
        %v4212 = vpop.permute.xlu0 %4211
        %4213 = vset.pattern.permute.xlu0 1
        %4214 = vperm.xlu0 %4213, %v1755
        %v4215 = vpop.permute.xlu0 %4214
        %4216 = vset.pattern.permute.xlu0 1
        %4217 = vperm.xlu0 %4216, %v1891
        %v4218 = vpop.permute.xlu0 %4217
        %4219 = vset.pattern.permute.xlu0 1
        %4220 = vperm.xlu0 %4219, %v2027
        %v4221 = vpop.permute.xlu0 %4220
        %4222 = vset.pattern.permute.xlu0 1
        %4223 = vperm.xlu0 %4222, %v2163
        %v4224 = vpop.permute.xlu0 %4223
        %4225 = vset.pattern.permute.xlu0 1
        %4226 = vperm.xlu0 %4225, %v2299
        %v4227 = vpop.permute.xlu0 %4226
        %4228 = vset.pattern.permute.xlu0 1
        %4229 = vperm.xlu0 %4228, %v2435
        %v4230 = vpop.permute.xlu0 %4229
        %4231 = vset.pattern.permute.xlu0 1
        %4232 = vperm.xlu0 %4231, %v2571
        %v4233 = vpop.permute.xlu0 %4232
        %4234 = vset.pattern.permute.xlu0 1
        %4235 = vperm.xlu0 %4234, %v2707
        %v4236 = vpop.permute.xlu0 %4235
        %4237 = vset.pattern.permute.xlu0 1
        %4238 = vperm.xlu0 %4237, %v668
        %v4239 = vpop.permute.xlu0 %4238
        %4240 = vset.pattern.permute.xlu0 1
        %4241 = vperm.xlu0 %4240, %v804
        %v4242 = vpop.permute.xlu0 %4241
        %4243 = vset.pattern.permute.xlu0 1
        %4244 = vperm.xlu0 %4243, %v940
        %v4245 = vpop.permute.xlu0 %4244
        %4246 = vset.pattern.permute.xlu0 1
        %4247 = vperm.xlu0 %4246, %v1076
        %v4248 = vpop.permute.xlu0 %4247
        %4249 = vset.pattern.permute.xlu0 1
        %4250 = vperm.xlu0 %4249, %v1212
        %v4251 = vpop.permute.xlu0 %4250
        %4252 = vset.pattern.permute.xlu0 1
        %4253 = vperm.xlu0 %4252, %v1348
        %v4254 = vpop.permute.xlu0 %4253
        %4255 = vset.pattern.permute.xlu0 1
        %4256 = vperm.xlu0 %4255, %v1484
        %v4257 = vpop.permute.xlu0 %4256
        %4258 = vset.pattern.permute.xlu0 1
        %4259 = vperm.xlu0 %4258, %v1620
        %v4260 = vpop.permute.xlu0 %4259
        %4261 = vset.pattern.permute.xlu0 1
        %4262 = vperm.xlu0 %4261, %v1756
        %v4263 = vpop.permute.xlu0 %4262
        %4264 = vset.pattern.permute.xlu0 1
        %4265 = vperm.xlu0 %4264, %v1892
        %v4266 = vpop.permute.xlu0 %4265
        %4267 = vset.pattern.permute.xlu0 1
        %4268 = vperm.xlu0 %4267, %v2028
        %v4269 = vpop.permute.xlu0 %4268
        %4270 = vset.pattern.permute.xlu0 1
        %4271 = vperm.xlu0 %4270, %v2164
        %v4272 = vpop.permute.xlu0 %4271
        %4273 = vset.pattern.permute.xlu0 1
        %4274 = vperm.xlu0 %4273, %v2300
        %v4275 = vpop.permute.xlu0 %4274
        %4276 = vset.pattern.permute.xlu0 1
        %4277 = vperm.xlu0 %4276, %v2436
        %v4278 = vpop.permute.xlu0 %4277
        %4279 = vset.pattern.permute.xlu0 1
        %4280 = vperm.xlu0 %4279, %v2572
        %v4281 = vpop.permute.xlu0 %4280
        %4282 = vset.pattern.permute.xlu0 1
        %4283 = vperm.xlu0 %4282, %v2708
        %v4284 = vpop.permute.xlu0 %4283
        %v4285 = vlaneseq
        %v4286 = vshrl.u32 %v4285, 7
        %v4287 = vsub.s32 %v3222, %v4286
        %v4288 = vrot.slane %v3903, %v4287
        %v4289 = vlaneseq
        %v4290 = vshrl.u32 %v4289, 7
        %v4291 = vsub.s32 %v3227, %v4290
        %v4292 = vrot.slane %v3906, %v4291
        %v4293 = vsel %vm3232, %v4292, %v4288
        %v4294 = vlaneseq
        %v4295 = vshrl.u32 %v4294, 7
        %v4296 = vsub.s32 %v3234, %v4295
        %v4297 = vrot.slane %v3909, %v4296
        %v4298 = vsel %vm3239, %v4297, %v4293
        %v4299 = vlaneseq
        %v4300 = vshrl.u32 %v4299, 7
        %v4301 = vsub.s32 %v3241, %v4300
        %v4302 = vrot.slane %v3912, %v4301
        %v4303 = vsel %vm3246, %v4302, %v4298
        %v4304 = vlaneseq
        %v4305 = vshrl.u32 %v4304, 7
        %v4306 = vsub.s32 %v3248, %v4305
        %v4307 = vrot.slane %v3915, %v4306
        %v4308 = vsel %vm3253, %v4307, %v4303
        %v4309 = vlaneseq
        %v4310 = vshrl.u32 %v4309, 7
        %v4311 = vsub.s32 %v3255, %v4310
        %v4312 = vrot.slane %v3918, %v4311
        %v4313 = vsel %vm3260, %v4312, %v4308
        %v4314 = vlaneseq
        %v4315 = vshrl.u32 %v4314, 7
        %v4316 = vsub.s32 %v3262, %v4315
        %v4317 = vrot.slane %v3921, %v4316
        %v4318 = vsel %vm3267, %v4317, %v4313
        %v4319 = vlaneseq
        %v4320 = vshrl.u32 %v4319, 7
        %v4321 = vsub.s32 %v3269, %v4320
        %v4322 = vrot.slane %v3924, %v4321
        %v4323 = vsel %vm3274, %v4322, %v4318
        %v4324 = vlaneseq
        %v4325 = vshrl.u32 %v4324, 7
        %v4326 = vsub.s32 %v3276, %v4325
        %v4327 = vrot.slane %v3927, %v4326
        %v4328 = vsel %vm3281, %v4327, %v4323
        %v4329 = vlaneseq
        %v4330 = vshrl.u32 %v4329, 7
        %v4331 = vsub.s32 %v3283, %v4330
        %v4332 = vrot.slane %v3930, %v4331
        %v4333 = vsel %vm3288, %v4332, %v4328
        %v4334 = vlaneseq
        %v4335 = vshrl.u32 %v4334, 7
        %v4336 = vsub.s32 %v3290, %v4335
        %v4337 = vrot.slane %v3933, %v4336
        %v4338 = vsel %vm3295, %v4337, %v4333
        %v4339 = vlaneseq
        %v4340 = vshrl.u32 %v4339, 7
        %v4341 = vsub.s32 %v3297, %v4340
        %v4342 = vrot.slane %v3936, %v4341
        %v4343 = vsel %vm3302, %v4342, %v4338
        %v4344 = vlaneseq
        %v4345 = vshrl.u32 %v4344, 7
        %v4346 = vsub.s32 %v3304, %v4345
        %v4347 = vrot.slane %v3939, %v4346
        %v4348 = vsel %vm3309, %v4347, %v4343
        %v4349 = vlaneseq
        %v4350 = vshrl.u32 %v4349, 7
        %v4351 = vsub.s32 %v3311, %v4350
        %v4352 = vrot.slane %v3942, %v4351
        %v4353 = vsel %vm3316, %v4352, %v4348
        %v4354 = vlaneseq
        %v4355 = vshrl.u32 %v4354, 7
        %v4356 = vsub.s32 %v3318, %v4355
        %v4357 = vrot.slane %v3945, %v4356
        %v4358 = vsel %vm3323, %v4357, %v4353
        %v4359 = vlaneseq
        %v4360 = vshrl.u32 %v4359, 7
        %v4361 = vsub.s32 %v3325, %v4360
        %v4362 = vrot.slane %v3948, %v4361
        %v4363 = vsel %vm3330, %v4362, %v4358
        %v4364 = vlaneseq
        %v4365 = vshrl.u32 %v4364, 7
        %v4366 = vsub.s32 %v3222, %v4365
        %v4367 = vrot.slane %v3951, %v4366
        %v4368 = vlaneseq
        %v4369 = vshrl.u32 %v4368, 7
        %v4370 = vsub.s32 %v3227, %v4369
        %v4371 = vrot.slane %v3954, %v4370
        %v4372 = vsel %vm3232, %v4371, %v4367
        %v4373 = vlaneseq
        %v4374 = vshrl.u32 %v4373, 7
        %v4375 = vsub.s32 %v3234, %v4374
        %v4376 = vrot.slane %v3957, %v4375
        %v4377 = vsel %vm3239, %v4376, %v4372
        %v4378 = vlaneseq
        %v4379 = vshrl.u32 %v4378, 7
        %v4380 = vsub.s32 %v3241, %v4379
        %v4381 = vrot.slane %v3960, %v4380
        %v4382 = vsel %vm3246, %v4381, %v4377
        %v4383 = vlaneseq
        %v4384 = vshrl.u32 %v4383, 7
        %v4385 = vsub.s32 %v3248, %v4384
        %v4386 = vrot.slane %v3963, %v4385
        %v4387 = vsel %vm3253, %v4386, %v4382
        %v4388 = vlaneseq
        %v4389 = vshrl.u32 %v4388, 7
        %v4390 = vsub.s32 %v3255, %v4389
        %v4391 = vrot.slane %v3966, %v4390
        %v4392 = vsel %vm3260, %v4391, %v4387
        %v4393 = vlaneseq
        %v4394 = vshrl.u32 %v4393, 7
        %v4395 = vsub.s32 %v3262, %v4394
        %v4396 = vrot.slane %v3969, %v4395
        %v4397 = vsel %vm3267, %v4396, %v4392
        %v4398 = vlaneseq
        %v4399 = vshrl.u32 %v4398, 7
        %v4400 = vsub.s32 %v3269, %v4399
        %v4401 = vrot.slane %v3972, %v4400
        %v4402 = vsel %vm3274, %v4401, %v4397
        %v4403 = vlaneseq
        %v4404 = vshrl.u32 %v4403, 7
        %v4405 = vsub.s32 %v3276, %v4404
        %v4406 = vrot.slane %v3975, %v4405
        %v4407 = vsel %vm3281, %v4406, %v4402
        %v4408 = vlaneseq
        %v4409 = vshrl.u32 %v4408, 7
        %v4410 = vsub.s32 %v3283, %v4409
        %v4411 = vrot.slane %v3978, %v4410
        %v4412 = vsel %vm3288, %v4411, %v4407
        %v4413 = vlaneseq
        %v4414 = vshrl.u32 %v4413, 7
        %v4415 = vsub.s32 %v3290, %v4414
        %v4416 = vrot.slane %v3981, %v4415
        %v4417 = vsel %vm3295, %v4416, %v4412
        %v4418 = vlaneseq
        %v4419 = vshrl.u32 %v4418, 7
        %v4420 = vsub.s32 %v3297, %v4419
        %v4421 = vrot.slane %v3984, %v4420
        %v4422 = vsel %vm3302, %v4421, %v4417
        %v4423 = vlaneseq
        %v4424 = vshrl.u32 %v4423, 7
        %v4425 = vsub.s32 %v3304, %v4424
        %v4426 = vrot.slane %v3987, %v4425
        %v4427 = vsel %vm3309, %v4426, %v4422
        %v4428 = vlaneseq
        %v4429 = vshrl.u32 %v4428, 7
        %v4430 = vsub.s32 %v3311, %v4429
        %v4431 = vrot.slane %v3990, %v4430
        %v4432 = vsel %vm3316, %v4431, %v4427
        %v4433 = vlaneseq
        %v4434 = vshrl.u32 %v4433, 7
        %v4435 = vsub.s32 %v3318, %v4434
        %v4436 = vrot.slane %v3993, %v4435
        %v4437 = vsel %vm3323, %v4436, %v4432
        %v4438 = vlaneseq
        %v4439 = vshrl.u32 %v4438, 7
        %v4440 = vsub.s32 %v3325, %v4439
        %v4441 = vrot.slane %v3996, %v4440
        %v4442 = vsel %vm3330, %v4441, %v4437
        %v4443 = vlaneseq
        %v4444 = vshrl.u32 %v4443, 7
        %v4445 = vsub.s32 %v3222, %v4444
        %v4446 = vrot.slane %v3999, %v4445
        %v4447 = vlaneseq
        %v4448 = vshrl.u32 %v4447, 7
        %v4449 = vsub.s32 %v3227, %v4448
        %v4450 = vrot.slane %v4002, %v4449
        %v4451 = vsel %vm3232, %v4450, %v4446
        %v4452 = vlaneseq
        %v4453 = vshrl.u32 %v4452, 7
        %v4454 = vsub.s32 %v3234, %v4453
        %v4455 = vrot.slane %v4005, %v4454
        %v4456 = vsel %vm3239, %v4455, %v4451
        %v4457 = vlaneseq
        %v4458 = vshrl.u32 %v4457, 7
        %v4459 = vsub.s32 %v3241, %v4458
        %v4460 = vrot.slane %v4008, %v4459
        %v4461 = vsel %vm3246, %v4460, %v4456
        %v4462 = vlaneseq
        %v4463 = vshrl.u32 %v4462, 7
        %v4464 = vsub.s32 %v3248, %v4463
        %v4465 = vrot.slane %v4011, %v4464
        %v4466 = vsel %vm3253, %v4465, %v4461
        %v4467 = vlaneseq
        %v4468 = vshrl.u32 %v4467, 7
        %v4469 = vsub.s32 %v3255, %v4468
        %v4470 = vrot.slane %v4014, %v4469
        %v4471 = vsel %vm3260, %v4470, %v4466
        %v4472 = vlaneseq
        %v4473 = vshrl.u32 %v4472, 7
        %v4474 = vsub.s32 %v3262, %v4473
        %v4475 = vrot.slane %v4017, %v4474
        %v4476 = vsel %vm3267, %v4475, %v4471
        %v4477 = vlaneseq
        %v4478 = vshrl.u32 %v4477, 7
        %v4479 = vsub.s32 %v3269, %v4478
        %v4480 = vrot.slane %v4020, %v4479
        %v4481 = vsel %vm3274, %v4480, %v4476
        %v4482 = vlaneseq
        %v4483 = vshrl.u32 %v4482, 7
        %v4484 = vsub.s32 %v3276, %v4483
        %v4485 = vrot.slane %v4023, %v4484
        %v4486 = vsel %vm3281, %v4485, %v4481
        %v4487 = vlaneseq
        %v4488 = vshrl.u32 %v4487, 7
        %v4489 = vsub.s32 %v3283, %v4488
        %v4490 = vrot.slane %v4026, %v4489
        %v4491 = vsel %vm3288, %v4490, %v4486
        %v4492 = vlaneseq
        %v4493 = vshrl.u32 %v4492, 7
        %v4494 = vsub.s32 %v3290, %v4493
        %v4495 = vrot.slane %v4029, %v4494
        %v4496 = vsel %vm3295, %v4495, %v4491
        %v4497 = vlaneseq
        %v4498 = vshrl.u32 %v4497, 7
        %v4499 = vsub.s32 %v3297, %v4498
        %v4500 = vrot.slane %v4032, %v4499
        %v4501 = vsel %vm3302, %v4500, %v4496
        %v4502 = vlaneseq
        %v4503 = vshrl.u32 %v4502, 7
        %v4504 = vsub.s32 %v3304, %v4503
        %v4505 = vrot.slane %v4035, %v4504
        %v4506 = vsel %vm3309, %v4505, %v4501
        %v4507 = vlaneseq
        %v4508 = vshrl.u32 %v4507, 7
        %v4509 = vsub.s32 %v3311, %v4508
        %v4510 = vrot.slane %v4038, %v4509
        %v4511 = vsel %vm3316, %v4510, %v4506
        %v4512 = vlaneseq
        %v4513 = vshrl.u32 %v4512, 7
        %v4514 = vsub.s32 %v3318, %v4513
        %v4515 = vrot.slane %v4041, %v4514
        %v4516 = vsel %vm3323, %v4515, %v4511
        %v4517 = vlaneseq
        %v4518 = vshrl.u32 %v4517, 7
        %v4519 = vsub.s32 %v3325, %v4518
        %v4520 = vrot.slane %v4044, %v4519
        %v4521 = vsel %vm3330, %v4520, %v4516
        %v4522 = vlaneseq
        %v4523 = vshrl.u32 %v4522, 7
        %v4524 = vsub.s32 %v3222, %v4523
        %v4525 = vrot.slane %v4047, %v4524
        %v4526 = vlaneseq
        %v4527 = vshrl.u32 %v4526, 7
        %v4528 = vsub.s32 %v3227, %v4527
        %v4529 = vrot.slane %v4050, %v4528
        %v4530 = vsel %vm3232, %v4529, %v4525
        %v4531 = vlaneseq
        %v4532 = vshrl.u32 %v4531, 7
        %v4533 = vsub.s32 %v3234, %v4532
        %v4534 = vrot.slane %v4053, %v4533
        %v4535 = vsel %vm3239, %v4534, %v4530
        %v4536 = vlaneseq
        %v4537 = vshrl.u32 %v4536, 7
        %v4538 = vsub.s32 %v3241, %v4537
        %v4539 = vrot.slane %v4056, %v4538
        %v4540 = vsel %vm3246, %v4539, %v4535
        %v4541 = vlaneseq
        %v4542 = vshrl.u32 %v4541, 7
        %v4543 = vsub.s32 %v3248, %v4542
        %v4544 = vrot.slane %v4059, %v4543
        %v4545 = vsel %vm3253, %v4544, %v4540
        %v4546 = vlaneseq
        %v4547 = vshrl.u32 %v4546, 7
        %v4548 = vsub.s32 %v3255, %v4547
        %v4549 = vrot.slane %v4062, %v4548
        %v4550 = vsel %vm3260, %v4549, %v4545
        %v4551 = vlaneseq
        %v4552 = vshrl.u32 %v4551, 7
        %v4553 = vsub.s32 %v3262, %v4552
        %v4554 = vrot.slane %v4065, %v4553
        %v4555 = vsel %vm3267, %v4554, %v4550
        %v4556 = vlaneseq
        %v4557 = vshrl.u32 %v4556, 7
        %v4558 = vsub.s32 %v3269, %v4557
        %v4559 = vrot.slane %v4068, %v4558
        %v4560 = vsel %vm3274, %v4559, %v4555
        %v4561 = vlaneseq
        %v4562 = vshrl.u32 %v4561, 7
        %v4563 = vsub.s32 %v3276, %v4562
        %v4564 = vrot.slane %v4071, %v4563
        %v4565 = vsel %vm3281, %v4564, %v4560
        %v4566 = vlaneseq
        %v4567 = vshrl.u32 %v4566, 7
        %v4568 = vsub.s32 %v3283, %v4567
        %v4569 = vrot.slane %v4074, %v4568
        %v4570 = vsel %vm3288, %v4569, %v4565
        %v4571 = vlaneseq
        %v4572 = vshrl.u32 %v4571, 7
        %v4573 = vsub.s32 %v3290, %v4572
        %v4574 = vrot.slane %v4077, %v4573
        %v4575 = vsel %vm3295, %v4574, %v4570
        %v4576 = vlaneseq
        %v4577 = vshrl.u32 %v4576, 7
        %v4578 = vsub.s32 %v3297, %v4577
        %v4579 = vrot.slane %v4080, %v4578
        %v4580 = vsel %vm3302, %v4579, %v4575
        %v4581 = vlaneseq
        %v4582 = vshrl.u32 %v4581, 7
        %v4583 = vsub.s32 %v3304, %v4582
        %v4584 = vrot.slane %v4083, %v4583
        %v4585 = vsel %vm3309, %v4584, %v4580
        %v4586 = vlaneseq
        %v4587 = vshrl.u32 %v4586, 7
        %v4588 = vsub.s32 %v3311, %v4587
        %v4589 = vrot.slane %v4086, %v4588
        %v4590 = vsel %vm3316, %v4589, %v4585
        %v4591 = vlaneseq
        %v4592 = vshrl.u32 %v4591, 7
        %v4593 = vsub.s32 %v3318, %v4592
        %v4594 = vrot.slane %v4089, %v4593
        %v4595 = vsel %vm3323, %v4594, %v4590
        %v4596 = vlaneseq
        %v4597 = vshrl.u32 %v4596, 7
        %v4598 = vsub.s32 %v3325, %v4597
        %v4599 = vrot.slane %v4092, %v4598
        %v4600 = vsel %vm3330, %v4599, %v4595
        %v4601 = vlaneseq
        %v4602 = vshrl.u32 %v4601, 7
        %v4603 = vsub.s32 %v3222, %v4602
        %v4604 = vrot.slane %v4095, %v4603
        %v4605 = vlaneseq
        %v4606 = vshrl.u32 %v4605, 7
        %v4607 = vsub.s32 %v3227, %v4606
        %v4608 = vrot.slane %v4098, %v4607
        %v4609 = vsel %vm3232, %v4608, %v4604
        %v4610 = vlaneseq
        %v4611 = vshrl.u32 %v4610, 7
        %v4612 = vsub.s32 %v3234, %v4611
        %v4613 = vrot.slane %v4101, %v4612
        %v4614 = vsel %vm3239, %v4613, %v4609
        %v4615 = vlaneseq
        %v4616 = vshrl.u32 %v4615, 7
        %v4617 = vsub.s32 %v3241, %v4616
        %v4618 = vrot.slane %v4104, %v4617
        %v4619 = vsel %vm3246, %v4618, %v4614
        %v4620 = vlaneseq
        %v4621 = vshrl.u32 %v4620, 7
        %v4622 = vsub.s32 %v3248, %v4621
        %v4623 = vrot.slane %v4107, %v4622
        %v4624 = vsel %vm3253, %v4623, %v4619
        %v4625 = vlaneseq
        %v4626 = vshrl.u32 %v4625, 7
        %v4627 = vsub.s32 %v3255, %v4626
        %v4628 = vrot.slane %v4110, %v4627
        %v4629 = vsel %vm3260, %v4628, %v4624
        %v4630 = vlaneseq
        %v4631 = vshrl.u32 %v4630, 7
        %v4632 = vsub.s32 %v3262, %v4631
        %v4633 = vrot.slane %v4113, %v4632
        %v4634 = vsel %vm3267, %v4633, %v4629
        %v4635 = vlaneseq
        %v4636 = vshrl.u32 %v4635, 7
        %v4637 = vsub.s32 %v3269, %v4636
        %v4638 = vrot.slane %v4116, %v4637
        %v4639 = vsel %vm3274, %v4638, %v4634
        %v4640 = vlaneseq
        %v4641 = vshrl.u32 %v4640, 7
        %v4642 = vsub.s32 %v3276, %v4641
        %v4643 = vrot.slane %v4119, %v4642
        %v4644 = vsel %vm3281, %v4643, %v4639
        %v4645 = vlaneseq
        %v4646 = vshrl.u32 %v4645, 7
        %v4647 = vsub.s32 %v3283, %v4646
        %v4648 = vrot.slane %v4122, %v4647
        %v4649 = vsel %vm3288, %v4648, %v4644
        %v4650 = vlaneseq
        %v4651 = vshrl.u32 %v4650, 7
        %v4652 = vsub.s32 %v3290, %v4651
        %v4653 = vrot.slane %v4125, %v4652
        %v4654 = vsel %vm3295, %v4653, %v4649
        %v4655 = vlaneseq
        %v4656 = vshrl.u32 %v4655, 7
        %v4657 = vsub.s32 %v3297, %v4656
        %v4658 = vrot.slane %v4128, %v4657
        %v4659 = vsel %vm3302, %v4658, %v4654
        %v4660 = vlaneseq
        %v4661 = vshrl.u32 %v4660, 7
        %v4662 = vsub.s32 %v3304, %v4661
        %v4663 = vrot.slane %v4131, %v4662
        %v4664 = vsel %vm3309, %v4663, %v4659
        %v4665 = vlaneseq
        %v4666 = vshrl.u32 %v4665, 7
        %v4667 = vsub.s32 %v3311, %v4666
        %v4668 = vrot.slane %v4134, %v4667
        %v4669 = vsel %vm3316, %v4668, %v4664
        %v4670 = vlaneseq
        %v4671 = vshrl.u32 %v4670, 7
        %v4672 = vsub.s32 %v3318, %v4671
        %v4673 = vrot.slane %v4137, %v4672
        %v4674 = vsel %vm3323, %v4673, %v4669
        %v4675 = vlaneseq
        %v4676 = vshrl.u32 %v4675, 7
        %v4677 = vsub.s32 %v3325, %v4676
        %v4678 = vrot.slane %v4140, %v4677
        %v4679 = vsel %vm3330, %v4678, %v4674
        %v4680 = vlaneseq
        %v4681 = vshrl.u32 %v4680, 7
        %v4682 = vsub.s32 %v3222, %v4681
        %v4683 = vrot.slane %v4143, %v4682
        %v4684 = vlaneseq
        %v4685 = vshrl.u32 %v4684, 7
        %v4686 = vsub.s32 %v3227, %v4685
        %v4687 = vrot.slane %v4146, %v4686
        %v4688 = vsel %vm3232, %v4687, %v4683
        %v4689 = vlaneseq
        %v4690 = vshrl.u32 %v4689, 7
        %v4691 = vsub.s32 %v3234, %v4690
        %v4692 = vrot.slane %v4149, %v4691
        %v4693 = vsel %vm3239, %v4692, %v4688
        %v4694 = vlaneseq
        %v4695 = vshrl.u32 %v4694, 7
        %v4696 = vsub.s32 %v3241, %v4695
        %v4697 = vrot.slane %v4152, %v4696
        %v4698 = vsel %vm3246, %v4697, %v4693
        %v4699 = vlaneseq
        %v4700 = vshrl.u32 %v4699, 7
        %v4701 = vsub.s32 %v3248, %v4700
        %v4702 = vrot.slane %v4155, %v4701
        %v4703 = vsel %vm3253, %v4702, %v4698
        %v4704 = vlaneseq
        %v4705 = vshrl.u32 %v4704, 7
        %v4706 = vsub.s32 %v3255, %v4705
        %v4707 = vrot.slane %v4158, %v4706
        %v4708 = vsel %vm3260, %v4707, %v4703
        %v4709 = vlaneseq
        %v4710 = vshrl.u32 %v4709, 7
        %v4711 = vsub.s32 %v3262, %v4710
        %v4712 = vrot.slane %v4161, %v4711
        %v4713 = vsel %vm3267, %v4712, %v4708
        %v4714 = vlaneseq
        %v4715 = vshrl.u32 %v4714, 7
        %v4716 = vsub.s32 %v3269, %v4715
        %v4717 = vrot.slane %v4164, %v4716
        %v4718 = vsel %vm3274, %v4717, %v4713
        %v4719 = vlaneseq
        %v4720 = vshrl.u32 %v4719, 7
        %v4721 = vsub.s32 %v3276, %v4720
        %v4722 = vrot.slane %v4167, %v4721
        %v4723 = vsel %vm3281, %v4722, %v4718
        %v4724 = vlaneseq
        %v4725 = vshrl.u32 %v4724, 7
        %v4726 = vsub.s32 %v3283, %v4725
        %v4727 = vrot.slane %v4170, %v4726
        %v4728 = vsel %vm3288, %v4727, %v4723
        %v4729 = vlaneseq
        %v4730 = vshrl.u32 %v4729, 7
        %v4731 = vsub.s32 %v3290, %v4730
        %v4732 = vrot.slane %v4173, %v4731
        %v4733 = vsel %vm3295, %v4732, %v4728
        %v4734 = vlaneseq
        %v4735 = vshrl.u32 %v4734, 7
        %v4736 = vsub.s32 %v3297, %v4735
        %v4737 = vrot.slane %v4176, %v4736
        %v4738 = vsel %vm3302, %v4737, %v4733
        %v4739 = vlaneseq
        %v4740 = vshrl.u32 %v4739, 7
        %v4741 = vsub.s32 %v3304, %v4740
        %v4742 = vrot.slane %v4179, %v4741
        %v4743 = vsel %vm3309, %v4742, %v4738
        %v4744 = vlaneseq
        %v4745 = vshrl.u32 %v4744, 7
        %v4746 = vsub.s32 %v3311, %v4745
        %v4747 = vrot.slane %v4182, %v4746
        %v4748 = vsel %vm3316, %v4747, %v4743
        %v4749 = vlaneseq
        %v4750 = vshrl.u32 %v4749, 7
        %v4751 = vsub.s32 %v3318, %v4750
        %v4752 = vrot.slane %v4185, %v4751
        %v4753 = vsel %vm3323, %v4752, %v4748
        %v4754 = vlaneseq
        %v4755 = vshrl.u32 %v4754, 7
        %v4756 = vsub.s32 %v3325, %v4755
        %v4757 = vrot.slane %v4188, %v4756
        %v4758 = vsel %vm3330, %v4757, %v4753
        %v4759 = vlaneseq
        %v4760 = vshrl.u32 %v4759, 7
        %v4761 = vsub.s32 %v3222, %v4760
        %v4762 = vrot.slane %v4191, %v4761
        %v4763 = vlaneseq
        %v4764 = vshrl.u32 %v4763, 7
        %v4765 = vsub.s32 %v3227, %v4764
        %v4766 = vrot.slane %v4194, %v4765
        %v4767 = vsel %vm3232, %v4766, %v4762
        %v4768 = vlaneseq
        %v4769 = vshrl.u32 %v4768, 7
        %v4770 = vsub.s32 %v3234, %v4769
        %v4771 = vrot.slane %v4197, %v4770
        %v4772 = vsel %vm3239, %v4771, %v4767
        %v4773 = vlaneseq
        %v4774 = vshrl.u32 %v4773, 7
        %v4775 = vsub.s32 %v3241, %v4774
        %v4776 = vrot.slane %v4200, %v4775
        %v4777 = vsel %vm3246, %v4776, %v4772
        %v4778 = vlaneseq
        %v4779 = vshrl.u32 %v4778, 7
        %v4780 = vsub.s32 %v3248, %v4779
        %v4781 = vrot.slane %v4203, %v4780
        %v4782 = vsel %vm3253, %v4781, %v4777
        %v4783 = vlaneseq
        %v4784 = vshrl.u32 %v4783, 7
        %v4785 = vsub.s32 %v3255, %v4784
        %v4786 = vrot.slane %v4206, %v4785
        %v4787 = vsel %vm3260, %v4786, %v4782
        %v4788 = vlaneseq
        %v4789 = vshrl.u32 %v4788, 7
        %v4790 = vsub.s32 %v3262, %v4789
        %v4791 = vrot.slane %v4209, %v4790
        %v4792 = vsel %vm3267, %v4791, %v4787
        %v4793 = vlaneseq
        %v4794 = vshrl.u32 %v4793, 7
        %v4795 = vsub.s32 %v3269, %v4794
        %v4796 = vrot.slane %v4212, %v4795
        %v4797 = vsel %vm3274, %v4796, %v4792
        %v4798 = vlaneseq
        %v4799 = vshrl.u32 %v4798, 7
        %v4800 = vsub.s32 %v3276, %v4799
        %v4801 = vrot.slane %v4215, %v4800
        %v4802 = vsel %vm3281, %v4801, %v4797
        %v4803 = vlaneseq
        %v4804 = vshrl.u32 %v4803, 7
        %v4805 = vsub.s32 %v3283, %v4804
        %v4806 = vrot.slane %v4218, %v4805
        %v4807 = vsel %vm3288, %v4806, %v4802
        %v4808 = vlaneseq
        %v4809 = vshrl.u32 %v4808, 7
        %v4810 = vsub.s32 %v3290, %v4809
        %v4811 = vrot.slane %v4221, %v4810
        %v4812 = vsel %vm3295, %v4811, %v4807
        %v4813 = vlaneseq
        %v4814 = vshrl.u32 %v4813, 7
        %v4815 = vsub.s32 %v3297, %v4814
        %v4816 = vrot.slane %v4224, %v4815
        %v4817 = vsel %vm3302, %v4816, %v4812
        %v4818 = vlaneseq
        %v4819 = vshrl.u32 %v4818, 7
        %v4820 = vsub.s32 %v3304, %v4819
        %v4821 = vrot.slane %v4227, %v4820
        %v4822 = vsel %vm3309, %v4821, %v4817
        %v4823 = vlaneseq
        %v4824 = vshrl.u32 %v4823, 7
        %v4825 = vsub.s32 %v3311, %v4824
        %v4826 = vrot.slane %v4230, %v4825
        %v4827 = vsel %vm3316, %v4826, %v4822
        %v4828 = vlaneseq
        %v4829 = vshrl.u32 %v4828, 7
        %v4830 = vsub.s32 %v3318, %v4829
        %v4831 = vrot.slane %v4233, %v4830
        %v4832 = vsel %vm3323, %v4831, %v4827
        %v4833 = vlaneseq
        %v4834 = vshrl.u32 %v4833, 7
        %v4835 = vsub.s32 %v3325, %v4834
        %v4836 = vrot.slane %v4236, %v4835
        %v4837 = vsel %vm3330, %v4836, %v4832
        %v4838 = vlaneseq
        %v4839 = vshrl.u32 %v4838, 7
        %v4840 = vsub.s32 %v3222, %v4839
        %v4841 = vrot.slane %v4239, %v4840
        %v4842 = vlaneseq
        %v4843 = vshrl.u32 %v4842, 7
        %v4844 = vsub.s32 %v3227, %v4843
        %v4845 = vrot.slane %v4242, %v4844
        %v4846 = vsel %vm3232, %v4845, %v4841
        %v4847 = vlaneseq
        %v4848 = vshrl.u32 %v4847, 7
        %v4849 = vsub.s32 %v3234, %v4848
        %v4850 = vrot.slane %v4245, %v4849
        %v4851 = vsel %vm3239, %v4850, %v4846
        %v4852 = vlaneseq
        %v4853 = vshrl.u32 %v4852, 7
        %v4854 = vsub.s32 %v3241, %v4853
        %v4855 = vrot.slane %v4248, %v4854
        %v4856 = vsel %vm3246, %v4855, %v4851
        %v4857 = vlaneseq
        %v4858 = vshrl.u32 %v4857, 7
        %v4859 = vsub.s32 %v3248, %v4858
        %v4860 = vrot.slane %v4251, %v4859
        %v4861 = vsel %vm3253, %v4860, %v4856
        %v4862 = vlaneseq
        %v4863 = vshrl.u32 %v4862, 7
        %v4864 = vsub.s32 %v3255, %v4863
        %v4865 = vrot.slane %v4254, %v4864
        %v4866 = vsel %vm3260, %v4865, %v4861
        %v4867 = vlaneseq
        %v4868 = vshrl.u32 %v4867, 7
        %v4869 = vsub.s32 %v3262, %v4868
        %v4870 = vrot.slane %v4257, %v4869
        %v4871 = vsel %vm3267, %v4870, %v4866
        %v4872 = vlaneseq
        %v4873 = vshrl.u32 %v4872, 7
        %v4874 = vsub.s32 %v3269, %v4873
        %v4875 = vrot.slane %v4260, %v4874
        %v4876 = vsel %vm3274, %v4875, %v4871
        %v4877 = vlaneseq
        %v4878 = vshrl.u32 %v4877, 7
        %v4879 = vsub.s32 %v3276, %v4878
        %v4880 = vrot.slane %v4263, %v4879
        %v4881 = vsel %vm3281, %v4880, %v4876
        %v4882 = vlaneseq
        %v4883 = vshrl.u32 %v4882, 7
        %v4884 = vsub.s32 %v3283, %v4883
        %v4885 = vrot.slane %v4266, %v4884
        %v4886 = vsel %vm3288, %v4885, %v4881
        %v4887 = vlaneseq
        %v4888 = vshrl.u32 %v4887, 7
        %v4889 = vsub.s32 %v3290, %v4888
        %v4890 = vrot.slane %v4269, %v4889
        %v4891 = vsel %vm3295, %v4890, %v4886
        %v4892 = vlaneseq
        %v4893 = vshrl.u32 %v4892, 7
        %v4894 = vsub.s32 %v3297, %v4893
        %v4895 = vrot.slane %v4272, %v4894
        %v4896 = vsel %vm3302, %v4895, %v4891
        %v4897 = vlaneseq
        %v4898 = vshrl.u32 %v4897, 7
        %v4899 = vsub.s32 %v3304, %v4898
        %v4900 = vrot.slane %v4275, %v4899
        %v4901 = vsel %vm3309, %v4900, %v4896
        %v4902 = vlaneseq
        %v4903 = vshrl.u32 %v4902, 7
        %v4904 = vsub.s32 %v3311, %v4903
        %v4905 = vrot.slane %v4278, %v4904
        %v4906 = vsel %vm3316, %v4905, %v4901
        %v4907 = vlaneseq
        %v4908 = vshrl.u32 %v4907, 7
        %v4909 = vsub.s32 %v3318, %v4908
        %v4910 = vrot.slane %v4281, %v4909
        %v4911 = vsel %vm3323, %v4910, %v4906
        %v4912 = vlaneseq
        %v4913 = vshrl.u32 %v4912, 7
        %v4914 = vsub.s32 %v3325, %v4913
        %v4915 = vrot.slane %v4284, %v4914
        %v4916 = vsel %vm3330, %v4915, %v4911
        %v4917 = vsel %vm3885, %v4442, %v4363
        %v4918 = vsel %vm3887, %v4521, %v4917
        %v4919 = vsel %vm3889, %v4600, %v4918
        %v4920 = vsel %vm3891, %v4679, %v4919
        %v4921 = vsel %vm3893, %v4758, %v4920
        %v4922 = vsel %vm3895, %v4837, %v4921
        %v4923 = vsel %vm3897, %v4916, %v4922
        %s4925 = scalar_lea.vmem %s150, 8 [#allocation5]
        %4926 = vst [vmem:[%s4925] sm:$0xff] %v4923
        %s4927 = sand.u32 %s68, 1
        %s4928 = scalar_lea.sflag [#allocation4], %s4927
        %s4929 = sand.u32 %s68, 1
        %s4930 = smul.addr %s4929, 16
        %s4931 = scalar_lea.vmem [#allocation5], %s4930
        // Predicated region
        $region29: #{tpu_custom_call.1} parent=23 // pred_check
          %p4932 = pneg %p78
        $region30: #{tpu_custom_call.1} parent=23 // pred_check_branch
          %4934 = sbr.rel (%p4932) target = $region32
        $region31: #{tpu_custom_call.1} parent=23 // pred_region
          %s4936 = ssub.s32 256, 256
          %4937 = vsyncadd %s4928, %s4936
          %s4938 = smul.addr %s22, 4
          %s4939 = sadd.s32 %s23, %s4938
          %s4940 = smul.addr %s4939, 128
          %s4941 = scalar_lea.hbm %s1, %s4940
          %s4942 = sshll.u32 %s4931, 4
          %s4943 = int_to_ptr.vmem [resolvable:$true] %s4942
          %4948 = dma.vmem_to_hbm [thread:$0]  %s4943, 256, %s4941, %s4928, 128, 256, 8
        $region32: #{tpu_custom_call.1} parent=23 // pred_fallthru
          _
      $region24: #{tpu_custom_call.1} parent=5 // pred_fallthru
        _
      %p4949 = scmp.le.s32.totalorder 2, %s13
      // Predicated region
      $region33: #{tpu_custom_call.1} parent=5 // pred_check
        %p4950 = pneg %p4949
      $region34: #{tpu_custom_call.1} parent=5 // pred_check_branch
        %4952 = sbr.rel (%p4950) target = $region36
      $region35: #{tpu_custom_call.1} parent=5 // pred_region
        %s4953 = ssub.s32 %s13, 2
        // Predicated region
        $region37: #{tpu_custom_call.1} parent=35 // pred_check
          %p4954 = pneg %p84
        $region38: #{tpu_custom_call.1} parent=35 // pred_check_branch
          %4956 = sbr.rel (%p4954) target = $region40
        $region39: #{tpu_custom_call.1} parent=35 // pred_region
          %s4957 = sand.u32 %s69, 1
          %s4958 = scalar_lea.sflag [#allocation4], %s4957
          %s4959 = sand.u32 %s69, 1
          %s4960 = smul.addr %s4959, 16
          %s4961 = scalar_lea.vmem [#allocation5], %s4960
          %4962 = dma.done %s4958, 256
        $region40: #{tpu_custom_call.1} parent=35 // pred_fallthru
          _
      $region36: #{tpu_custom_call.1} parent=5 // pred_fallthru
        _
    $region6: #{tpu_custom_call.1} parent=1 // loop_footer
      %s17 = sadd.s32 1, %s13
    $region7: #{tpu_custom_call.1} parent=1 // loop_footer_branch
      %12 = sbr.rel target = $region3
    $region8: #{tpu_custom_call.1} parent=1 // loop_exit
      _
    %4963 = vsyncpa [#allocation3], 1
    %s4964 = scalar_lea.sflag [#allocation3], 1
    %4965 = vsyncpa %s4964, 1
    %4966 = vsyncpa [#allocation4], 1
    %s4967 = scalar_lea.sflag [#allocation4], 1
    %4968 = vsyncpa %s4967, 1

// kernel: tpu_custom_call.1
$region0: #{tpu_custom_call.1}
  #allocation0 [shape = 'u32[]', space=smem, size = 0x4, offset = 0x4, fixed_abs, tag = 'smem constant byte address 0x4 - core index']
  #allocation1 [shape = 'u32[144,128]{1,0:T(1,128)}', space=vmem, size = 0x12000, scoped, tag = 'internal scratch']
  %s0 = inlined_call_operand.hbm [shape: f32[2,8,128], index: 0, kind: input, shape index: {}]
  %s1 = inlined_call_operand.hbm [shape: f32[2,8,128], index: 1, kind: input, shape index: {}]
  %s2 = inlined_call_operand.hbm [shape: f32[2,2,8,128], index: 2, kind: output, shape index: {}]
  %s3 = sld [smem:[#allocation0]]
  $region49: #{tpu_custom_call.1} parent=0
    _
  %s5 = ssub.s32 1, %s3
  %s6 = scalar_select 0, %s5, %s3
  $region1: #{tpu_custom_call.1} parent=0
    #allocation2 [shape = 'u8[8192]{0}', space=vmem, size = 0x2000, scoped, tag = 'input window, operand 0']
    #allocation3 [shape = 's32[2]{0}', space=sflag, size = 0x8, scoped, tag = 'scoped memory for tpu_custom_call.1']
    #allocation4 [shape = 's32[2]{0}', space=sflag, size = 0x8, scoped, tag = 'scoped memory for tpu_custom_call.1']
    #allocation5 [shape = 'u8[8192]{0}', space=vmem, size = 0x2000, scoped, tag = 'input window, operand 1']
    #allocation6 [shape = 's32[2]{0}', space=sflag, size = 0x8, scoped, tag = 'scoped memory for tpu_custom_call.1']
    #allocation7 [shape = 'u8[16384]{0}', space=vmem, size = 0x4000, scoped, tag = 'output window, operand 0']
    %7 = vsyncpa [#allocation3], 0
    %s8 = scalar_lea.sflag [#allocation3], 1
    %9 = vsyncpa %s8, 0
    %10 = vsyncpa [#allocation6], 0
    %s11 = scalar_lea.sflag [#allocation6], 1
    %12 = vsyncpa %s11, 0
    %13 = vsyncpa [#allocation4], 0
    %s14 = scalar_lea.sflag [#allocation4], 1
    %15 = vsyncpa %s14, 0
    loop: start=0, step=1, limit=4
    $region2: #{tpu_custom_call.1} parent=1 // loop_pre_header
      _
    $region3: #{tpu_custom_call.1} parent=1 // loop_header
      %s17 = sphi 0, %s21
      %p18 = scmp.ge.s32.totalorder %s17, 4
      %s24 = sphi 0, %s36
      %s25 = sphi 0, %s32
      %s26 = sphi 0, %s24
      %s27 = sphi 0, %s25
      %s28 = sphi 0, %s26
      %s29 = sphi 0, %s27
      %s41 = sphi 0, %s43
      %s44 = sphi 0, %s41
      %s45 = sphi 0, %s44
      %s61 = sphi 0, %s45
      %s69 = sphi 0, %s71
      %s72 = sphi 0, %s69
      %s73 = sphi 0, %s72
      %s89 = sphi 0, %s73
      %s97 = sphi 0, %s99
      %s100 = sphi 0, %s97
      %s101 = sphi 0, %s100
      %s117 = sphi 0, %s101
    $region4: #{tpu_custom_call.1} parent=1 // loop_header_branch
      %20 = sbr.rel (%p18) target = $region8
    $region5: #{tpu_custom_call.1} parent=1 // loop_body
      %s22 = ssub.s32 %s17, 1
      %s23 = ssub.s32 %s17, 2
      %s30 = sadd.s32 1, %s25
      %p31 = scmp.ge.s32.totalorder %s30, 1
      %s32 = scalar_select %p31, 0, %s30
      %s33 = sadd.s32 1, %s24
      %s34 = scalar_select %p31, %s33, %s24
      %p35 = scmp.ge.s32.totalorder %s34, 2
      %s36 = scalar_select %p35, 0, %s34
      %s37 = ssub.s32 %s24, %s36
      %s38 = ssub.s32 %s25, %s32
      %s39 = sor.u32 %s37, %s38
      %p40 = scmp.eq.s32.totalorder %s39, 0
      %s42 = sadd.s32 %s41, 1
      %s43 = scalar_select %p40, %s41, %s42
      %p46 = pneg %p40
      %p47 = scmp.eq.s32.totalorder %s17, 1
      %p48 = por %p46, %p47
      %p49 = scmp.ne.s32.totalorder %s41, %s44
      %p50 = scmp.eq.s32.totalorder %s17, 0
      %p51 = por %p49, %p50
      %p52 = scmp.ne.s32.totalorder %s41, %s44
      %p53 = scmp.eq.s32.totalorder %s22, 1
      %p54 = por %p52, %p53
      %p55 = scmp.ne.s32.totalorder %s44, %s45
      %p56 = scmp.eq.s32.totalorder %s22, 0
      %p57 = por %p55, %p56
      %p58 = scmp.ne.s32.totalorder %s44, %s45
      %p59 = scmp.eq.s32.totalorder %s23, 1
      %p60 = por %p58, %p59
      %p62 = scmp.ne.s32.totalorder %s45, %s61
      %p63 = scmp.eq.s32.totalorder %s23, 0
      %p64 = por %p62, %p63
      %s65 = ssub.s32 %s24, %s36
      %s66 = ssub.s32 %s25, %s32
      %s67 = sor.u32 %s65, %s66
      %p68 = scmp.eq.s32.totalorder %s67, 0
      %s70 = sadd.s32 %s69, 1
      %s71 = scalar_select %p68, %s69, %s70
      %p74 = pneg %p68
      %p75 = scmp.eq.s32.totalorder %s17, 1
      %p76 = por %p74, %p75
      %p77 = scmp.ne.s32.totalorder %s69, %s72
      %p78 = scmp.eq.s32.totalorder %s17, 0
      %p79 = por %p77, %p78
      %p80 = scmp.ne.s32.totalorder %s69, %s72
      %p81 = scmp.eq.s32.totalorder %s22, 1
      %p82 = por %p80, %p81
      %p83 = scmp.ne.s32.totalorder %s72, %s73
      %p84 = scmp.eq.s32.totalorder %s22, 0
      %p85 = por %p83, %p84
      %p86 = scmp.ne.s32.totalorder %s72, %s73
      %p87 = scmp.eq.s32.totalorder %s23, 1
      %p88 = por %p86, %p87
      %p90 = scmp.ne.s32.totalorder %s73, %s89
      %p91 = scmp.eq.s32.totalorder %s23, 0
      %p92 = por %p90, %p91
      %s93 = ssub.s32 %s24, %s36
      %s94 = ssub.s32 %s25, %s32
      %s95 = sor.u32 %s93, %s94
      %p96 = scmp.eq.s32.totalorder %s95, 0
      %s98 = sadd.s32 %s97, 1
      %s99 = scalar_select %p96, %s97, %s98
      %p102 = pneg %p96
      %p103 = scmp.eq.s32.totalorder %s17, 1
      %p104 = por %p102, %p103
      %p105 = scmp.ne.s32.totalorder %s97, %s100
      %p106 = scmp.eq.s32.totalorder %s17, 0
      %p107 = por %p105, %p106
      %p108 = scmp.ne.s32.totalorder %s97, %s100
      %p109 = scmp.eq.s32.totalorder %s22, 1
      %p110 = por %p108, %p109
      %p111 = scmp.ne.s32.totalorder %s100, %s101
      %p112 = scmp.eq.s32.totalorder %s22, 0
      %p113 = por %p111, %p112
      %p114 = scmp.ne.s32.totalorder %s100, %s101
      %p115 = scmp.eq.s32.totalorder %s23, 1
      %p116 = por %p114, %p115
      %p118 = scmp.ne.s32.totalorder %s101, %s117
      %p119 = scmp.eq.s32.totalorder %s23, 0
      %p120 = por %p118, %p119
      %p121 = scmp.le.s32.totalorder 1, %s17
      %p122 = scmp.lt.s32.totalorder %s17, 3
      %p123 = pnand %p121, %p122
      %p124 = pneg %p123
      // Predicated region
      $region9: #{tpu_custom_call.1} parent=5 // pred_check
        _
      $region10: #{tpu_custom_call.1} parent=5 // pred_check_branch
        %126 = sbr.rel (%p123) target = $region12
      $region11: #{tpu_custom_call.1} parent=5 // pred_region
        %s127 = ssub.s32 %s17, 1
      $region12: #{tpu_custom_call.1} parent=5 // pred_fallthru
        _
      %p128 = scmp.lt.s32.totalorder %s17, 2
      // Predicated region
      $region13: #{tpu_custom_call.1} parent=5 // pred_check
        %p129 = pneg %p128
      $region14: #{tpu_custom_call.1} parent=5 // pred_check_branch
        %131 = sbr.rel (%p129) target = $region16
      $region15: #{tpu_custom_call.1} parent=5 // pred_region
        // Predicated region
        $region17: #{tpu_custom_call.1} parent=15 // pred_check
          %p132 = pneg %p51
        $region18: #{tpu_custom_call.1} parent=15 // pred_check_branch
          %134 = sbr.rel (%p132) target = $region20
        $region19: #{tpu_custom_call.1} parent=15 // pred_region
          %s135 = sand.u32 %s41, 1
          %s136 = scalar_lea.sflag [#allocation3], %s135
          %s137 = sand.u32 %s41, 1
          %s138 = smul.addr %s137, 8
          %s139 = scalar_lea.vmem [#allocation2], %s138
          %s141 = ssub.s32 128, 128
          %142 = vsyncadd %s136, %s141
          %s143 = sadd.s32 %s25, %s24
          %s144 = smul.addr %s143, 128
          %s145 = scalar_lea.hbm %s0, %s144
          %s147 = sshll.u32 %s139, 4
          %s148 = int_to_ptr.vmem [resolvable:$true] %s147
          %150 = dma.hbm_to_vmem [thread:$0]  %s145, 128, %s148, %s136
        $region20: #{tpu_custom_call.1} parent=15 // pred_fallthru
          _
        // Predicated region
        $region21: #{tpu_custom_call.1} parent=15 // pred_check
          %p151 = pneg %p79
        $region22: #{tpu_custom_call.1} parent=15 // pred_check_branch
          %153 = sbr.rel (%p151) target = $region24
        $region23: #{tpu_custom_call.1} parent=15 // pred_region
          %s154 = sand.u32 %s69, 1
          %s155 = scalar_lea.sflag [#allocation6], %s154
          %s156 = sand.u32 %s69, 1
          %s157 = smul.addr %s156, 8
          %s158 = scalar_lea.vmem [#allocation5], %s157
          %s160 = ssub.s32 128, 128
          %161 = vsyncadd %s155, %s160
          %s162 = sadd.s32 %s25, %s24
          %s163 = smul.addr %s162, 128
          %s164 = scalar_lea.hbm %s1, %s163
          %s166 = sshll.u32 %s158, 4
          %s167 = int_to_ptr.vmem [resolvable:$true] %s166
          %169 = dma.hbm_to_vmem [thread:$0]  %s164, 128, %s167, %s155
        $region24: #{tpu_custom_call.1} parent=15 // pred_fallthru
          _
      $region16: #{tpu_custom_call.1} parent=5 // pred_fallthru
        _
      %p170 = scmp.le.s32.totalorder 1, %s17
      %p171 = scmp.lt.s32.totalorder %s17, 3
      %p172 = pnand %p170, %p171
      %p173 = pneg %p172
      // Predicated region
      $region25: #{tpu_custom_call.1} parent=5 // pred_check
        _
      $region26: #{tpu_custom_call.1} parent=5 // pred_check_branch
        %175 = sbr.rel (%p172) target = $region28
      $region27: #{tpu_custom_call.1} parent=5 // pred_region
        %s176 = ssub.s32 %s17, 1
        %s177 = sand.u32 %s44, 1
        %s178 = scalar_lea.sflag [#allocation3], %s177
        %s179 = sand.u32 %s44, 1
        %s180 = smul.addr %s179, 8
        %s181 = scalar_lea.vmem [#allocation2], %s180
        // Predicated region
        $region29: #{tpu_custom_call.1} parent=27 // pred_check
          %p182 = pneg %p57
        $region30: #{tpu_custom_call.1} parent=27 // pred_check_branch
          %184 = sbr.rel (%p182) target = $region32
        $region31: #{tpu_custom_call.1} parent=27 // pred_region
          %185 = dma.done %s178, 128
        $region32: #{tpu_custom_call.1} parent=27 // pred_fallthru
          _
        %s186 = sand.u32 %s72, 1
        %s187 = scalar_lea.sflag [#allocation6], %s186
        %s188 = sand.u32 %s72, 1
        %s189 = smul.addr %s188, 8
        %s190 = scalar_lea.vmem [#allocation5], %s189
        // Predicated region
        $region33: #{tpu_custom_call.1} parent=27 // pred_check
          %p191 = pneg %p85
        $region34: #{tpu_custom_call.1} parent=27 // pred_check_branch
          %193 = sbr.rel (%p191) target = $region36
        $region35: #{tpu_custom_call.1} parent=27 // pred_region
          %194 = dma.done %s187, 128
        $region36: #{tpu_custom_call.1} parent=27 // pred_fallthru
          _
        %s195 = sand.u32 %s44, 1
        %s196 = scalar_lea.sflag [#allocation3], %s195
        %s197 = sand.u32 %s44, 1
        %s198 = smul.addr %s197, 8
        %s199 = scalar_lea.vmem [#allocation2], %s198
        %p200 = pneg %p57
        %p201 = pneg %p54
        %s202 = sand.u32 %s72, 1
        %s203 = scalar_lea.sflag [#allocation6], %s202
        %s204 = sand.u32 %s72, 1
        %s205 = smul.addr %s204, 8
        %s206 = scalar_lea.vmem [#allocation5], %s205
        %p207 = pneg %p85
        %p208 = pneg %p82
        %p209 = pneg %p113
        %p210 = pneg %p110
        %s211 = sand.u32 %s100, 1
        %s212 = scalar_lea.sflag [#allocation4], %s211
        %s213 = sand.u32 %s100, 1
        %s214 = smul.addr %s213, 16
        %s215 = scalar_lea.vmem [#allocation7], %s214
        %v216 = vld [vmem:[%s181] sm:$0xff]
        %217 = vst [vmem:[%s215] sm:$0xff] %v216
        %v218 = vld [vmem:[%s190] sm:$0xff]
        %s219 = scalar_lea.vmem %s215, 8 [#allocation7]
        %220 = vst [vmem:[%s219] sm:$0xff] %v218
        %s221 = sand.u32 %s100, 1
        %s222 = scalar_lea.sflag [#allocation4], %s221
        %s223 = sand.u32 %s100, 1
        %s224 = smul.addr %s223, 16
        %s225 = scalar_lea.vmem [#allocation7], %s224
        // Predicated region
        $region37: #{tpu_custom_call.1} parent=27 // pred_check
          %p226 = pneg %p110
        $region38: #{tpu_custom_call.1} parent=27 // pred_check_branch
          %228 = sbr.rel (%p226) target = $region40
        $region39: #{tpu_custom_call.1} parent=27 // pred_region
          %s230 = ssub.s32 256, 256
          %231 = vsyncadd %s222, %s230
          %s232 = smul.addr %s26, 2
          %s233 = sadd.s32 %s27, %s232
          %s234 = smul.addr %s233, 128
          %s235 = scalar_lea.hbm %s2, %s234
          %s236 = sshll.u32 %s225, 4
          %s237 = int_to_ptr.vmem [resolvable:$true] %s236
          %242 = dma.vmem_to_hbm [thread:$0]  %s237, 256, %s235, %s222, 128, 128, 8
        $region40: #{tpu_custom_call.1} parent=27 // pred_fallthru
          _
      $region28: #{tpu_custom_call.1} parent=5 // pred_fallthru
        _
      %p243 = scmp.le.s32.totalorder 2, %s17
      // Predicated region
      $region41: #{tpu_custom_call.1} parent=5 // pred_check
        %p244 = pneg %p243
      $region42: #{tpu_custom_call.1} parent=5 // pred_check_branch
        %246 = sbr.rel (%p244) target = $region44
      $region43: #{tpu_custom_call.1} parent=5 // pred_region
        %s247 = ssub.s32 %s17, 2
        // Predicated region
        $region45: #{tpu_custom_call.1} parent=43 // pred_check
          %p248 = pneg %p116
        $region46: #{tpu_custom_call.1} parent=43 // pred_check_branch
          %250 = sbr.rel (%p248) target = $region48
        $region47: #{tpu_custom_call.1} parent=43 // pred_region
          %s251 = sand.u32 %s101, 1
          %s252 = scalar_lea.sflag [#allocation4], %s251
          %s253 = sand.u32 %s101, 1
          %s254 = smul.addr %s253, 16
          %s255 = scalar_lea.vmem [#allocation7], %s254
          %256 = dma.done %s252, 256
        $region48: #{tpu_custom_call.1} parent=43 // pred_fallthru
          _
      $region44: #{tpu_custom_call.1} parent=5 // pred_fallthru
        _
    $region6: #{tpu_custom_call.1} parent=1 // loop_footer
      %s21 = sadd.s32 1, %s17
    $region7: #{tpu_custom_call.1} parent=1 // loop_footer_branch
      %16 = sbr.rel target = $region3
    $region8: #{tpu_custom_call.1} parent=1 // loop_exit
      _
    %257 = vsyncpa [#allocation3], 1
    %s258 = scalar_lea.sflag [#allocation3], 1
    %259 = vsyncpa %s258, 1
    %260 = vsyncpa [#allocation6], 1
    %s261 = scalar_lea.sflag [#allocation6], 1
    %262 = vsyncpa %s261, 1
    %263 = vsyncpa [#allocation4], 1
    %s264 = scalar_lea.sflag [#allocation4], 1
    %265 = vsyncpa %s264, 1

</llo_original>
